<compile_context>
chip_gen: v6e
topology: v6e:2x2x1
jax: 0.10.0
libtpu: 0.0.40
codegen_flags: <defaults>
</compile_context>

<pallas_src>
import jax
import jax.numpy as jnp
from jax.experimental import pallas as pl
from jax.experimental.pallas import tpu as pltpu

# ----------------------------- model dims -----------------------------------
PROJECTION_DIM = 16      # Projection_dim in the reference module (unused in forward)
NUM_CLASSES = 10
HIDDEN = 32              # backbone.num_features
C_IN = 4
H = W = 16
B = 2
KH = KW = 3

HP, WP = H + 2, W + 2                  # 'same'-padded spatial extent (18, 18)
SP = HP * WP                           # 324 flattened padded positions per image
SPP = 384                              # per-image span padded to a multiple of 128 lanes
LANEX = B * SPP                        # 768 total lane extent (all positions of all images)
LANE_OUT = 128                         # lane-dense packed output width
FEAT_OFF, LOGITS_OFF, AUX_OFF = 0, HIDDEN, HIDDEN + NUM_CLASSES


# --------------------------- Pallas kernel -----------------------------------
def abcnet_fused_kernel(xp_ref, wt_ref, cb_ref, pm_ref, wh_ref, hb_ref, out_ref):
    """Single-invocation fused forward.

    xp_ref : (C_IN, LANEX)       padded images, flat (b, h, w) on lanes (each image zero-padded to SPP).
    wt_ref : (KH*KW, HIDDEN, C_IN)  per-tap conv weights, wt[t] = conv_w[:, :, t//3, t%3].
    cb_ref : (HIDDEN, 1)         conv bias (broadcast along lanes).
    pm_ref : (B, LANEX)          per-batch pooling mask: 1/(H*W) at that batch's valid output
                                 positions, 0 elsewhere (also kills padded-frame garbage).
    wh_ref : (HIDDEN, LANE_OUT)  packed head weight [I_32 | cls_w.T | aux_w.T | 0].
    hb_ref : (1, LANE_OUT)       packed head bias   [0    | cls_b   | aux_b   | 0].
    out_ref: (B, LANE_OUT)       packed [feat(0:32) | logits(32:42) | logits_aux(42:52) | 0].
    """
    xp = xp_ref[...]                                             # (C_IN, LANEX), lane-dense
    acc = None
    for t in range(KH * KW):                                     # 9 static taps
        dh, dw = t // KW, t % KW
        delta = (dh - 1) * WP + (dw - 1)                         # flat tap offset, |delta| <= 19
        xs = xp if delta == 0 else pltpu.roll(xp, (-delta) % LANEX, 1)
        part = jnp.dot(wt_ref[t], xs, preferred_element_type=jnp.float32)   # (HIDDEN, LANEX)
        acc = part if acc is None else acc + part
    hconv = jnp.maximum(acc + cb_ref[...], 0.0)                  # conv bias + ReLU, (HIDDEN, LANEX)

    wh = wh_ref[...]                                             # (HIDDEN, 128)
    hb = hb_ref[...]                                             # (1, 128)
    for b in range(B):                                           # tiny static loop (B = 2)
        # masked global-average-pool -> feat as a (HIDDEN, 1) sublane vector
        feat_b = jnp.sum(hconv * pm_ref[b:b + 1, :], axis=1, keepdims=True)
        # feat passthrough + both heads via one weighted sublane reduction (no transposes)
        out_ref[b:b + 1, :] = jnp.sum(wh * feat_b, axis=0, keepdims=True) + hb


# ------------------------------ wrapper --------------------------------------
def abcnet_fused_pallas(xp, wt, cb, pm, wh, hb):
    def full(a):
        return pl.BlockSpec(a.shape, lambda: (0,) * a.ndim)
    return pl.pallas_call(
        abcnet_fused_kernel,
        out_shape=jax.ShapeDtypeStruct((B, LANE_OUT), jnp.float32),
        grid_spec=pltpu.PrefetchScalarGridSpec(
            num_scalar_prefetch=0,
            grid=(),                                   # single step: no per-step pipeline overhead
            in_specs=[full(xp), full(wt), full(cb), full(pm), full(wh), full(hb)],
            out_specs=pl.BlockSpec((B, LANE_OUT), lambda: (0, 0)),
        ),
    )(xp, wt, cb, pm, wh, hb)


# ------------------------------ ABCNet forward -------------------------------
def init_params(key):
    ks = jax.random.split(key, 8)
    scale = 0.05
    return {
        # synthetic backbone: conv3x3 (C_IN -> HIDDEN) + classifier (HIDDEN -> NUM_CLASSES)
        "conv_w": scale * jax.random.normal(ks[0], (HIDDEN, C_IN, KH, KW), jnp.float32),
        "conv_b": scale * jax.random.normal(ks[1], (HIDDEN,), jnp.float32),
        "cls_w": scale * jax.random.normal(ks[2], (NUM_CLASSES, HIDDEN), jnp.float32),
        "cls_b": scale * jax.random.normal(ks[3], (NUM_CLASSES,), jnp.float32),
        # ABCNet-defined layers
        "aux_w": scale * jax.random.normal(ks[4], (NUM_CLASSES, HIDDEN), jnp.float32),
        "aux_b": scale * jax.random.normal(ks[5], (NUM_CLASSES,), jnp.float32),
        # TODO(synk): self.projection is defined in __init__ but never used in forward();
        # params kept for shape fidelity only, no compute.
        "proj_w": scale * jax.random.normal(ks[6], (PROJECTION_DIM, HIDDEN), jnp.float32),
        "proj_b": scale * jax.random.normal(ks[7], (PROJECTION_DIM,), jnp.float32),
    }


@jax.jit
def abcnet_forward(params, x):
    inv_hw = 1.0 / float(H * W)

    # ---- tiny weight packing (constant-folded / fused by XLA under jit) ----
    # per-tap conv weights: wt[t] = conv_w[:, :, t//3, t%3]  -> (9, HIDDEN, C_IN)
    wt = params["conv_w"].transpose(2, 3, 0, 1).reshape(KH * KW, HIDDEN, C_IN)
    cb = params["conv_b"].reshape(HIDDEN, 1)

    # padded images, all spatial positions flattened onto the lane axis
    xpad = jnp.pad(x, ((0, 0), (0, 0), (1, 1), (1, 1)))                      # (B, C, 18, 18)
    xflat = jnp.transpose(xpad, (1, 0, 2, 3)).reshape(C_IN, B, SP)           # (C, B, 324)
    xp = jnp.pad(xflat, ((0, 0), (0, 0), (0, SPP - SP))).reshape(C_IN, LANEX)

    # per-batch pooling mask over the flattened padded frame (1/HW on valid output positions)
    valid = jnp.pad(jnp.ones((H, W), jnp.float32), ((1, 1), (1, 1))).reshape(1, SP)
    valid = jnp.pad(valid, ((0, 0), (0, SPP - SP)))                          # (1, 384)
    pm = jnp.kron(jnp.eye(B, dtype=jnp.float32), valid) * inv_hw             # (B, 768)

    # merged head weight/bias: out = [feat | feat@cls_w.T+cls_b | feat@aux_w.T+aux_b | 0]
    pad_cols = LANE_OUT - (HIDDEN + 2 * NUM_CLASSES)
    wh = jnp.concatenate([jnp.eye(HIDDEN, dtype=jnp.float32),
                          params["cls_w"].T, params["aux_w"].T,
                          jnp.zeros((HIDDEN, pad_cols), jnp.float32)], axis=1)   # (32, 128)
    hb = jnp.concatenate([jnp.zeros((1, HIDDEN), jnp.float32),
                          params["cls_b"][None, :], params["aux_b"][None, :],
                          jnp.zeros((1, pad_cols), jnp.float32)], axis=1)        # (1, 128)

    packed = abcnet_fused_pallas(xp, wt, cb, pm, wh, hb)                     # (B, 128) lane-dense
    feat = packed[:, FEAT_OFF:FEAT_OFF + HIDDEN]
    logits = packed[:, LOGITS_OFF:LOGITS_OFF + NUM_CLASSES]
    logits_aux = packed[:, AUX_OFF:AUX_OFF + NUM_CLASSES]
    return {"logits": logits, "feat": feat, "logits_aux": logits_aux}


# ------------------------------ pure-JAX reference ----------------------------
def reference_forward(params, x):
    """PyTorch-semantics reference: conv2d(NCHW, OIHW, same) + ReLU -> GAP -> two Linear heads."""
    conv = jax.lax.conv_general_dilated(
        x, params["conv_w"], window_strides=(1, 1), padding="SAME",
        dimension_numbers=("NCHW", "OIHW", "NCHW"))
    hrelu = jnp.maximum(conv + params["conv_b"][None, :, None, None], 0.0)
    feat = jnp.mean(hrelu, axis=(2, 3))
    logits = feat @ params["cls_w"].T + params["cls_b"]
    logits_aux = feat @ params["aux_w"].T + params["aux_b"]
    return {"logits": logits, "feat": feat, "logits_aux": logits_aux}


if __name__ == "__main__":
    key = jax.random.PRNGKey(0)
    pkey, xkey = jax.random.split(key)
    params = init_params(pkey)
    x = jax.random.normal(xkey, (B, C_IN, H, W), jnp.float32)

    out = abcnet_forward(params, x)
    jax.block_until_ready(out)

    assert out["feat"].shape == (B, HIDDEN)
    assert out["logits"].shape == (B, NUM_CLASSES)
    assert out["logits_aux"].shape == (B, NUM_CLASSES)

    ref = reference_forward(params, x)
    for name in ("feat", "logits", "logits_aux"):
        assert jnp.allclose(out[name], ref[name], atol=2e-2, rtol=2e-2), name

    print("KERNEL_OK")
</pallas_src>

<mosaic_0001>
module attributes {stable_mosaic.version = 11 : i64} {
  func.func @abcnet_fused_kernel(%arg0: memref<4x768xf32, #tpu.memory_space<vmem>>, %arg1: memref<9x32x4xf32, #tpu.memory_space<vmem>>, %arg2: memref<32x1xf32, #tpu.memory_space<vmem>>, %arg3: memref<2x768xf32, #tpu.memory_space<vmem>>, %arg4: memref<32x128xf32, #tpu.memory_space<vmem>>, %arg5: memref<1x128xf32, #tpu.memory_space<vmem>>, %arg6: memref<2x128xf32, #tpu.memory_space<vmem>>) attributes {dimension_semantics = [], scalar_prefetch = 0 : i64, scratch_operands = 0 : i64, tpu.core_type = #tpu.core_type<tc>} {
    %c0 = arith.constant 0 : index
    %c0_0 = arith.constant 0 : index
    %0 = vector.load %arg0[%c0, %c0_0] : memref<4x768xf32, #tpu.memory_space<vmem>>, vector<4x768xf32>
    %c19_i32 = arith.constant 19 : i32
    %1 = tpu.dynamic_rotate %0 by %c19_i32 dim 1 : vector<4x768xf32>, i32 -> vector<4x768xf32>
    %c0_1 = arith.constant 0 : index
    %c0_2 = arith.constant 0 : index
    %c0_3 = arith.constant 0 : index
    %2 = vector.load %arg1[%c0_1, %c0_2, %c0_3] : memref<9x32x4xf32, #tpu.memory_space<vmem>>, vector<1x32x4xf32>
    %3 = vector.shape_cast %2 : vector<1x32x4xf32> to vector<32x4xf32>
    %cst = arith.constant dense<0.000000e+00> : vector<32x768xf32>
    %4 = tpu.matmul %3, %1, %cst {dimension_numbers = #tpu.dot_dimension_numbers<[1], [0], [0], [1], [0, 0, 1, 1], [], []>} : vector<32x4xf32>, vector<4x768xf32>, vector<32x768xf32> -> vector<32x768xf32>
    %c18_i32 = arith.constant 18 : i32
    %5 = tpu.dynamic_rotate %0 by %c18_i32 dim 1 : vector<4x768xf32>, i32 -> vector<4x768xf32>
    %c1 = arith.constant 1 : index
    %c0_4 = arith.constant 0 : index
    %c0_5 = arith.constant 0 : index
    %6 = vector.load %arg1[%c1, %c0_4, %c0_5] : memref<9x32x4xf32, #tpu.memory_space<vmem>>, vector<1x32x4xf32>
    %7 = vector.shape_cast %6 : vector<1x32x4xf32> to vector<32x4xf32>
    %cst_6 = arith.constant dense<0.000000e+00> : vector<32x768xf32>
    %8 = tpu.matmul %7, %5, %cst_6 {dimension_numbers = #tpu.dot_dimension_numbers<[1], [0], [0], [1], [0, 0, 1, 1], [], []>} : vector<32x4xf32>, vector<4x768xf32>, vector<32x768xf32> -> vector<32x768xf32>
    %9 = arith.addf %4, %8 : vector<32x768xf32>
    %c17_i32 = arith.constant 17 : i32
    %10 = tpu.dynamic_rotate %0 by %c17_i32 dim 1 : vector<4x768xf32>, i32 -> vector<4x768xf32>
    %c2 = arith.constant 2 : index
    %c0_7 = arith.constant 0 : index
    %c0_8 = arith.constant 0 : index
    %11 = vector.load %arg1[%c2, %c0_7, %c0_8] : memref<9x32x4xf32, #tpu.memory_space<vmem>>, vector<1x32x4xf32>
    %12 = vector.shape_cast %11 : vector<1x32x4xf32> to vector<32x4xf32>
    %cst_9 = arith.constant dense<0.000000e+00> : vector<32x768xf32>
    %13 = tpu.matmul %12, %10, %cst_9 {dimension_numbers = #tpu.dot_dimension_numbers<[1], [0], [0], [1], [0, 0, 1, 1], [], []>} : vector<32x4xf32>, vector<4x768xf32>, vector<32x768xf32> -> vector<32x768xf32>
    %14 = arith.addf %9, %13 : vector<32x768xf32>
    %c1_i32 = arith.constant 1 : i32
    %15 = tpu.dynamic_rotate %0 by %c1_i32 dim 1 : vector<4x768xf32>, i32 -> vector<4x768xf32>
    %c3 = arith.constant 3 : index
    %c0_10 = arith.constant 0 : index
    %c0_11 = arith.constant 0 : index
    %16 = vector.load %arg1[%c3, %c0_10, %c0_11] : memref<9x32x4xf32, #tpu.memory_space<vmem>>, vector<1x32x4xf32>
    %17 = vector.shape_cast %16 : vector<1x32x4xf32> to vector<32x4xf32>
    %cst_12 = arith.constant dense<0.000000e+00> : vector<32x768xf32>
    %18 = tpu.matmul %17, %15, %cst_12 {dimension_numbers = #tpu.dot_dimension_numbers<[1], [0], [0], [1], [0, 0, 1, 1], [], []>} : vector<32x4xf32>, vector<4x768xf32>, vector<32x768xf32> -> vector<32x768xf32>
    %19 = arith.addf %14, %18 : vector<32x768xf32>
    %c4 = arith.constant 4 : index
    %c0_13 = arith.constant 0 : index
    %c0_14 = arith.constant 0 : index
    %20 = vector.load %arg1[%c4, %c0_13, %c0_14] : memref<9x32x4xf32, #tpu.memory_space<vmem>>, vector<1x32x4xf32>
    %21 = vector.shape_cast %20 : vector<1x32x4xf32> to vector<32x4xf32>
    %cst_15 = arith.constant dense<0.000000e+00> : vector<32x768xf32>
    %22 = tpu.matmul %21, %0, %cst_15 {dimension_numbers = #tpu.dot_dimension_numbers<[1], [0], [0], [1], [0, 0, 1, 1], [], []>} : vector<32x4xf32>, vector<4x768xf32>, vector<32x768xf32> -> vector<32x768xf32>
    %23 = arith.addf %19, %22 : vector<32x768xf32>
    %c767_i32 = arith.constant 767 : i32
    %24 = tpu.dynamic_rotate %0 by %c767_i32 dim 1 : vector<4x768xf32>, i32 -> vector<4x768xf32>
    %c5 = arith.constant 5 : index
    %c0_16 = arith.constant 0 : index
    %c0_17 = arith.constant 0 : index
    %25 = vector.load %arg1[%c5, %c0_16, %c0_17] : memref<9x32x4xf32, #tpu.memory_space<vmem>>, vector<1x32x4xf32>
    %26 = vector.shape_cast %25 : vector<1x32x4xf32> to vector<32x4xf32>
    %cst_18 = arith.constant dense<0.000000e+00> : vector<32x768xf32>
    %27 = tpu.matmul %26, %24, %cst_18 {dimension_numbers = #tpu.dot_dimension_numbers<[1], [0], [0], [1], [0, 0, 1, 1], [], []>} : vector<32x4xf32>, vector<4x768xf32>, vector<32x768xf32> -> vector<32x768xf32>
    %28 = arith.addf %23, %27 : vector<32x768xf32>
    %c751_i32 = arith.constant 751 : i32
    %29 = tpu.dynamic_rotate %0 by %c751_i32 dim 1 : vector<4x768xf32>, i32 -> vector<4x768xf32>
    %c6 = arith.constant 6 : index
    %c0_19 = arith.constant 0 : index
    %c0_20 = arith.constant 0 : index
    %30 = vector.load %arg1[%c6, %c0_19, %c0_20] : memref<9x32x4xf32, #tpu.memory_space<vmem>>, vector<1x32x4xf32>
    %31 = vector.shape_cast %30 : vector<1x32x4xf32> to vector<32x4xf32>
    %cst_21 = arith.constant dense<0.000000e+00> : vector<32x768xf32>
    %32 = tpu.matmul %31, %29, %cst_21 {dimension_numbers = #tpu.dot_dimension_numbers<[1], [0], [0], [1], [0, 0, 1, 1], [], []>} : vector<32x4xf32>, vector<4x768xf32>, vector<32x768xf32> -> vector<32x768xf32>
    %33 = arith.addf %28, %32 : vector<32x768xf32>
    %c750_i32 = arith.constant 750 : i32
    %34 = tpu.dynamic_rotate %0 by %c750_i32 dim 1 : vector<4x768xf32>, i32 -> vector<4x768xf32>
    %c7 = arith.constant 7 : index
    %c0_22 = arith.constant 0 : index
    %c0_23 = arith.constant 0 : index
    %35 = vector.load %arg1[%c7, %c0_22, %c0_23] : memref<9x32x4xf32, #tpu.memory_space<vmem>>, vector<1x32x4xf32>
    %36 = vector.shape_cast %35 : vector<1x32x4xf32> to vector<32x4xf32>
    %cst_24 = arith.constant dense<0.000000e+00> : vector<32x768xf32>
    %37 = tpu.matmul %36, %34, %cst_24 {dimension_numbers = #tpu.dot_dimension_numbers<[1], [0], [0], [1], [0, 0, 1, 1], [], []>} : vector<32x4xf32>, vector<4x768xf32>, vector<32x768xf32> -> vector<32x768xf32>
    %38 = arith.addf %33, %37 : vector<32x768xf32>
    %c749_i32 = arith.constant 749 : i32
    %39 = tpu.dynamic_rotate %0 by %c749_i32 dim 1 : vector<4x768xf32>, i32 -> vector<4x768xf32>
    %c8 = arith.constant 8 : index
    %c0_25 = arith.constant 0 : index
    %c0_26 = arith.constant 0 : index
    %40 = vector.load %arg1[%c8, %c0_25, %c0_26] : memref<9x32x4xf32, #tpu.memory_space<vmem>>, vector<1x32x4xf32>
    %41 = vector.shape_cast %40 : vector<1x32x4xf32> to vector<32x4xf32>
    %cst_27 = arith.constant dense<0.000000e+00> : vector<32x768xf32>
    %42 = tpu.matmul %41, %39, %cst_27 {dimension_numbers = #tpu.dot_dimension_numbers<[1], [0], [0], [1], [0, 0, 1, 1], [], []>} : vector<32x4xf32>, vector<4x768xf32>, vector<32x768xf32> -> vector<32x768xf32>
    %43 = arith.addf %38, %42 : vector<32x768xf32>
    %c0_28 = arith.constant 0 : index
    %c0_29 = arith.constant 0 : index
    %44 = vector.load %arg2[%c0_28, %c0_29] : memref<32x1xf32, #tpu.memory_space<vmem>>, vector<32x1xf32>
    %45 = vector.broadcast %44 : vector<32x1xf32> to vector<32x768xf32>
    %46 = arith.addf %43, %45 : vector<32x768xf32>
    %cst_30 = arith.constant 0.000000e+00 : f32
    %47 = vector.broadcast %cst_30 : f32 to vector<32x768xf32>
    %48 = arith.maximumf %46, %47 : vector<32x768xf32>
    %c0_31 = arith.constant 0 : index
    %c0_32 = arith.constant 0 : index
    %49 = vector.load %arg4[%c0_31, %c0_32] : memref<32x128xf32, #tpu.memory_space<vmem>>, vector<32x128xf32>
    %c0_33 = arith.constant 0 : index
    %c0_34 = arith.constant 0 : index
    %50 = vector.load %arg5[%c0_33, %c0_34] : memref<1x128xf32, #tpu.memory_space<vmem>>, vector<1x128xf32>
    %c0_35 = arith.constant 0 : index
    %c0_36 = arith.constant 0 : index
    %51 = vector.load %arg3[%c0_35, %c0_36] : memref<2x768xf32, #tpu.memory_space<vmem>>, vector<1x768xf32>
    %52 = vector.broadcast %51 : vector<1x768xf32> to vector<32x768xf32>
    %53 = arith.mulf %48, %52 : vector<32x768xf32>
    %cst_37 = arith.constant dense<0.000000e+00> : vector<32xf32>
    %54 = vector.multi_reduction <add>, %53, %cst_37 [1] : vector<32x768xf32> to vector<32xf32>
    %55 = vector.shape_cast %54 : vector<32xf32> to vector<32x1xf32>
    %56 = vector.broadcast %55 : vector<32x1xf32> to vector<32x128xf32>
    %57 = arith.mulf %49, %56 : vector<32x128xf32>
    %cst_38 = arith.constant dense<0.000000e+00> : vector<128xf32>
    %58 = vector.multi_reduction <add>, %57, %cst_38 [0] : vector<32x128xf32> to vector<128xf32>
    %59 = vector.shape_cast %58 : vector<128xf32> to vector<1x128xf32>
    %60 = arith.addf %59, %50 : vector<1x128xf32>
    %c0_39 = arith.constant 0 : index
    %c0_40 = arith.constant 0 : index
    %61 = vector.load %arg6[%c0_39, %c0_40] : memref<2x128xf32, #tpu.memory_space<vmem>>, vector<1x128xf32>
    tpu.vector_store %arg6[%c0_39, %c0_40], %60 {strides = array<i32>} : memref<2x128xf32, #tpu.memory_space<vmem>>, vector<1x128xf32>,
    %c1_41 = arith.constant 1 : index
    %c0_42 = arith.constant 0 : index
    %62 = vector.load %arg3[%c1_41, %c0_42] : memref<2x768xf32, #tpu.memory_space<vmem>>, vector<1x768xf32>
    %63 = vector.broadcast %62 : vector<1x768xf32> to vector<32x768xf32>
    %64 = arith.mulf %48, %63 : vector<32x768xf32>
    %cst_43 = arith.constant dense<0.000000e+00> : vector<32xf32>
    %65 = vector.multi_reduction <add>, %64, %cst_43 [1] : vector<32x768xf32> to vector<32xf32>
    %66 = vector.shape_cast %65 : vector<32xf32> to vector<32x1xf32>
    %67 = vector.broadcast %66 : vector<32x1xf32> to vector<32x128xf32>
    %68 = arith.mulf %49, %67 : vector<32x128xf32>
    %cst_44 = arith.constant dense<0.000000e+00> : vector<128xf32>
    %69 = vector.multi_reduction <add>, %68, %cst_44 [0] : vector<32x128xf32> to vector<128xf32>
    %70 = vector.shape_cast %69 : vector<128xf32> to vector<1x128xf32>
    %71 = arith.addf %70, %50 : vector<1x128xf32>
    %c1_45 = arith.constant 1 : index
    %c0_46 = arith.constant 0 : index
    %72 = vector.load %arg6[%c1_45, %c0_46] : memref<2x128xf32, #tpu.memory_space<vmem>>, vector<1x128xf32>
    tpu.vector_store %arg6[%c1_45, %c0_46], %71 {strides = array<i32>} : memref<2x128xf32, #tpu.memory_space<vmem>>, vector<1x128xf32>,
    return
  }
}

</mosaic_0001>

<llo_original>
// kernel: abcnet_forward.1
$region0: #{abcnet_forward.1}
  #allocation0 [shape = 'u32[]', space=smem, size = 0x4, offset = 0x4, fixed_abs, tag = 'smem constant byte address 0x4 - core index']
  #allocation1 [shape = 'u32[144,128]{1,0:T(1,128)}', space=vmem, size = 0x12000, scoped, tag = 'internal scratch']
  %s0 = inlined_call_operand.vmem [shape: f32[4,768], index: 0, kind: input, shape index: {}]
  %s1 = inlined_call_operand.vmem [shape: f32[9,32,4], index: 1, kind: input, shape index: {}]
  %s2 = inlined_call_operand.vmem [shape: f32[32,1], index: 2, kind: input, shape index: {}]
  %s3 = inlined_call_operand.vmem [shape: f32[2,768], index: 3, kind: input, shape index: {}]
  %s4 = inlined_call_operand.vmem [shape: f32[32,128], index: 4, kind: input, shape index: {}]
  %s5 = inlined_call_operand.vmem [shape: f32[1,128], index: 5, kind: input, shape index: {}]
  %s6 = inlined_call_operand.vmem [shape: f32[2,128], index: 6, kind: output, shape index: {}]
  %s7 = sld [smem:[#allocation0]]
  $region34: #{abcnet_forward.1} parent=0
    _
  %s9 = ssub.s32 1, %s7
  %s10 = scalar_select 0, %s9, %s7
  // Predicated region
  $region2: #{abcnet_forward.1} parent=0 // pred_check
    _
  $region3: #{abcnet_forward.1} parent=0 // pred_check_branch
    %12 = sbr.rel (0) target = $region5
  $region4: #{abcnet_forward.1} parent=0 // pred_region
    _
  $region5: #{abcnet_forward.1} parent=0 // pred_fallthru
    _
  // Predicated region
  $region6: #{abcnet_forward.1} parent=0 // pred_check
    _
  $region7: #{abcnet_forward.1} parent=0 // pred_check_branch
    %14 = sbr.rel (0) target = $region9
  $region8: #{abcnet_forward.1} parent=0 // pred_region
    _
  $region9: #{abcnet_forward.1} parent=0 // pred_fallthru
    _
  // Predicated region
  $region10: #{abcnet_forward.1} parent=0 // pred_check
    _
  $region11: #{abcnet_forward.1} parent=0 // pred_check_branch
    %16 = sbr.rel (0) target = $region13
  $region12: #{abcnet_forward.1} parent=0 // pred_region
    _
  $region13: #{abcnet_forward.1} parent=0 // pred_fallthru
    _
  // Predicated region
  $region14: #{abcnet_forward.1} parent=0 // pred_check
    _
  $region15: #{abcnet_forward.1} parent=0 // pred_check_branch
    %18 = sbr.rel (0) target = $region17
  $region16: #{abcnet_forward.1} parent=0 // pred_region
    _
  $region17: #{abcnet_forward.1} parent=0 // pred_fallthru
    _
  // Predicated region
  $region18: #{abcnet_forward.1} parent=0 // pred_check
    _
  $region19: #{abcnet_forward.1} parent=0 // pred_check_branch
    %20 = sbr.rel (0) target = $region21
  $region20: #{abcnet_forward.1} parent=0 // pred_region
    _
  $region21: #{abcnet_forward.1} parent=0 // pred_fallthru
    _
  // Predicated region
  $region22: #{abcnet_forward.1} parent=0 // pred_check
    _
  $region23: #{abcnet_forward.1} parent=0 // pred_check_branch
    %22 = sbr.rel (0) target = $region25
  $region24: #{abcnet_forward.1} parent=0 // pred_region
    _
  $region25: #{abcnet_forward.1} parent=0 // pred_fallthru
    _
  %v23 = vld [vmem:[%s0] sm:$0xff]
  %v24 = vld [vmem:[%s0 + $0x8] sm:$0xff]
  %v25 = vld [vmem:[%s0 + $0x10] sm:$0xff]
  %v29 = vcombine.high %v23, %v23
  %v30 = vcombine.high %v24, %v24
  %v31 = vcombine.high %v25, %v25
  %35 = vrot.lane.b32.xlu0 %v23, 19
  %v36 = vpop.permute.xlu0 %35
  %37 = vrot.lane.b32.xlu0 %v29, 19
  %v38 = vpop.permute.xlu0 %37
  %39 = vrot.lane.b32.xlu0 %v24, 19
  %v40 = vpop.permute.xlu0 %39
  %41 = vrot.lane.b32.xlu0 %v30, 19
  %v42 = vpop.permute.xlu0 %41
  %43 = vrot.lane.b32.xlu0 %v25, 19
  %v44 = vpop.permute.xlu0 %43
  %45 = vrot.lane.b32.xlu0 %v31, 19
  %v46 = vpop.permute.xlu0 %45
  %v47 = vlaneseq
  %v48 = vand.u32 %v47, 127
  %vm49 = vcmp.lt.s32.totalorder %v48, 19
  %v50 = vsel %vm49, %v44, %v46
  %v51 = vsel %vm49, %v42, %v44
  %v52 = vsel %vm49, %v40, %v42
  %v53 = vsel %vm49, %v38, %v40
  %v54 = vsel %vm49, %v36, %v38
  %v55 = vsel %vm49, %v46, %v36
  %v56 = vld [vmem:[%s1] sm:$0xff]
  %v57 = vld [vmem:[%s1 + $0x8] sm:$0xff]
  %v58 = vld [vmem:[%s1 + $0x10] sm:$0xff]
  %v59 = vld [vmem:[%s1 + $0x18] sm:$0xff]
  %60 = vrot.lane.b32.xlu0 %v23, 18
  %v61 = vpop.permute.xlu0 %60
  %62 = vrot.lane.b32.xlu0 %v29, 18
  %v63 = vpop.permute.xlu0 %62
  %64 = vrot.lane.b32.xlu0 %v24, 18
  %v65 = vpop.permute.xlu0 %64
  %66 = vrot.lane.b32.xlu0 %v30, 18
  %v67 = vpop.permute.xlu0 %66
  %68 = vrot.lane.b32.xlu0 %v25, 18
  %v69 = vpop.permute.xlu0 %68
  %70 = vrot.lane.b32.xlu0 %v31, 18
  %v71 = vpop.permute.xlu0 %70
  %vm72 = vcmp.lt.s32.totalorder %v48, 18
  %v73 = vsel %vm72, %v69, %v71
  %v74 = vsel %vm72, %v67, %v69
  %v75 = vsel %vm72, %v65, %v67
  %v76 = vsel %vm72, %v63, %v65
  %v77 = vsel %vm72, %v61, %v63
  %v78 = vsel %vm72, %v71, %v61
  %s79 = scalar_lea.vmem %s1, 32
  %v80 = vld [vmem:[%s79] sm:$0xff]
  %v81 = vld [vmem:[%s79 + $0x8] sm:$0xff]
  %v82 = vld [vmem:[%s79 + $0x10] sm:$0xff]
  %v83 = vld [vmem:[%s79 + $0x18] sm:$0xff]
  %vm84 = vcmask 31744
  %v86 = vsel %vm84, %v80, 0
  %v89 = vsel %vm84, %v81, 0
  %v92 = vsel %vm84, %v82, 0
  %v95 = vsel %vm84, %v83, 0
  %vm97 = vcmask 1043456
  %v99 = vsel %vm97, %v78, 0
  %v102 = vsel %vm97, %v77, 0
  %v105 = vsel %vm97, %v76, 0
  %v108 = vsel %vm97, %v75, 0
  %v111 = vsel %vm97, %v74, 0
  %v114 = vsel %vm97, %v73, 0
  %116 = vmatprep.subr.mxu0 0.0
  %117 = vmatpush1.msra.mxu0 0.0
  %118 = vmatprep.subr.mxu0 0.0
  %119 = vmatpush1.msra.mxu0 0.0
  %120 = vmatprep.subr.mxu0 0.0
  %121 = vmatpush1.msra.mxu0 0.0
  %122 = vmatprep.subr.mxu0 0.0
  %123 = vmatpush1.msra.mxu0 0.0
  %124 = vmatprep.subr.mxu0 0.0
  %125 = vmatpush1.msra.mxu0 0.0
  %126 = vmatprep.subr.mxu0 0.0
  %127 = vmatpush1.msra.mxu0 0.0
  %128 = vmatprep.subr.mxu0 0.0
  %129 = vmatpush1.msra.mxu0 0.0
  %130 = vmatprep.subr.mxu0 0.0
  %131 = vmatpush1.msra.mxu0 0.0
  %132 = vmatprep.subr.mxu0 0.0
  %133 = vmatpush1.msra.mxu0 0.0
  %134 = vmatprep.subr.mxu0 0.0
  %135 = vmatpush1.msra.mxu0 0.0
  %136 = vmatprep.subr.mxu0 0.0
  %137 = vmatpush1.msra.mxu0 0.0
  %138 = vmatprep.subr.mxu0 0.0
  %139 = vmatpush1.msra.mxu0 0.0
  %140 = vmatprep.subr.mxu0 0.0
  %141 = vmatpush1.msra.mxu0 0.0
  %142 = vmatprep.subr.mxu0 0.0
  %143 = vmatpush1.msra.mxu0 0.0
  %144 = vmatprep.subr.mxu0 0.0
  %145 = vmatpush1.msra.mxu0 0.0
  %146 = vmatprep.subr.mxu0 %v102
  %147 = vmatpush1.msra.mxu0 %v99
  %148 = vmatprep.subr.mxu0 0.0
  %149 = vmatpush2.msra.mxu0 0.0
  %150 = vmatprep.subr.mxu0 0.0
  %151 = vmatpush2.msra.mxu0 0.0
  %152 = vmatprep.subr.mxu0 0.0
  %153 = vmatpush2.msra.mxu0 0.0
  %154 = vmatprep.subr.mxu0 0.0
  %155 = vmatpush2.msra.mxu0 0.0
  %156 = vmatprep.subr.mxu0 0.0
  %157 = vmatpush2.msra.mxu0 0.0
  %158 = vmatprep.subr.mxu0 0.0
  %159 = vmatpush2.msra.mxu0 0.0
  %160 = vmatprep.subr.mxu0 0.0
  %161 = vmatpush2.msra.mxu0 0.0
  %162 = vmatprep.subr.mxu0 0.0
  %163 = vmatpush2.msra.mxu0 0.0
  %164 = vmatprep.subr.mxu0 0.0
  %165 = vmatpush2.msra.mxu0 0.0
  %166 = vmatprep.subr.mxu0 0.0
  %167 = vmatpush2.msra.mxu0 0.0
  %168 = vmatprep.subr.mxu0 0.0
  %169 = vmatpush2.msra.mxu0 0.0
  %170 = vmatprep.subr.mxu0 0.0
  %171 = vmatpush2.msra.mxu0 0.0
  %172 = vmatprep.subr.mxu0 0.0
  %173 = vmatpush2.msra.mxu0 0.0
  %174 = vmatprep.subr.mxu0 0.0
  %175 = vmatpush2.msra.mxu0 0.0
  %176 = vmatprep.subr.mxu0 0.0
  %177 = vmatpush2.msra.mxu0 0.0
  %178 = vmatprep.subr.mxu0 0.0
  %179 = vmatpush2.msra.mxu0 0.0
  %180 = vmatprep.mubr.f32.mxu0 0.0
  %181 = vmatmul.mubr.f32.gmra.mxu0 %v86
  %v182 = vpop.f32.mrf.mxu0
  %v183 = vadd.f32 0.0, %v182
  %v184 = vpop.f32.mrf.mxu0
  %v185 = vadd.f32 0.0, %v184
  %186 = vmatprep.mubr.f32.mxu0 0.0
  %187 = vmatmul.mubr.f32.gmra.mxu0 %v89
  %v188 = vpop.f32.mrf.mxu0
  %v189 = vadd.f32 0.0, %v188
  %v190 = vpop.f32.mrf.mxu0
  %v191 = vadd.f32 0.0, %v190
  %192 = vmatprep.mubr.f32.mxu0 0.0
  %193 = vmatmul.mubr.f32.gmra.mxu0 %v92
  %v194 = vpop.f32.mrf.mxu0
  %v195 = vadd.f32 0.0, %v194
  %v196 = vpop.f32.mrf.mxu0
  %v197 = vadd.f32 0.0, %v196
  %198 = vmatprep.mubr.f32.mxu0 0.0
  %199 = vmatmul.mubr.f32.gmra.mxu0 %v95
  %v200 = vpop.f32.mrf.mxu0
  %v201 = vadd.f32 0.0, %v200
  %v202 = vpop.f32.mrf.mxu0
  %v203 = vadd.f32 0.0, %v202
  %204 = vdwg.mxu0
  %205 = vmatprep.subr.mxu0 0.0
  %206 = vmatpush1.msra.mxu0 0.0
  %207 = vmatprep.subr.mxu0 0.0
  %208 = vmatpush1.msra.mxu0 0.0
  %209 = vmatprep.subr.mxu0 0.0
  %210 = vmatpush1.msra.mxu0 0.0
  %211 = vmatprep.subr.mxu0 0.0
  %212 = vmatpush1.msra.mxu0 0.0
  %213 = vmatprep.subr.mxu0 0.0
  %214 = vmatpush1.msra.mxu0 0.0
  %215 = vmatprep.subr.mxu0 0.0
  %216 = vmatpush1.msra.mxu0 0.0
  %217 = vmatprep.subr.mxu0 0.0
  %218 = vmatpush1.msra.mxu0 0.0
  %219 = vmatprep.subr.mxu0 0.0
  %220 = vmatpush1.msra.mxu0 0.0
  %221 = vmatprep.subr.mxu0 0.0
  %222 = vmatpush1.msra.mxu0 0.0
  %223 = vmatprep.subr.mxu0 0.0
  %224 = vmatpush1.msra.mxu0 0.0
  %225 = vmatprep.subr.mxu0 0.0
  %226 = vmatpush1.msra.mxu0 0.0
  %227 = vmatprep.subr.mxu0 0.0
  %228 = vmatpush1.msra.mxu0 0.0
  %229 = vmatprep.subr.mxu0 0.0
  %230 = vmatpush1.msra.mxu0 0.0
  %231 = vmatprep.subr.mxu0 0.0
  %232 = vmatpush1.msra.mxu0 0.0
  %233 = vmatprep.subr.mxu0 0.0
  %234 = vmatpush1.msra.mxu0 0.0
  %235 = vmatprep.subr.mxu0 %v108
  %236 = vmatpush1.msra.mxu0 %v105
  %237 = vmatprep.subr.mxu0 0.0
  %238 = vmatpush2.msra.mxu0 0.0
  %239 = vmatprep.subr.mxu0 0.0
  %240 = vmatpush2.msra.mxu0 0.0
  %241 = vmatprep.subr.mxu0 0.0
  %242 = vmatpush2.msra.mxu0 0.0
  %243 = vmatprep.subr.mxu0 0.0
  %244 = vmatpush2.msra.mxu0 0.0
  %245 = vmatprep.subr.mxu0 0.0
  %246 = vmatpush2.msra.mxu0 0.0
  %247 = vmatprep.subr.mxu0 0.0
  %248 = vmatpush2.msra.mxu0 0.0
  %249 = vmatprep.subr.mxu0 0.0
  %250 = vmatpush2.msra.mxu0 0.0
  %251 = vmatprep.subr.mxu0 0.0
  %252 = vmatpush2.msra.mxu0 0.0
  %253 = vmatprep.subr.mxu0 0.0
  %254 = vmatpush2.msra.mxu0 0.0
  %255 = vmatprep.subr.mxu0 0.0
  %256 = vmatpush2.msra.mxu0 0.0
  %257 = vmatprep.subr.mxu0 0.0
  %258 = vmatpush2.msra.mxu0 0.0
  %259 = vmatprep.subr.mxu0 0.0
  %260 = vmatpush2.msra.mxu0 0.0
  %261 = vmatprep.subr.mxu0 0.0
  %262 = vmatpush2.msra.mxu0 0.0
  %263 = vmatprep.subr.mxu0 0.0
  %264 = vmatpush2.msra.mxu0 0.0
  %265 = vmatprep.subr.mxu0 0.0
  %266 = vmatpush2.msra.mxu0 0.0
  %267 = vmatprep.subr.mxu0 0.0
  %268 = vmatpush2.msra.mxu0 0.0
  %269 = vmatprep.mubr.f32.mxu0 0.0
  %270 = vmatmul.mubr.f32.gmra.mxu0 %v86
  %v271 = vpop.f32.mrf.mxu0
  %v272 = vadd.f32 0.0, %v271
  %v273 = vpop.f32.mrf.mxu0
  %v274 = vadd.f32 0.0, %v273
  %275 = vmatprep.mubr.f32.mxu0 0.0
  %276 = vmatmul.mubr.f32.gmra.mxu0 %v89
  %v277 = vpop.f32.mrf.mxu0
  %v278 = vadd.f32 0.0, %v277
  %v279 = vpop.f32.mrf.mxu0
  %v280 = vadd.f32 0.0, %v279
  %281 = vmatprep.mubr.f32.mxu0 0.0
  %282 = vmatmul.mubr.f32.gmra.mxu0 %v92
  %v283 = vpop.f32.mrf.mxu0
  %v284 = vadd.f32 0.0, %v283
  %v285 = vpop.f32.mrf.mxu0
  %v286 = vadd.f32 0.0, %v285
  %287 = vmatprep.mubr.f32.mxu0 0.0
  %288 = vmatmul.mubr.f32.gmra.mxu0 %v95
  %v289 = vpop.f32.mrf.mxu0
  %v290 = vadd.f32 0.0, %v289
  %v291 = vpop.f32.mrf.mxu0
  %v292 = vadd.f32 0.0, %v291
  %293 = vdwg.mxu0
  %294 = vmatprep.subr.mxu0 0.0
  %295 = vmatpush1.msra.mxu0 0.0
  %296 = vmatprep.subr.mxu0 0.0
  %297 = vmatpush1.msra.mxu0 0.0
  %298 = vmatprep.subr.mxu0 0.0
  %299 = vmatpush1.msra.mxu0 0.0
  %300 = vmatprep.subr.mxu0 0.0
  %301 = vmatpush1.msra.mxu0 0.0
  %302 = vmatprep.subr.mxu0 0.0
  %303 = vmatpush1.msra.mxu0 0.0
  %304 = vmatprep.subr.mxu0 0.0
  %305 = vmatpush1.msra.mxu0 0.0
  %306 = vmatprep.subr.mxu0 0.0
  %307 = vmatpush1.msra.mxu0 0.0
  %308 = vmatprep.subr.mxu0 0.0
  %309 = vmatpush1.msra.mxu0 0.0
  %310 = vmatprep.subr.mxu0 0.0
  %311 = vmatpush1.msra.mxu0 0.0
  %312 = vmatprep.subr.mxu0 0.0
  %313 = vmatpush1.msra.mxu0 0.0
  %314 = vmatprep.subr.mxu0 0.0
  %315 = vmatpush1.msra.mxu0 0.0
  %316 = vmatprep.subr.mxu0 0.0
  %317 = vmatpush1.msra.mxu0 0.0
  %318 = vmatprep.subr.mxu0 0.0
  %319 = vmatpush1.msra.mxu0 0.0
  %320 = vmatprep.subr.mxu0 0.0
  %321 = vmatpush1.msra.mxu0 0.0
  %322 = vmatprep.subr.mxu0 0.0
  %323 = vmatpush1.msra.mxu0 0.0
  %324 = vmatprep.subr.mxu0 %v114
  %325 = vmatpush1.msra.mxu0 %v111
  %326 = vmatprep.subr.mxu0 0.0
  %327 = vmatpush2.msra.mxu0 0.0
  %328 = vmatprep.subr.mxu0 0.0
  %329 = vmatpush2.msra.mxu0 0.0
  %330 = vmatprep.subr.mxu0 0.0
  %331 = vmatpush2.msra.mxu0 0.0
  %332 = vmatprep.subr.mxu0 0.0
  %333 = vmatpush2.msra.mxu0 0.0
  %334 = vmatprep.subr.mxu0 0.0
  %335 = vmatpush2.msra.mxu0 0.0
  %336 = vmatprep.subr.mxu0 0.0
  %337 = vmatpush2.msra.mxu0 0.0
  %338 = vmatprep.subr.mxu0 0.0
  %339 = vmatpush2.msra.mxu0 0.0
  %340 = vmatprep.subr.mxu0 0.0
  %341 = vmatpush2.msra.mxu0 0.0
  %342 = vmatprep.subr.mxu0 0.0
  %343 = vmatpush2.msra.mxu0 0.0
  %344 = vmatprep.subr.mxu0 0.0
  %345 = vmatpush2.msra.mxu0 0.0
  %346 = vmatprep.subr.mxu0 0.0
  %347 = vmatpush2.msra.mxu0 0.0
  %348 = vmatprep.subr.mxu0 0.0
  %349 = vmatpush2.msra.mxu0 0.0
  %350 = vmatprep.subr.mxu0 0.0
  %351 = vmatpush2.msra.mxu0 0.0
  %352 = vmatprep.subr.mxu0 0.0
  %353 = vmatpush2.msra.mxu0 0.0
  %354 = vmatprep.subr.mxu0 0.0
  %355 = vmatpush2.msra.mxu0 0.0
  %356 = vmatprep.subr.mxu0 0.0
  %357 = vmatpush2.msra.mxu0 0.0
  %358 = vmatprep.mubr.f32.mxu0 0.0
  %359 = vmatmul.mubr.f32.gmra.mxu0 %v86
  %v360 = vpop.f32.mrf.mxu0
  %v361 = vadd.f32 0.0, %v360
  %v362 = vpop.f32.mrf.mxu0
  %v363 = vadd.f32 0.0, %v362
  %364 = vmatprep.mubr.f32.mxu0 0.0
  %365 = vmatmul.mubr.f32.gmra.mxu0 %v89
  %v366 = vpop.f32.mrf.mxu0
  %v367 = vadd.f32 0.0, %v366
  %v368 = vpop.f32.mrf.mxu0
  %v369 = vadd.f32 0.0, %v368
  %370 = vmatprep.mubr.f32.mxu0 0.0
  %371 = vmatmul.mubr.f32.gmra.mxu0 %v92
  %v372 = vpop.f32.mrf.mxu0
  %v373 = vadd.f32 0.0, %v372
  %v374 = vpop.f32.mrf.mxu0
  %v375 = vadd.f32 0.0, %v374
  %376 = vmatprep.mubr.f32.mxu0 0.0
  %377 = vmatmul.mubr.f32.gmra.mxu0 %v95
  %v378 = vpop.f32.mrf.mxu0
  %v379 = vadd.f32 0.0, %v378
  %v380 = vpop.f32.mrf.mxu0
  %v381 = vadd.f32 0.0, %v380
  %382 = vdwg.mxu0
  %v384 = vsel %vm84, %v56, 0
  %v387 = vsel %vm84, %v57, 0
  %v390 = vsel %vm84, %v58, 0
  %v393 = vsel %vm84, %v59, 0
  %v396 = vsel %vm97, %v55, 0
  %v399 = vsel %vm97, %v54, 0
  %v402 = vsel %vm97, %v53, 0
  %v405 = vsel %vm97, %v52, 0
  %v408 = vsel %vm97, %v51, 0
  %v411 = vsel %vm97, %v50, 0
  %413 = vmatprep.subr.mxu0 0.0
  %414 = vmatpush1.msra.mxu0 0.0
  %415 = vmatprep.subr.mxu0 0.0
  %416 = vmatpush1.msra.mxu0 0.0
  %417 = vmatprep.subr.mxu0 0.0
  %418 = vmatpush1.msra.mxu0 0.0
  %419 = vmatprep.subr.mxu0 0.0
  %420 = vmatpush1.msra.mxu0 0.0
  %421 = vmatprep.subr.mxu0 0.0
  %422 = vmatpush1.msra.mxu0 0.0
  %423 = vmatprep.subr.mxu0 0.0
  %424 = vmatpush1.msra.mxu0 0.0
  %425 = vmatprep.subr.mxu0 0.0
  %426 = vmatpush1.msra.mxu0 0.0
  %427 = vmatprep.subr.mxu0 0.0
  %428 = vmatpush1.msra.mxu0 0.0
  %429 = vmatprep.subr.mxu0 0.0
  %430 = vmatpush1.msra.mxu0 0.0
  %431 = vmatprep.subr.mxu0 0.0
  %432 = vmatpush1.msra.mxu0 0.0
  %433 = vmatprep.subr.mxu0 0.0
  %434 = vmatpush1.msra.mxu0 0.0
  %435 = vmatprep.subr.mxu0 0.0
  %436 = vmatpush1.msra.mxu0 0.0
  %437 = vmatprep.subr.mxu0 0.0
  %438 = vmatpush1.msra.mxu0 0.0
  %439 = vmatprep.subr.mxu0 0.0
  %440 = vmatpush1.msra.mxu0 0.0
  %441 = vmatprep.subr.mxu0 0.0
  %442 = vmatpush1.msra.mxu0 0.0
  %443 = vmatprep.subr.mxu0 %v399
  %444 = vmatpush1.msra.mxu0 %v396
  %445 = vmatprep.subr.mxu0 0.0
  %446 = vmatpush2.msra.mxu0 0.0
  %447 = vmatprep.subr.mxu0 0.0
  %448 = vmatpush2.msra.mxu0 0.0
  %449 = vmatprep.subr.mxu0 0.0
  %450 = vmatpush2.msra.mxu0 0.0
  %451 = vmatprep.subr.mxu0 0.0
  %452 = vmatpush2.msra.mxu0 0.0
  %453 = vmatprep.subr.mxu0 0.0
  %454 = vmatpush2.msra.mxu0 0.0
  %455 = vmatprep.subr.mxu0 0.0
  %456 = vmatpush2.msra.mxu0 0.0
  %457 = vmatprep.subr.mxu0 0.0
  %458 = vmatpush2.msra.mxu0 0.0
  %459 = vmatprep.subr.mxu0 0.0
  %460 = vmatpush2.msra.mxu0 0.0
  %461 = vmatprep.subr.mxu0 0.0
  %462 = vmatpush2.msra.mxu0 0.0
  %463 = vmatprep.subr.mxu0 0.0
  %464 = vmatpush2.msra.mxu0 0.0
  %465 = vmatprep.subr.mxu0 0.0
  %466 = vmatpush2.msra.mxu0 0.0
  %467 = vmatprep.subr.mxu0 0.0
  %468 = vmatpush2.msra.mxu0 0.0
  %469 = vmatprep.subr.mxu0 0.0
  %470 = vmatpush2.msra.mxu0 0.0
  %471 = vmatprep.subr.mxu0 0.0
  %472 = vmatpush2.msra.mxu0 0.0
  %473 = vmatprep.subr.mxu0 0.0
  %474 = vmatpush2.msra.mxu0 0.0
  %475 = vmatprep.subr.mxu0 0.0
  %476 = vmatpush2.msra.mxu0 0.0
  %477 = vmatprep.mubr.f32.mxu0 0.0
  %478 = vmatmul.mubr.f32.gmra.mxu0 %v384
  %v479 = vpop.f32.mrf.mxu0
  %v480 = vadd.f32 %v183, %v479
  %v481 = vpop.f32.mrf.mxu0
  %v482 = vadd.f32 %v185, %v481
  %483 = vmatprep.mubr.f32.mxu0 0.0
  %484 = vmatmul.mubr.f32.gmra.mxu0 %v387
  %v485 = vpop.f32.mrf.mxu0
  %v486 = vadd.f32 %v189, %v485
  %v487 = vpop.f32.mrf.mxu0
  %v488 = vadd.f32 %v191, %v487
  %489 = vmatprep.mubr.f32.mxu0 0.0
  %490 = vmatmul.mubr.f32.gmra.mxu0 %v390
  %v491 = vpop.f32.mrf.mxu0
  %v492 = vadd.f32 %v195, %v491
  %v493 = vpop.f32.mrf.mxu0
  %v494 = vadd.f32 %v197, %v493
  %495 = vmatprep.mubr.f32.mxu0 0.0
  %496 = vmatmul.mubr.f32.gmra.mxu0 %v393
  %v497 = vpop.f32.mrf.mxu0
  %v498 = vadd.f32 %v201, %v497
  %v499 = vpop.f32.mrf.mxu0
  %v500 = vadd.f32 %v203, %v499
  %501 = vdwg.mxu0
  %502 = vmatprep.subr.mxu0 0.0
  %503 = vmatpush1.msra.mxu0 0.0
  %504 = vmatprep.subr.mxu0 0.0
  %505 = vmatpush1.msra.mxu0 0.0
  %506 = vmatprep.subr.mxu0 0.0
  %507 = vmatpush1.msra.mxu0 0.0
  %508 = vmatprep.subr.mxu0 0.0
  %509 = vmatpush1.msra.mxu0 0.0
  %510 = vmatprep.subr.mxu0 0.0
  %511 = vmatpush1.msra.mxu0 0.0
  %512 = vmatprep.subr.mxu0 0.0
  %513 = vmatpush1.msra.mxu0 0.0
  %514 = vmatprep.subr.mxu0 0.0
  %515 = vmatpush1.msra.mxu0 0.0
  %516 = vmatprep.subr.mxu0 0.0
  %517 = vmatpush1.msra.mxu0 0.0
  %518 = vmatprep.subr.mxu0 0.0
  %519 = vmatpush1.msra.mxu0 0.0
  %520 = vmatprep.subr.mxu0 0.0
  %521 = vmatpush1.msra.mxu0 0.0
  %522 = vmatprep.subr.mxu0 0.0
  %523 = vmatpush1.msra.mxu0 0.0
  %524 = vmatprep.subr.mxu0 0.0
  %525 = vmatpush1.msra.mxu0 0.0
  %526 = vmatprep.subr.mxu0 0.0
  %527 = vmatpush1.msra.mxu0 0.0
  %528 = vmatprep.subr.mxu0 0.0
  %529 = vmatpush1.msra.mxu0 0.0
  %530 = vmatprep.subr.mxu0 0.0
  %531 = vmatpush1.msra.mxu0 0.0
  %532 = vmatprep.subr.mxu0 %v405
  %533 = vmatpush1.msra.mxu0 %v402
  %534 = vmatprep.subr.mxu0 0.0
  %535 = vmatpush2.msra.mxu0 0.0
  %536 = vmatprep.subr.mxu0 0.0
  %537 = vmatpush2.msra.mxu0 0.0
  %538 = vmatprep.subr.mxu0 0.0
  %539 = vmatpush2.msra.mxu0 0.0
  %540 = vmatprep.subr.mxu0 0.0
  %541 = vmatpush2.msra.mxu0 0.0
  %542 = vmatprep.subr.mxu0 0.0
  %543 = vmatpush2.msra.mxu0 0.0
  %544 = vmatprep.subr.mxu0 0.0
  %545 = vmatpush2.msra.mxu0 0.0
  %546 = vmatprep.subr.mxu0 0.0
  %547 = vmatpush2.msra.mxu0 0.0
  %548 = vmatprep.subr.mxu0 0.0
  %549 = vmatpush2.msra.mxu0 0.0
  %550 = vmatprep.subr.mxu0 0.0
  %551 = vmatpush2.msra.mxu0 0.0
  %552 = vmatprep.subr.mxu0 0.0
  %553 = vmatpush2.msra.mxu0 0.0
  %554 = vmatprep.subr.mxu0 0.0
  %555 = vmatpush2.msra.mxu0 0.0
  %556 = vmatprep.subr.mxu0 0.0
  %557 = vmatpush2.msra.mxu0 0.0
  %558 = vmatprep.subr.mxu0 0.0
  %559 = vmatpush2.msra.mxu0 0.0
  %560 = vmatprep.subr.mxu0 0.0
  %561 = vmatpush2.msra.mxu0 0.0
  %562 = vmatprep.subr.mxu0 0.0
  %563 = vmatpush2.msra.mxu0 0.0
  %564 = vmatprep.subr.mxu0 0.0
  %565 = vmatpush2.msra.mxu0 0.0
  %566 = vmatprep.mubr.f32.mxu0 0.0
  %567 = vmatmul.mubr.f32.gmra.mxu0 %v384
  %v568 = vpop.f32.mrf.mxu0
  %v569 = vadd.f32 %v272, %v568
  %v570 = vpop.f32.mrf.mxu0
  %v571 = vadd.f32 %v274, %v570
  %572 = vmatprep.mubr.f32.mxu0 0.0
  %573 = vmatmul.mubr.f32.gmra.mxu0 %v387
  %v574 = vpop.f32.mrf.mxu0
  %v575 = vadd.f32 %v278, %v574
  %v576 = vpop.f32.mrf.mxu0
  %v577 = vadd.f32 %v280, %v576
  %578 = vmatprep.mubr.f32.mxu0 0.0
  %579 = vmatmul.mubr.f32.gmra.mxu0 %v390
  %v580 = vpop.f32.mrf.mxu0
  %v581 = vadd.f32 %v284, %v580
  %v582 = vpop.f32.mrf.mxu0
  %v583 = vadd.f32 %v286, %v582
  %584 = vmatprep.mubr.f32.mxu0 0.0
  %585 = vmatmul.mubr.f32.gmra.mxu0 %v393
  %v586 = vpop.f32.mrf.mxu0
  %v587 = vadd.f32 %v290, %v586
  %v588 = vpop.f32.mrf.mxu0
  %v589 = vadd.f32 %v292, %v588
  %590 = vdwg.mxu0
  %591 = vmatprep.subr.mxu0 0.0
  %592 = vmatpush1.msra.mxu0 0.0
  %593 = vmatprep.subr.mxu0 0.0
  %594 = vmatpush1.msra.mxu0 0.0
  %595 = vmatprep.subr.mxu0 0.0
  %596 = vmatpush1.msra.mxu0 0.0
  %597 = vmatprep.subr.mxu0 0.0
  %598 = vmatpush1.msra.mxu0 0.0
  %599 = vmatprep.subr.mxu0 0.0
  %600 = vmatpush1.msra.mxu0 0.0
  %601 = vmatprep.subr.mxu0 0.0
  %602 = vmatpush1.msra.mxu0 0.0
  %603 = vmatprep.subr.mxu0 0.0
  %604 = vmatpush1.msra.mxu0 0.0
  %605 = vmatprep.subr.mxu0 0.0
  %606 = vmatpush1.msra.mxu0 0.0
  %607 = vmatprep.subr.mxu0 0.0
  %608 = vmatpush1.msra.mxu0 0.0
  %609 = vmatprep.subr.mxu0 0.0
  %610 = vmatpush1.msra.mxu0 0.0
  %611 = vmatprep.subr.mxu0 0.0
  %612 = vmatpush1.msra.mxu0 0.0
  %613 = vmatprep.subr.mxu0 0.0
  %614 = vmatpush1.msra.mxu0 0.0
  %615 = vmatprep.subr.mxu0 0.0
  %616 = vmatpush1.msra.mxu0 0.0
  %617 = vmatprep.subr.mxu0 0.0
  %618 = vmatpush1.msra.mxu0 0.0
  %619 = vmatprep.subr.mxu0 0.0
  %620 = vmatpush1.msra.mxu0 0.0
  %621 = vmatprep.subr.mxu0 %v411
  %622 = vmatpush1.msra.mxu0 %v408
  %623 = vmatprep.subr.mxu0 0.0
  %624 = vmatpush2.msra.mxu0 0.0
  %625 = vmatprep.subr.mxu0 0.0
  %626 = vmatpush2.msra.mxu0 0.0
  %627 = vmatprep.subr.mxu0 0.0
  %628 = vmatpush2.msra.mxu0 0.0
  %629 = vmatprep.subr.mxu0 0.0
  %630 = vmatpush2.msra.mxu0 0.0
  %631 = vmatprep.subr.mxu0 0.0
  %632 = vmatpush2.msra.mxu0 0.0
  %633 = vmatprep.subr.mxu0 0.0
  %634 = vmatpush2.msra.mxu0 0.0
  %635 = vmatprep.subr.mxu0 0.0
  %636 = vmatpush2.msra.mxu0 0.0
  %637 = vmatprep.subr.mxu0 0.0
  %638 = vmatpush2.msra.mxu0 0.0
  %639 = vmatprep.subr.mxu0 0.0
  %640 = vmatpush2.msra.mxu0 0.0
  %641 = vmatprep.subr.mxu0 0.0
  %642 = vmatpush2.msra.mxu0 0.0
  %643 = vmatprep.subr.mxu0 0.0
  %644 = vmatpush2.msra.mxu0 0.0
  %645 = vmatprep.subr.mxu0 0.0
  %646 = vmatpush2.msra.mxu0 0.0
  %647 = vmatprep.subr.mxu0 0.0
  %648 = vmatpush2.msra.mxu0 0.0
  %649 = vmatprep.subr.mxu0 0.0
  %650 = vmatpush2.msra.mxu0 0.0
  %651 = vmatprep.subr.mxu0 0.0
  %652 = vmatpush2.msra.mxu0 0.0
  %653 = vmatprep.subr.mxu0 0.0
  %654 = vmatpush2.msra.mxu0 0.0
  %655 = vmatprep.mubr.f32.mxu0 0.0
  %656 = vmatmul.mubr.f32.gmra.mxu0 %v384
  %v657 = vpop.f32.mrf.mxu0
  %v658 = vadd.f32 %v361, %v657
  %v659 = vpop.f32.mrf.mxu0
  %v660 = vadd.f32 %v363, %v659
  %661 = vmatprep.mubr.f32.mxu0 0.0
  %662 = vmatmul.mubr.f32.gmra.mxu0 %v387
  %v663 = vpop.f32.mrf.mxu0
  %v664 = vadd.f32 %v367, %v663
  %v665 = vpop.f32.mrf.mxu0
  %v666 = vadd.f32 %v369, %v665
  %667 = vmatprep.mubr.f32.mxu0 0.0
  %668 = vmatmul.mubr.f32.gmra.mxu0 %v390
  %v669 = vpop.f32.mrf.mxu0
  %v670 = vadd.f32 %v373, %v669
  %v671 = vpop.f32.mrf.mxu0
  %v672 = vadd.f32 %v375, %v671
  %673 = vmatprep.mubr.f32.mxu0 0.0
  %674 = vmatmul.mubr.f32.gmra.mxu0 %v393
  %v675 = vpop.f32.mrf.mxu0
  %v676 = vadd.f32 %v379, %v675
  %v677 = vpop.f32.mrf.mxu0
  %v678 = vadd.f32 %v381, %v677
  %679 = vdwg.mxu0
  %680 = vrot.lane.b32.xlu0 %v23, 17
  %v681 = vpop.permute.xlu0 %680
  %682 = vrot.lane.b32.xlu0 %v29, 17
  %v683 = vpop.permute.xlu0 %682
  %684 = vrot.lane.b32.xlu0 %v24, 17
  %v685 = vpop.permute.xlu0 %684
  %686 = vrot.lane.b32.xlu0 %v30, 17
  %v687 = vpop.permute.xlu0 %686
  %688 = vrot.lane.b32.xlu0 %v25, 17
  %v689 = vpop.permute.xlu0 %688
  %690 = vrot.lane.b32.xlu0 %v31, 17
  %v691 = vpop.permute.xlu0 %690
  %vm692 = vcmp.lt.s32.totalorder %v48, 17
  %v693 = vsel %vm692, %v689, %v691
  %v694 = vsel %vm692, %v687, %v689
  %v695 = vsel %vm692, %v685, %v687
  %v696 = vsel %vm692, %v683, %v685
  %v697 = vsel %vm692, %v681, %v683
  %v698 = vsel %vm692, %v691, %v681
  %s699 = scalar_lea.vmem %s1, 64
  %v700 = vld [vmem:[%s699] sm:$0xff]
  %v701 = vld [vmem:[%s699 + $0x8] sm:$0xff]
  %v702 = vld [vmem:[%s699 + $0x10] sm:$0xff]
  %v703 = vld [vmem:[%s699 + $0x18] sm:$0xff]
  %v705 = vsel %vm84, %v700, 0
  %v708 = vsel %vm84, %v701, 0
  %v711 = vsel %vm84, %v702, 0
  %v714 = vsel %vm84, %v703, 0
  %v717 = vsel %vm97, %v698, 0
  %v720 = vsel %vm97, %v697, 0
  %v723 = vsel %vm97, %v696, 0
  %v726 = vsel %vm97, %v695, 0
  %v729 = vsel %vm97, %v694, 0
  %v732 = vsel %vm97, %v693, 0
  %734 = vmatprep.subr.mxu0 0.0
  %735 = vmatpush1.msra.mxu0 0.0
  %736 = vmatprep.subr.mxu0 0.0
  %737 = vmatpush1.msra.mxu0 0.0
  %738 = vmatprep.subr.mxu0 0.0
  %739 = vmatpush1.msra.mxu0 0.0
  %740 = vmatprep.subr.mxu0 0.0
  %741 = vmatpush1.msra.mxu0 0.0
  %742 = vmatprep.subr.mxu0 0.0
  %743 = vmatpush1.msra.mxu0 0.0
  %744 = vmatprep.subr.mxu0 0.0
  %745 = vmatpush1.msra.mxu0 0.0
  %746 = vmatprep.subr.mxu0 0.0
  %747 = vmatpush1.msra.mxu0 0.0
  %748 = vmatprep.subr.mxu0 0.0
  %749 = vmatpush1.msra.mxu0 0.0
  %750 = vmatprep.subr.mxu0 0.0
  %751 = vmatpush1.msra.mxu0 0.0
  %752 = vmatprep.subr.mxu0 0.0
  %753 = vmatpush1.msra.mxu0 0.0
  %754 = vmatprep.subr.mxu0 0.0
  %755 = vmatpush1.msra.mxu0 0.0
  %756 = vmatprep.subr.mxu0 0.0
  %757 = vmatpush1.msra.mxu0 0.0
  %758 = vmatprep.subr.mxu0 0.0
  %759 = vmatpush1.msra.mxu0 0.0
  %760 = vmatprep.subr.mxu0 0.0
  %761 = vmatpush1.msra.mxu0 0.0
  %762 = vmatprep.subr.mxu0 0.0
  %763 = vmatpush1.msra.mxu0 0.0
  %764 = vmatprep.subr.mxu0 %v720
  %765 = vmatpush1.msra.mxu0 %v717
  %766 = vmatprep.subr.mxu0 0.0
  %767 = vmatpush2.msra.mxu0 0.0
  %768 = vmatprep.subr.mxu0 0.0
  %769 = vmatpush2.msra.mxu0 0.0
  %770 = vmatprep.subr.mxu0 0.0
  %771 = vmatpush2.msra.mxu0 0.0
  %772 = vmatprep.subr.mxu0 0.0
  %773 = vmatpush2.msra.mxu0 0.0
  %774 = vmatprep.subr.mxu0 0.0
  %775 = vmatpush2.msra.mxu0 0.0
  %776 = vmatprep.subr.mxu0 0.0
  %777 = vmatpush2.msra.mxu0 0.0
  %778 = vmatprep.subr.mxu0 0.0
  %779 = vmatpush2.msra.mxu0 0.0
  %780 = vmatprep.subr.mxu0 0.0
  %781 = vmatpush2.msra.mxu0 0.0
  %782 = vmatprep.subr.mxu0 0.0
  %783 = vmatpush2.msra.mxu0 0.0
  %784 = vmatprep.subr.mxu0 0.0
  %785 = vmatpush2.msra.mxu0 0.0
  %786 = vmatprep.subr.mxu0 0.0
  %787 = vmatpush2.msra.mxu0 0.0
  %788 = vmatprep.subr.mxu0 0.0
  %789 = vmatpush2.msra.mxu0 0.0
  %790 = vmatprep.subr.mxu0 0.0
  %791 = vmatpush2.msra.mxu0 0.0
  %792 = vmatprep.subr.mxu0 0.0
  %793 = vmatpush2.msra.mxu0 0.0
  %794 = vmatprep.subr.mxu0 0.0
  %795 = vmatpush2.msra.mxu0 0.0
  %796 = vmatprep.subr.mxu0 0.0
  %797 = vmatpush2.msra.mxu0 0.0
  %798 = vmatprep.mubr.f32.mxu0 0.0
  %799 = vmatmul.mubr.f32.gmra.mxu0 %v705
  %v800 = vpop.f32.mrf.mxu0
  %v801 = vadd.f32 0.0, %v800
  %v802 = vpop.f32.mrf.mxu0
  %v803 = vadd.f32 0.0, %v802
  %804 = vmatprep.mubr.f32.mxu0 0.0
  %805 = vmatmul.mubr.f32.gmra.mxu0 %v708
  %v806 = vpop.f32.mrf.mxu0
  %v807 = vadd.f32 0.0, %v806
  %v808 = vpop.f32.mrf.mxu0
  %v809 = vadd.f32 0.0, %v808
  %810 = vmatprep.mubr.f32.mxu0 0.0
  %811 = vmatmul.mubr.f32.gmra.mxu0 %v711
  %v812 = vpop.f32.mrf.mxu0
  %v813 = vadd.f32 0.0, %v812
  %v814 = vpop.f32.mrf.mxu0
  %v815 = vadd.f32 0.0, %v814
  %816 = vmatprep.mubr.f32.mxu0 0.0
  %817 = vmatmul.mubr.f32.gmra.mxu0 %v714
  %v818 = vpop.f32.mrf.mxu0
  %v819 = vadd.f32 0.0, %v818
  %v820 = vpop.f32.mrf.mxu0
  %v821 = vadd.f32 0.0, %v820
  %822 = vdwg.mxu0
  %823 = vmatprep.subr.mxu0 0.0
  %824 = vmatpush1.msra.mxu0 0.0
  %825 = vmatprep.subr.mxu0 0.0
  %826 = vmatpush1.msra.mxu0 0.0
  %827 = vmatprep.subr.mxu0 0.0
  %828 = vmatpush1.msra.mxu0 0.0
  %829 = vmatprep.subr.mxu0 0.0
  %830 = vmatpush1.msra.mxu0 0.0
  %831 = vmatprep.subr.mxu0 0.0
  %832 = vmatpush1.msra.mxu0 0.0
  %833 = vmatprep.subr.mxu0 0.0
  %834 = vmatpush1.msra.mxu0 0.0
  %835 = vmatprep.subr.mxu0 0.0
  %836 = vmatpush1.msra.mxu0 0.0
  %837 = vmatprep.subr.mxu0 0.0
  %838 = vmatpush1.msra.mxu0 0.0
  %839 = vmatprep.subr.mxu0 0.0
  %840 = vmatpush1.msra.mxu0 0.0
  %841 = vmatprep.subr.mxu0 0.0
  %842 = vmatpush1.msra.mxu0 0.0
  %843 = vmatprep.subr.mxu0 0.0
  %844 = vmatpush1.msra.mxu0 0.0
  %845 = vmatprep.subr.mxu0 0.0
  %846 = vmatpush1.msra.mxu0 0.0
  %847 = vmatprep.subr.mxu0 0.0
  %848 = vmatpush1.msra.mxu0 0.0
  %849 = vmatprep.subr.mxu0 0.0
  %850 = vmatpush1.msra.mxu0 0.0
  %851 = vmatprep.subr.mxu0 0.0
  %852 = vmatpush1.msra.mxu0 0.0
  %853 = vmatprep.subr.mxu0 %v726
  %854 = vmatpush1.msra.mxu0 %v723
  %855 = vmatprep.subr.mxu0 0.0
  %856 = vmatpush2.msra.mxu0 0.0
  %857 = vmatprep.subr.mxu0 0.0
  %858 = vmatpush2.msra.mxu0 0.0
  %859 = vmatprep.subr.mxu0 0.0
  %860 = vmatpush2.msra.mxu0 0.0
  %861 = vmatprep.subr.mxu0 0.0
  %862 = vmatpush2.msra.mxu0 0.0
  %863 = vmatprep.subr.mxu0 0.0
  %864 = vmatpush2.msra.mxu0 0.0
  %865 = vmatprep.subr.mxu0 0.0
  %866 = vmatpush2.msra.mxu0 0.0
  %867 = vmatprep.subr.mxu0 0.0
  %868 = vmatpush2.msra.mxu0 0.0
  %869 = vmatprep.subr.mxu0 0.0
  %870 = vmatpush2.msra.mxu0 0.0
  %871 = vmatprep.subr.mxu0 0.0
  %872 = vmatpush2.msra.mxu0 0.0
  %873 = vmatprep.subr.mxu0 0.0
  %874 = vmatpush2.msra.mxu0 0.0
  %875 = vmatprep.subr.mxu0 0.0
  %876 = vmatpush2.msra.mxu0 0.0
  %877 = vmatprep.subr.mxu0 0.0
  %878 = vmatpush2.msra.mxu0 0.0
  %879 = vmatprep.subr.mxu0 0.0
  %880 = vmatpush2.msra.mxu0 0.0
  %881 = vmatprep.subr.mxu0 0.0
  %882 = vmatpush2.msra.mxu0 0.0
  %883 = vmatprep.subr.mxu0 0.0
  %884 = vmatpush2.msra.mxu0 0.0
  %885 = vmatprep.subr.mxu0 0.0
  %886 = vmatpush2.msra.mxu0 0.0
  %887 = vmatprep.mubr.f32.mxu0 0.0
  %888 = vmatmul.mubr.f32.gmra.mxu0 %v705
  %v889 = vpop.f32.mrf.mxu0
  %v890 = vadd.f32 0.0, %v889
  %v891 = vpop.f32.mrf.mxu0
  %v892 = vadd.f32 0.0, %v891
  %893 = vmatprep.mubr.f32.mxu0 0.0
  %894 = vmatmul.mubr.f32.gmra.mxu0 %v708
  %v895 = vpop.f32.mrf.mxu0
  %v896 = vadd.f32 0.0, %v895
  %v897 = vpop.f32.mrf.mxu0
  %v898 = vadd.f32 0.0, %v897
  %899 = vmatprep.mubr.f32.mxu0 0.0
  %900 = vmatmul.mubr.f32.gmra.mxu0 %v711
  %v901 = vpop.f32.mrf.mxu0
  %v902 = vadd.f32 0.0, %v901
  %v903 = vpop.f32.mrf.mxu0
  %v904 = vadd.f32 0.0, %v903
  %905 = vmatprep.mubr.f32.mxu0 0.0
  %906 = vmatmul.mubr.f32.gmra.mxu0 %v714
  %v907 = vpop.f32.mrf.mxu0
  %v908 = vadd.f32 0.0, %v907
  %v909 = vpop.f32.mrf.mxu0
  %v910 = vadd.f32 0.0, %v909
  %911 = vdwg.mxu0
  %912 = vmatprep.subr.mxu0 0.0
  %913 = vmatpush1.msra.mxu0 0.0
  %914 = vmatprep.subr.mxu0 0.0
  %915 = vmatpush1.msra.mxu0 0.0
  %916 = vmatprep.subr.mxu0 0.0
  %917 = vmatpush1.msra.mxu0 0.0
  %918 = vmatprep.subr.mxu0 0.0
  %919 = vmatpush1.msra.mxu0 0.0
  %920 = vmatprep.subr.mxu0 0.0
  %921 = vmatpush1.msra.mxu0 0.0
  %922 = vmatprep.subr.mxu0 0.0
  %923 = vmatpush1.msra.mxu0 0.0
  %924 = vmatprep.subr.mxu0 0.0
  %925 = vmatpush1.msra.mxu0 0.0
  %926 = vmatprep.subr.mxu0 0.0
  %927 = vmatpush1.msra.mxu0 0.0
  %928 = vmatprep.subr.mxu0 0.0
  %929 = vmatpush1.msra.mxu0 0.0
  %930 = vmatprep.subr.mxu0 0.0
  %931 = vmatpush1.msra.mxu0 0.0
  %932 = vmatprep.subr.mxu0 0.0
  %933 = vmatpush1.msra.mxu0 0.0
  %934 = vmatprep.subr.mxu0 0.0
  %935 = vmatpush1.msra.mxu0 0.0
  %936 = vmatprep.subr.mxu0 0.0
  %937 = vmatpush1.msra.mxu0 0.0
  %938 = vmatprep.subr.mxu0 0.0
  %939 = vmatpush1.msra.mxu0 0.0
  %940 = vmatprep.subr.mxu0 0.0
  %941 = vmatpush1.msra.mxu0 0.0
  %942 = vmatprep.subr.mxu0 %v732
  %943 = vmatpush1.msra.mxu0 %v729
  %944 = vmatprep.subr.mxu0 0.0
  %945 = vmatpush2.msra.mxu0 0.0
  %946 = vmatprep.subr.mxu0 0.0
  %947 = vmatpush2.msra.mxu0 0.0
  %948 = vmatprep.subr.mxu0 0.0
  %949 = vmatpush2.msra.mxu0 0.0
  %950 = vmatprep.subr.mxu0 0.0
  %951 = vmatpush2.msra.mxu0 0.0
  %952 = vmatprep.subr.mxu0 0.0
  %953 = vmatpush2.msra.mxu0 0.0
  %954 = vmatprep.subr.mxu0 0.0
  %955 = vmatpush2.msra.mxu0 0.0
  %956 = vmatprep.subr.mxu0 0.0
  %957 = vmatpush2.msra.mxu0 0.0
  %958 = vmatprep.subr.mxu0 0.0
  %959 = vmatpush2.msra.mxu0 0.0
  %960 = vmatprep.subr.mxu0 0.0
  %961 = vmatpush2.msra.mxu0 0.0
  %962 = vmatprep.subr.mxu0 0.0
  %963 = vmatpush2.msra.mxu0 0.0
  %964 = vmatprep.subr.mxu0 0.0
  %965 = vmatpush2.msra.mxu0 0.0
  %966 = vmatprep.subr.mxu0 0.0
  %967 = vmatpush2.msra.mxu0 0.0
  %968 = vmatprep.subr.mxu0 0.0
  %969 = vmatpush2.msra.mxu0 0.0
  %970 = vmatprep.subr.mxu0 0.0
  %971 = vmatpush2.msra.mxu0 0.0
  %972 = vmatprep.subr.mxu0 0.0
  %973 = vmatpush2.msra.mxu0 0.0
  %974 = vmatprep.subr.mxu0 0.0
  %975 = vmatpush2.msra.mxu0 0.0
  %976 = vmatprep.mubr.f32.mxu0 0.0
  %977 = vmatmul.mubr.f32.gmra.mxu0 %v705
  %v978 = vpop.f32.mrf.mxu0
  %v979 = vadd.f32 0.0, %v978
  %v980 = vpop.f32.mrf.mxu0
  %v981 = vadd.f32 0.0, %v980
  %982 = vmatprep.mubr.f32.mxu0 0.0
  %983 = vmatmul.mubr.f32.gmra.mxu0 %v708
  %v984 = vpop.f32.mrf.mxu0
  %v985 = vadd.f32 0.0, %v984
  %v986 = vpop.f32.mrf.mxu0
  %v987 = vadd.f32 0.0, %v986
  %988 = vmatprep.mubr.f32.mxu0 0.0
  %989 = vmatmul.mubr.f32.gmra.mxu0 %v711
  %v990 = vpop.f32.mrf.mxu0
  %v991 = vadd.f32 0.0, %v990
  %v992 = vpop.f32.mrf.mxu0
  %v993 = vadd.f32 0.0, %v992
  %994 = vmatprep.mubr.f32.mxu0 0.0
  %995 = vmatmul.mubr.f32.gmra.mxu0 %v714
  %v996 = vpop.f32.mrf.mxu0
  %v997 = vadd.f32 0.0, %v996
  %v998 = vpop.f32.mrf.mxu0
  %v999 = vadd.f32 0.0, %v998
  %1000 = vdwg.mxu0
  %v1001 = vadd.f32 %v480, %v801
  %v1002 = vadd.f32 %v482, %v803
  %v1003 = vadd.f32 %v569, %v890
  %v1004 = vadd.f32 %v571, %v892
  %v1005 = vadd.f32 %v658, %v979
  %v1006 = vadd.f32 %v660, %v981
  %v1007 = vadd.f32 %v486, %v807
  %v1008 = vadd.f32 %v488, %v809
  %v1009 = vadd.f32 %v575, %v896
  %v1010 = vadd.f32 %v577, %v898
  %v1011 = vadd.f32 %v664, %v985
  %v1012 = vadd.f32 %v666, %v987
  %v1013 = vadd.f32 %v492, %v813
  %v1014 = vadd.f32 %v494, %v815
  %v1015 = vadd.f32 %v581, %v902
  %v1016 = vadd.f32 %v583, %v904
  %v1017 = vadd.f32 %v670, %v991
  %v1018 = vadd.f32 %v672, %v993
  %v1019 = vadd.f32 %v498, %v819
  %v1020 = vadd.f32 %v500, %v821
  %v1021 = vadd.f32 %v587, %v908
  %v1022 = vadd.f32 %v589, %v910
  %v1023 = vadd.f32 %v676, %v997
  %v1024 = vadd.f32 %v678, %v999
  %1025 = vrot.lane.b32.xlu0 %v23, 1
  %v1026 = vpop.permute.xlu0 %1025
  %1027 = vrot.lane.b32.xlu0 %v29, 1
  %v1028 = vpop.permute.xlu0 %1027
  %1029 = vrot.lane.b32.xlu0 %v24, 1
  %v1030 = vpop.permute.xlu0 %1029
  %1031 = vrot.lane.b32.xlu0 %v30, 1
  %v1032 = vpop.permute.xlu0 %1031
  %1033 = vrot.lane.b32.xlu0 %v25, 1
  %v1034 = vpop.permute.xlu0 %1033
  %1035 = vrot.lane.b32.xlu0 %v31, 1
  %v1036 = vpop.permute.xlu0 %1035
  %vm1037 = vcmp.lt.s32.totalorder %v48, 1
  %v1038 = vsel %vm1037, %v1034, %v1036
  %v1039 = vsel %vm1037, %v1032, %v1034
  %v1040 = vsel %vm1037, %v1030, %v1032
  %v1041 = vsel %vm1037, %v1028, %v1030
  %v1042 = vsel %vm1037, %v1026, %v1028
  %v1043 = vsel %vm1037, %v1036, %v1026
  %s1044 = scalar_lea.vmem %s1, 96
  %v1045 = vld [vmem:[%s1044] sm:$0xff]
  %v1046 = vld [vmem:[%s1044 + $0x8] sm:$0xff]
  %v1047 = vld [vmem:[%s1044 + $0x10] sm:$0xff]
  %v1048 = vld [vmem:[%s1044 + $0x18] sm:$0xff]
  %v1050 = vsel %vm84, %v1045, 0
  %v1053 = vsel %vm84, %v1046, 0
  %v1056 = vsel %vm84, %v1047, 0
  %v1059 = vsel %vm84, %v1048, 0
  %v1062 = vsel %vm97, %v1043, 0
  %v1065 = vsel %vm97, %v1042, 0
  %v1068 = vsel %vm97, %v1041, 0
  %v1071 = vsel %vm97, %v1040, 0
  %v1074 = vsel %vm97, %v1039, 0
  %v1077 = vsel %vm97, %v1038, 0
  %1079 = vmatprep.subr.mxu0 0.0
  %1080 = vmatpush1.msra.mxu0 0.0
  %1081 = vmatprep.subr.mxu0 0.0
  %1082 = vmatpush1.msra.mxu0 0.0
  %1083 = vmatprep.subr.mxu0 0.0
  %1084 = vmatpush1.msra.mxu0 0.0
  %1085 = vmatprep.subr.mxu0 0.0
  %1086 = vmatpush1.msra.mxu0 0.0
  %1087 = vmatprep.subr.mxu0 0.0
  %1088 = vmatpush1.msra.mxu0 0.0
  %1089 = vmatprep.subr.mxu0 0.0
  %1090 = vmatpush1.msra.mxu0 0.0
  %1091 = vmatprep.subr.mxu0 0.0
  %1092 = vmatpush1.msra.mxu0 0.0
  %1093 = vmatprep.subr.mxu0 0.0
  %1094 = vmatpush1.msra.mxu0 0.0
  %1095 = vmatprep.subr.mxu0 0.0
  %1096 = vmatpush1.msra.mxu0 0.0
  %1097 = vmatprep.subr.mxu0 0.0
  %1098 = vmatpush1.msra.mxu0 0.0
  %1099 = vmatprep.subr.mxu0 0.0
  %1100 = vmatpush1.msra.mxu0 0.0
  %1101 = vmatprep.subr.mxu0 0.0
  %1102 = vmatpush1.msra.mxu0 0.0
  %1103 = vmatprep.subr.mxu0 0.0
  %1104 = vmatpush1.msra.mxu0 0.0
  %1105 = vmatprep.subr.mxu0 0.0
  %1106 = vmatpush1.msra.mxu0 0.0
  %1107 = vmatprep.subr.mxu0 0.0
  %1108 = vmatpush1.msra.mxu0 0.0
  %1109 = vmatprep.subr.mxu0 %v1065
  %1110 = vmatpush1.msra.mxu0 %v1062
  %1111 = vmatprep.subr.mxu0 0.0
  %1112 = vmatpush2.msra.mxu0 0.0
  %1113 = vmatprep.subr.mxu0 0.0
  %1114 = vmatpush2.msra.mxu0 0.0
  %1115 = vmatprep.subr.mxu0 0.0
  %1116 = vmatpush2.msra.mxu0 0.0
  %1117 = vmatprep.subr.mxu0 0.0
  %1118 = vmatpush2.msra.mxu0 0.0
  %1119 = vmatprep.subr.mxu0 0.0
  %1120 = vmatpush2.msra.mxu0 0.0
  %1121 = vmatprep.subr.mxu0 0.0
  %1122 = vmatpush2.msra.mxu0 0.0
  %1123 = vmatprep.subr.mxu0 0.0
  %1124 = vmatpush2.msra.mxu0 0.0
  %1125 = vmatprep.subr.mxu0 0.0
  %1126 = vmatpush2.msra.mxu0 0.0
  %1127 = vmatprep.subr.mxu0 0.0
  %1128 = vmatpush2.msra.mxu0 0.0
  %1129 = vmatprep.subr.mxu0 0.0
  %1130 = vmatpush2.msra.mxu0 0.0
  %1131 = vmatprep.subr.mxu0 0.0
  %1132 = vmatpush2.msra.mxu0 0.0
  %1133 = vmatprep.subr.mxu0 0.0
  %1134 = vmatpush2.msra.mxu0 0.0
  %1135 = vmatprep.subr.mxu0 0.0
  %1136 = vmatpush2.msra.mxu0 0.0
  %1137 = vmatprep.subr.mxu0 0.0
  %1138 = vmatpush2.msra.mxu0 0.0
  %1139 = vmatprep.subr.mxu0 0.0
  %1140 = vmatpush2.msra.mxu0 0.0
  %1141 = vmatprep.subr.mxu0 0.0
  %1142 = vmatpush2.msra.mxu0 0.0
  %1143 = vmatprep.mubr.f32.mxu0 0.0
  %1144 = vmatmul.mubr.f32.gmra.mxu0 %v1050
  %v1145 = vpop.f32.mrf.mxu0
  %v1146 = vadd.f32 0.0, %v1145
  %v1147 = vpop.f32.mrf.mxu0
  %v1148 = vadd.f32 0.0, %v1147
  %1149 = vmatprep.mubr.f32.mxu0 0.0
  %1150 = vmatmul.mubr.f32.gmra.mxu0 %v1053
  %v1151 = vpop.f32.mrf.mxu0
  %v1152 = vadd.f32 0.0, %v1151
  %v1153 = vpop.f32.mrf.mxu0
  %v1154 = vadd.f32 0.0, %v1153
  %1155 = vmatprep.mubr.f32.mxu0 0.0
  %1156 = vmatmul.mubr.f32.gmra.mxu0 %v1056
  %v1157 = vpop.f32.mrf.mxu0
  %v1158 = vadd.f32 0.0, %v1157
  %v1159 = vpop.f32.mrf.mxu0
  %v1160 = vadd.f32 0.0, %v1159
  %1161 = vmatprep.mubr.f32.mxu0 0.0
  %1162 = vmatmul.mubr.f32.gmra.mxu0 %v1059
  %v1163 = vpop.f32.mrf.mxu0
  %v1164 = vadd.f32 0.0, %v1163
  %v1165 = vpop.f32.mrf.mxu0
  %v1166 = vadd.f32 0.0, %v1165
  %1167 = vdwg.mxu0
  %1168 = vmatprep.subr.mxu0 0.0
  %1169 = vmatpush1.msra.mxu0 0.0
  %1170 = vmatprep.subr.mxu0 0.0
  %1171 = vmatpush1.msra.mxu0 0.0
  %1172 = vmatprep.subr.mxu0 0.0
  %1173 = vmatpush1.msra.mxu0 0.0
  %1174 = vmatprep.subr.mxu0 0.0
  %1175 = vmatpush1.msra.mxu0 0.0
  %1176 = vmatprep.subr.mxu0 0.0
  %1177 = vmatpush1.msra.mxu0 0.0
  %1178 = vmatprep.subr.mxu0 0.0
  %1179 = vmatpush1.msra.mxu0 0.0
  %1180 = vmatprep.subr.mxu0 0.0
  %1181 = vmatpush1.msra.mxu0 0.0
  %1182 = vmatprep.subr.mxu0 0.0
  %1183 = vmatpush1.msra.mxu0 0.0
  %1184 = vmatprep.subr.mxu0 0.0
  %1185 = vmatpush1.msra.mxu0 0.0
  %1186 = vmatprep.subr.mxu0 0.0
  %1187 = vmatpush1.msra.mxu0 0.0
  %1188 = vmatprep.subr.mxu0 0.0
  %1189 = vmatpush1.msra.mxu0 0.0
  %1190 = vmatprep.subr.mxu0 0.0
  %1191 = vmatpush1.msra.mxu0 0.0
  %1192 = vmatprep.subr.mxu0 0.0
  %1193 = vmatpush1.msra.mxu0 0.0
  %1194 = vmatprep.subr.mxu0 0.0
  %1195 = vmatpush1.msra.mxu0 0.0
  %1196 = vmatprep.subr.mxu0 0.0
  %1197 = vmatpush1.msra.mxu0 0.0
  %1198 = vmatprep.subr.mxu0 %v1071
  %1199 = vmatpush1.msra.mxu0 %v1068
  %1200 = vmatprep.subr.mxu0 0.0
  %1201 = vmatpush2.msra.mxu0 0.0
  %1202 = vmatprep.subr.mxu0 0.0
  %1203 = vmatpush2.msra.mxu0 0.0
  %1204 = vmatprep.subr.mxu0 0.0
  %1205 = vmatpush2.msra.mxu0 0.0
  %1206 = vmatprep.subr.mxu0 0.0
  %1207 = vmatpush2.msra.mxu0 0.0
  %1208 = vmatprep.subr.mxu0 0.0
  %1209 = vmatpush2.msra.mxu0 0.0
  %1210 = vmatprep.subr.mxu0 0.0
  %1211 = vmatpush2.msra.mxu0 0.0
  %1212 = vmatprep.subr.mxu0 0.0
  %1213 = vmatpush2.msra.mxu0 0.0
  %1214 = vmatprep.subr.mxu0 0.0
  %1215 = vmatpush2.msra.mxu0 0.0
  %1216 = vmatprep.subr.mxu0 0.0
  %1217 = vmatpush2.msra.mxu0 0.0
  %1218 = vmatprep.subr.mxu0 0.0
  %1219 = vmatpush2.msra.mxu0 0.0
  %1220 = vmatprep.subr.mxu0 0.0
  %1221 = vmatpush2.msra.mxu0 0.0
  %1222 = vmatprep.subr.mxu0 0.0
  %1223 = vmatpush2.msra.mxu0 0.0
  %1224 = vmatprep.subr.mxu0 0.0
  %1225 = vmatpush2.msra.mxu0 0.0
  %1226 = vmatprep.subr.mxu0 0.0
  %1227 = vmatpush2.msra.mxu0 0.0
  %1228 = vmatprep.subr.mxu0 0.0
  %1229 = vmatpush2.msra.mxu0 0.0
  %1230 = vmatprep.subr.mxu0 0.0
  %1231 = vmatpush2.msra.mxu0 0.0
  %1232 = vmatprep.mubr.f32.mxu0 0.0
  %1233 = vmatmul.mubr.f32.gmra.mxu0 %v1050
  %v1234 = vpop.f32.mrf.mxu0
  %v1235 = vadd.f32 0.0, %v1234
  %v1236 = vpop.f32.mrf.mxu0
  %v1237 = vadd.f32 0.0, %v1236
  %1238 = vmatprep.mubr.f32.mxu0 0.0
  %1239 = vmatmul.mubr.f32.gmra.mxu0 %v1053
  %v1240 = vpop.f32.mrf.mxu0
  %v1241 = vadd.f32 0.0, %v1240
  %v1242 = vpop.f32.mrf.mxu0
  %v1243 = vadd.f32 0.0, %v1242
  %1244 = vmatprep.mubr.f32.mxu0 0.0
  %1245 = vmatmul.mubr.f32.gmra.mxu0 %v1056
  %v1246 = vpop.f32.mrf.mxu0
  %v1247 = vadd.f32 0.0, %v1246
  %v1248 = vpop.f32.mrf.mxu0
  %v1249 = vadd.f32 0.0, %v1248
  %1250 = vmatprep.mubr.f32.mxu0 0.0
  %1251 = vmatmul.mubr.f32.gmra.mxu0 %v1059
  %v1252 = vpop.f32.mrf.mxu0
  %v1253 = vadd.f32 0.0, %v1252
  %v1254 = vpop.f32.mrf.mxu0
  %v1255 = vadd.f32 0.0, %v1254
  %1256 = vdwg.mxu0
  %1257 = vmatprep.subr.mxu0 0.0
  %1258 = vmatpush1.msra.mxu0 0.0
  %1259 = vmatprep.subr.mxu0 0.0
  %1260 = vmatpush1.msra.mxu0 0.0
  %1261 = vmatprep.subr.mxu0 0.0
  %1262 = vmatpush1.msra.mxu0 0.0
  %1263 = vmatprep.subr.mxu0 0.0
  %1264 = vmatpush1.msra.mxu0 0.0
  %1265 = vmatprep.subr.mxu0 0.0
  %1266 = vmatpush1.msra.mxu0 0.0
  %1267 = vmatprep.subr.mxu0 0.0
  %1268 = vmatpush1.msra.mxu0 0.0
  %1269 = vmatprep.subr.mxu0 0.0
  %1270 = vmatpush1.msra.mxu0 0.0
  %1271 = vmatprep.subr.mxu0 0.0
  %1272 = vmatpush1.msra.mxu0 0.0
  %1273 = vmatprep.subr.mxu0 0.0
  %1274 = vmatpush1.msra.mxu0 0.0
  %1275 = vmatprep.subr.mxu0 0.0
  %1276 = vmatpush1.msra.mxu0 0.0
  %1277 = vmatprep.subr.mxu0 0.0
  %1278 = vmatpush1.msra.mxu0 0.0
  %1279 = vmatprep.subr.mxu0 0.0
  %1280 = vmatpush1.msra.mxu0 0.0
  %1281 = vmatprep.subr.mxu0 0.0
  %1282 = vmatpush1.msra.mxu0 0.0
  %1283 = vmatprep.subr.mxu0 0.0
  %1284 = vmatpush1.msra.mxu0 0.0
  %1285 = vmatprep.subr.mxu0 0.0
  %1286 = vmatpush1.msra.mxu0 0.0
  %1287 = vmatprep.subr.mxu0 %v1077
  %1288 = vmatpush1.msra.mxu0 %v1074
  %1289 = vmatprep.subr.mxu0 0.0
  %1290 = vmatpush2.msra.mxu0 0.0
  %1291 = vmatprep.subr.mxu0 0.0
  %1292 = vmatpush2.msra.mxu0 0.0
  %1293 = vmatprep.subr.mxu0 0.0
  %1294 = vmatpush2.msra.mxu0 0.0
  %1295 = vmatprep.subr.mxu0 0.0
  %1296 = vmatpush2.msra.mxu0 0.0
  %1297 = vmatprep.subr.mxu0 0.0
  %1298 = vmatpush2.msra.mxu0 0.0
  %1299 = vmatprep.subr.mxu0 0.0
  %1300 = vmatpush2.msra.mxu0 0.0
  %1301 = vmatprep.subr.mxu0 0.0
  %1302 = vmatpush2.msra.mxu0 0.0
  %1303 = vmatprep.subr.mxu0 0.0
  %1304 = vmatpush2.msra.mxu0 0.0
  %1305 = vmatprep.subr.mxu0 0.0
  %1306 = vmatpush2.msra.mxu0 0.0
  %1307 = vmatprep.subr.mxu0 0.0
  %1308 = vmatpush2.msra.mxu0 0.0
  %1309 = vmatprep.subr.mxu0 0.0
  %1310 = vmatpush2.msra.mxu0 0.0
  %1311 = vmatprep.subr.mxu0 0.0
  %1312 = vmatpush2.msra.mxu0 0.0
  %1313 = vmatprep.subr.mxu0 0.0
  %1314 = vmatpush2.msra.mxu0 0.0
  %1315 = vmatprep.subr.mxu0 0.0
  %1316 = vmatpush2.msra.mxu0 0.0
  %1317 = vmatprep.subr.mxu0 0.0
  %1318 = vmatpush2.msra.mxu0 0.0
  %1319 = vmatprep.subr.mxu0 0.0
  %1320 = vmatpush2.msra.mxu0 0.0
  %1321 = vmatprep.mubr.f32.mxu0 0.0
  %1322 = vmatmul.mubr.f32.gmra.mxu0 %v1050
  %v1323 = vpop.f32.mrf.mxu0
  %v1324 = vadd.f32 0.0, %v1323
  %v1325 = vpop.f32.mrf.mxu0
  %v1326 = vadd.f32 0.0, %v1325
  %1327 = vmatprep.mubr.f32.mxu0 0.0
  %1328 = vmatmul.mubr.f32.gmra.mxu0 %v1053
  %v1329 = vpop.f32.mrf.mxu0
  %v1330 = vadd.f32 0.0, %v1329
  %v1331 = vpop.f32.mrf.mxu0
  %v1332 = vadd.f32 0.0, %v1331
  %1333 = vmatprep.mubr.f32.mxu0 0.0
  %1334 = vmatmul.mubr.f32.gmra.mxu0 %v1056
  %v1335 = vpop.f32.mrf.mxu0
  %v1336 = vadd.f32 0.0, %v1335
  %v1337 = vpop.f32.mrf.mxu0
  %v1338 = vadd.f32 0.0, %v1337
  %1339 = vmatprep.mubr.f32.mxu0 0.0
  %1340 = vmatmul.mubr.f32.gmra.mxu0 %v1059
  %v1341 = vpop.f32.mrf.mxu0
  %v1342 = vadd.f32 0.0, %v1341
  %v1343 = vpop.f32.mrf.mxu0
  %v1344 = vadd.f32 0.0, %v1343
  %1345 = vdwg.mxu0
  %v1346 = vadd.f32 %v1001, %v1146
  %v1347 = vadd.f32 %v1002, %v1148
  %v1348 = vadd.f32 %v1003, %v1235
  %v1349 = vadd.f32 %v1004, %v1237
  %v1350 = vadd.f32 %v1005, %v1324
  %v1351 = vadd.f32 %v1006, %v1326
  %v1352 = vadd.f32 %v1007, %v1152
  %v1353 = vadd.f32 %v1008, %v1154
  %v1354 = vadd.f32 %v1009, %v1241
  %v1355 = vadd.f32 %v1010, %v1243
  %v1356 = vadd.f32 %v1011, %v1330
  %v1357 = vadd.f32 %v1012, %v1332
  %v1358 = vadd.f32 %v1013, %v1158
  %v1359 = vadd.f32 %v1014, %v1160
  %v1360 = vadd.f32 %v1015, %v1247
  %v1361 = vadd.f32 %v1016, %v1249
  %v1362 = vadd.f32 %v1017, %v1336
  %v1363 = vadd.f32 %v1018, %v1338
  %v1364 = vadd.f32 %v1019, %v1164
  %v1365 = vadd.f32 %v1020, %v1166
  %v1366 = vadd.f32 %v1021, %v1253
  %v1367 = vadd.f32 %v1022, %v1255
  %v1368 = vadd.f32 %v1023, %v1342
  %v1369 = vadd.f32 %v1024, %v1344
  %s1370 = scalar_lea.vmem %s1, 128
  %v1371 = vld [vmem:[%s1370] sm:$0xff]
  %v1372 = vld [vmem:[%s1370 + $0x8] sm:$0xff]
  %v1373 = vld [vmem:[%s1370 + $0x10] sm:$0xff]
  %v1374 = vld [vmem:[%s1370 + $0x18] sm:$0xff]
  %v1376 = vsel %vm84, %v1371, 0
  %v1379 = vsel %vm84, %v1372, 0
  %v1382 = vsel %vm84, %v1373, 0
  %v1385 = vsel %vm84, %v1374, 0
  %v1387 = vsel %vm97, %v23, 0
  %v1389 = vsel %vm97, %v29, 0
  %v1391 = vsel %vm97, %v24, 0
  %v1393 = vsel %vm97, %v30, 0
  %v1395 = vsel %vm97, %v25, 0
  %v1397 = vsel %vm97, %v31, 0
  %1399 = vmatprep.subr.mxu0 0.0
  %1400 = vmatpush1.msra.mxu0 0.0
  %1401 = vmatprep.subr.mxu0 0.0
  %1402 = vmatpush1.msra.mxu0 0.0
  %1403 = vmatprep.subr.mxu0 0.0
  %1404 = vmatpush1.msra.mxu0 0.0
  %1405 = vmatprep.subr.mxu0 0.0
  %1406 = vmatpush1.msra.mxu0 0.0
  %1407 = vmatprep.subr.mxu0 0.0
  %1408 = vmatpush1.msra.mxu0 0.0
  %1409 = vmatprep.subr.mxu0 0.0
  %1410 = vmatpush1.msra.mxu0 0.0
  %1411 = vmatprep.subr.mxu0 0.0
  %1412 = vmatpush1.msra.mxu0 0.0
  %1413 = vmatprep.subr.mxu0 0.0
  %1414 = vmatpush1.msra.mxu0 0.0
  %1415 = vmatprep.subr.mxu0 0.0
  %1416 = vmatpush1.msra.mxu0 0.0
  %1417 = vmatprep.subr.mxu0 0.0
  %1418 = vmatpush1.msra.mxu0 0.0
  %1419 = vmatprep.subr.mxu0 0.0
  %1420 = vmatpush1.msra.mxu0 0.0
  %1421 = vmatprep.subr.mxu0 0.0
  %1422 = vmatpush1.msra.mxu0 0.0
  %1423 = vmatprep.subr.mxu0 0.0
  %1424 = vmatpush1.msra.mxu0 0.0
  %1425 = vmatprep.subr.mxu0 0.0
  %1426 = vmatpush1.msra.mxu0 0.0
  %1427 = vmatprep.subr.mxu0 0.0
  %1428 = vmatpush1.msra.mxu0 0.0
  %1429 = vmatprep.subr.mxu0 %v1389
  %1430 = vmatpush1.msra.mxu0 %v1387
  %1431 = vmatprep.subr.mxu0 0.0
  %1432 = vmatpush2.msra.mxu0 0.0
  %1433 = vmatprep.subr.mxu0 0.0
  %1434 = vmatpush2.msra.mxu0 0.0
  %1435 = vmatprep.subr.mxu0 0.0
  %1436 = vmatpush2.msra.mxu0 0.0
  %1437 = vmatprep.subr.mxu0 0.0
  %1438 = vmatpush2.msra.mxu0 0.0
  %1439 = vmatprep.subr.mxu0 0.0
  %1440 = vmatpush2.msra.mxu0 0.0
  %1441 = vmatprep.subr.mxu0 0.0
  %1442 = vmatpush2.msra.mxu0 0.0
  %1443 = vmatprep.subr.mxu0 0.0
  %1444 = vmatpush2.msra.mxu0 0.0
  %1445 = vmatprep.subr.mxu0 0.0
  %1446 = vmatpush2.msra.mxu0 0.0
  %1447 = vmatprep.subr.mxu0 0.0
  %1448 = vmatpush2.msra.mxu0 0.0
  %1449 = vmatprep.subr.mxu0 0.0
  %1450 = vmatpush2.msra.mxu0 0.0
  %1451 = vmatprep.subr.mxu0 0.0
  %1452 = vmatpush2.msra.mxu0 0.0
  %1453 = vmatprep.subr.mxu0 0.0
  %1454 = vmatpush2.msra.mxu0 0.0
  %1455 = vmatprep.subr.mxu0 0.0
  %1456 = vmatpush2.msra.mxu0 0.0
  %1457 = vmatprep.subr.mxu0 0.0
  %1458 = vmatpush2.msra.mxu0 0.0
  %1459 = vmatprep.subr.mxu0 0.0
  %1460 = vmatpush2.msra.mxu0 0.0
  %1461 = vmatprep.subr.mxu0 0.0
  %1462 = vmatpush2.msra.mxu0 0.0
  %1463 = vmatprep.mubr.f32.mxu0 0.0
  %1464 = vmatmul.mubr.f32.gmra.mxu0 %v1376
  %v1465 = vpop.f32.mrf.mxu0
  %v1466 = vadd.f32 0.0, %v1465
  %v1467 = vpop.f32.mrf.mxu0
  %v1468 = vadd.f32 0.0, %v1467
  %1469 = vmatprep.mubr.f32.mxu0 0.0
  %1470 = vmatmul.mubr.f32.gmra.mxu0 %v1379
  %v1471 = vpop.f32.mrf.mxu0
  %v1472 = vadd.f32 0.0, %v1471
  %v1473 = vpop.f32.mrf.mxu0
  %v1474 = vadd.f32 0.0, %v1473
  %1475 = vmatprep.mubr.f32.mxu0 0.0
  %1476 = vmatmul.mubr.f32.gmra.mxu0 %v1382
  %v1477 = vpop.f32.mrf.mxu0
  %v1478 = vadd.f32 0.0, %v1477
  %v1479 = vpop.f32.mrf.mxu0
  %v1480 = vadd.f32 0.0, %v1479
  %1481 = vmatprep.mubr.f32.mxu0 0.0
  %1482 = vmatmul.mubr.f32.gmra.mxu0 %v1385
  %v1483 = vpop.f32.mrf.mxu0
  %v1484 = vadd.f32 0.0, %v1483
  %v1485 = vpop.f32.mrf.mxu0
  %v1486 = vadd.f32 0.0, %v1485
  %1487 = vdwg.mxu0
  %1488 = vmatprep.subr.mxu0 0.0
  %1489 = vmatpush1.msra.mxu0 0.0
  %1490 = vmatprep.subr.mxu0 0.0
  %1491 = vmatpush1.msra.mxu0 0.0
  %1492 = vmatprep.subr.mxu0 0.0
  %1493 = vmatpush1.msra.mxu0 0.0
  %1494 = vmatprep.subr.mxu0 0.0
  %1495 = vmatpush1.msra.mxu0 0.0
  %1496 = vmatprep.subr.mxu0 0.0
  %1497 = vmatpush1.msra.mxu0 0.0
  %1498 = vmatprep.subr.mxu0 0.0
  %1499 = vmatpush1.msra.mxu0 0.0
  %1500 = vmatprep.subr.mxu0 0.0
  %1501 = vmatpush1.msra.mxu0 0.0
  %1502 = vmatprep.subr.mxu0 0.0
  %1503 = vmatpush1.msra.mxu0 0.0
  %1504 = vmatprep.subr.mxu0 0.0
  %1505 = vmatpush1.msra.mxu0 0.0
  %1506 = vmatprep.subr.mxu0 0.0
  %1507 = vmatpush1.msra.mxu0 0.0
  %1508 = vmatprep.subr.mxu0 0.0
  %1509 = vmatpush1.msra.mxu0 0.0
  %1510 = vmatprep.subr.mxu0 0.0
  %1511 = vmatpush1.msra.mxu0 0.0
  %1512 = vmatprep.subr.mxu0 0.0
  %1513 = vmatpush1.msra.mxu0 0.0
  %1514 = vmatprep.subr.mxu0 0.0
  %1515 = vmatpush1.msra.mxu0 0.0
  %1516 = vmatprep.subr.mxu0 0.0
  %1517 = vmatpush1.msra.mxu0 0.0
  %1518 = vmatprep.subr.mxu0 %v1393
  %1519 = vmatpush1.msra.mxu0 %v1391
  %1520 = vmatprep.subr.mxu0 0.0
  %1521 = vmatpush2.msra.mxu0 0.0
  %1522 = vmatprep.subr.mxu0 0.0
  %1523 = vmatpush2.msra.mxu0 0.0
  %1524 = vmatprep.subr.mxu0 0.0
  %1525 = vmatpush2.msra.mxu0 0.0
  %1526 = vmatprep.subr.mxu0 0.0
  %1527 = vmatpush2.msra.mxu0 0.0
  %1528 = vmatprep.subr.mxu0 0.0
  %1529 = vmatpush2.msra.mxu0 0.0
  %1530 = vmatprep.subr.mxu0 0.0
  %1531 = vmatpush2.msra.mxu0 0.0
  %1532 = vmatprep.subr.mxu0 0.0
  %1533 = vmatpush2.msra.mxu0 0.0
  %1534 = vmatprep.subr.mxu0 0.0
  %1535 = vmatpush2.msra.mxu0 0.0
  %1536 = vmatprep.subr.mxu0 0.0
  %1537 = vmatpush2.msra.mxu0 0.0
  %1538 = vmatprep.subr.mxu0 0.0
  %1539 = vmatpush2.msra.mxu0 0.0
  %1540 = vmatprep.subr.mxu0 0.0
  %1541 = vmatpush2.msra.mxu0 0.0
  %1542 = vmatprep.subr.mxu0 0.0
  %1543 = vmatpush2.msra.mxu0 0.0
  %1544 = vmatprep.subr.mxu0 0.0
  %1545 = vmatpush2.msra.mxu0 0.0
  %1546 = vmatprep.subr.mxu0 0.0
  %1547 = vmatpush2.msra.mxu0 0.0
  %1548 = vmatprep.subr.mxu0 0.0
  %1549 = vmatpush2.msra.mxu0 0.0
  %1550 = vmatprep.subr.mxu0 0.0
  %1551 = vmatpush2.msra.mxu0 0.0
  %1552 = vmatprep.mubr.f32.mxu0 0.0
  %1553 = vmatmul.mubr.f32.gmra.mxu0 %v1376
  %v1554 = vpop.f32.mrf.mxu0
  %v1555 = vadd.f32 0.0, %v1554
  %v1556 = vpop.f32.mrf.mxu0
  %v1557 = vadd.f32 0.0, %v1556
  %1558 = vmatprep.mubr.f32.mxu0 0.0
  %1559 = vmatmul.mubr.f32.gmra.mxu0 %v1379
  %v1560 = vpop.f32.mrf.mxu0
  %v1561 = vadd.f32 0.0, %v1560
  %v1562 = vpop.f32.mrf.mxu0
  %v1563 = vadd.f32 0.0, %v1562
  %1564 = vmatprep.mubr.f32.mxu0 0.0
  %1565 = vmatmul.mubr.f32.gmra.mxu0 %v1382
  %v1566 = vpop.f32.mrf.mxu0
  %v1567 = vadd.f32 0.0, %v1566
  %v1568 = vpop.f32.mrf.mxu0
  %v1569 = vadd.f32 0.0, %v1568
  %1570 = vmatprep.mubr.f32.mxu0 0.0
  %1571 = vmatmul.mubr.f32.gmra.mxu0 %v1385
  %v1572 = vpop.f32.mrf.mxu0
  %v1573 = vadd.f32 0.0, %v1572
  %v1574 = vpop.f32.mrf.mxu0
  %v1575 = vadd.f32 0.0, %v1574
  %1576 = vdwg.mxu0
  %1577 = vmatprep.subr.mxu0 0.0
  %1578 = vmatpush1.msra.mxu0 0.0
  %1579 = vmatprep.subr.mxu0 0.0
  %1580 = vmatpush1.msra.mxu0 0.0
  %1581 = vmatprep.subr.mxu0 0.0
  %1582 = vmatpush1.msra.mxu0 0.0
  %1583 = vmatprep.subr.mxu0 0.0
  %1584 = vmatpush1.msra.mxu0 0.0
  %1585 = vmatprep.subr.mxu0 0.0
  %1586 = vmatpush1.msra.mxu0 0.0
  %1587 = vmatprep.subr.mxu0 0.0
  %1588 = vmatpush1.msra.mxu0 0.0
  %1589 = vmatprep.subr.mxu0 0.0
  %1590 = vmatpush1.msra.mxu0 0.0
  %1591 = vmatprep.subr.mxu0 0.0
  %1592 = vmatpush1.msra.mxu0 0.0
  %1593 = vmatprep.subr.mxu0 0.0
  %1594 = vmatpush1.msra.mxu0 0.0
  %1595 = vmatprep.subr.mxu0 0.0
  %1596 = vmatpush1.msra.mxu0 0.0
  %1597 = vmatprep.subr.mxu0 0.0
  %1598 = vmatpush1.msra.mxu0 0.0
  %1599 = vmatprep.subr.mxu0 0.0
  %1600 = vmatpush1.msra.mxu0 0.0
  %1601 = vmatprep.subr.mxu0 0.0
  %1602 = vmatpush1.msra.mxu0 0.0
  %1603 = vmatprep.subr.mxu0 0.0
  %1604 = vmatpush1.msra.mxu0 0.0
  %1605 = vmatprep.subr.mxu0 0.0
  %1606 = vmatpush1.msra.mxu0 0.0
  %1607 = vmatprep.subr.mxu0 %v1397
  %1608 = vmatpush1.msra.mxu0 %v1395
  %1609 = vmatprep.subr.mxu0 0.0
  %1610 = vmatpush2.msra.mxu0 0.0
  %1611 = vmatprep.subr.mxu0 0.0
  %1612 = vmatpush2.msra.mxu0 0.0
  %1613 = vmatprep.subr.mxu0 0.0
  %1614 = vmatpush2.msra.mxu0 0.0
  %1615 = vmatprep.subr.mxu0 0.0
  %1616 = vmatpush2.msra.mxu0 0.0
  %1617 = vmatprep.subr.mxu0 0.0
  %1618 = vmatpush2.msra.mxu0 0.0
  %1619 = vmatprep.subr.mxu0 0.0
  %1620 = vmatpush2.msra.mxu0 0.0
  %1621 = vmatprep.subr.mxu0 0.0
  %1622 = vmatpush2.msra.mxu0 0.0
  %1623 = vmatprep.subr.mxu0 0.0
  %1624 = vmatpush2.msra.mxu0 0.0
  %1625 = vmatprep.subr.mxu0 0.0
  %1626 = vmatpush2.msra.mxu0 0.0
  %1627 = vmatprep.subr.mxu0 0.0
  %1628 = vmatpush2.msra.mxu0 0.0
  %1629 = vmatprep.subr.mxu0 0.0
  %1630 = vmatpush2.msra.mxu0 0.0
  %1631 = vmatprep.subr.mxu0 0.0
  %1632 = vmatpush2.msra.mxu0 0.0
  %1633 = vmatprep.subr.mxu0 0.0
  %1634 = vmatpush2.msra.mxu0 0.0
  %1635 = vmatprep.subr.mxu0 0.0
  %1636 = vmatpush2.msra.mxu0 0.0
  %1637 = vmatprep.subr.mxu0 0.0
  %1638 = vmatpush2.msra.mxu0 0.0
  %1639 = vmatprep.subr.mxu0 0.0
  %1640 = vmatpush2.msra.mxu0 0.0
  %1641 = vmatprep.mubr.f32.mxu0 0.0
  %1642 = vmatmul.mubr.f32.gmra.mxu0 %v1376
  %v1643 = vpop.f32.mrf.mxu0
  %v1644 = vadd.f32 0.0, %v1643
  %v1645 = vpop.f32.mrf.mxu0
  %v1646 = vadd.f32 0.0, %v1645
  %1647 = vmatprep.mubr.f32.mxu0 0.0
  %1648 = vmatmul.mubr.f32.gmra.mxu0 %v1379
  %v1649 = vpop.f32.mrf.mxu0
  %v1650 = vadd.f32 0.0, %v1649
  %v1651 = vpop.f32.mrf.mxu0
  %v1652 = vadd.f32 0.0, %v1651
  %1653 = vmatprep.mubr.f32.mxu0 0.0
  %1654 = vmatmul.mubr.f32.gmra.mxu0 %v1382
  %v1655 = vpop.f32.mrf.mxu0
  %v1656 = vadd.f32 0.0, %v1655
  %v1657 = vpop.f32.mrf.mxu0
  %v1658 = vadd.f32 0.0, %v1657
  %1659 = vmatprep.mubr.f32.mxu0 0.0
  %1660 = vmatmul.mubr.f32.gmra.mxu0 %v1385
  %v1661 = vpop.f32.mrf.mxu0
  %v1662 = vadd.f32 0.0, %v1661
  %v1663 = vpop.f32.mrf.mxu0
  %v1664 = vadd.f32 0.0, %v1663
  %1665 = vdwg.mxu0
  %v1666 = vadd.f32 %v1346, %v1466
  %v1667 = vadd.f32 %v1347, %v1468
  %v1668 = vadd.f32 %v1348, %v1555
  %v1669 = vadd.f32 %v1349, %v1557
  %v1670 = vadd.f32 %v1350, %v1644
  %v1671 = vadd.f32 %v1351, %v1646
  %v1672 = vadd.f32 %v1352, %v1472
  %v1673 = vadd.f32 %v1353, %v1474
  %v1674 = vadd.f32 %v1354, %v1561
  %v1675 = vadd.f32 %v1355, %v1563
  %v1676 = vadd.f32 %v1356, %v1650
  %v1677 = vadd.f32 %v1357, %v1652
  %v1678 = vadd.f32 %v1358, %v1478
  %v1679 = vadd.f32 %v1359, %v1480
  %v1680 = vadd.f32 %v1360, %v1567
  %v1681 = vadd.f32 %v1361, %v1569
  %v1682 = vadd.f32 %v1362, %v1656
  %v1683 = vadd.f32 %v1363, %v1658
  %v1684 = vadd.f32 %v1364, %v1484
  %v1685 = vadd.f32 %v1365, %v1486
  %v1686 = vadd.f32 %v1366, %v1573
  %v1687 = vadd.f32 %v1367, %v1575
  %v1688 = vadd.f32 %v1368, %v1662
  %v1689 = vadd.f32 %v1369, %v1664
  %1690 = vrot.lane.b32.xlu0 %v23, 127
  %v1691 = vpop.permute.xlu0 %1690
  %1692 = vrot.lane.b32.xlu0 %v29, 127
  %v1693 = vpop.permute.xlu0 %1692
  %1694 = vrot.lane.b32.xlu0 %v24, 127
  %v1695 = vpop.permute.xlu0 %1694
  %1696 = vrot.lane.b32.xlu0 %v30, 127
  %v1697 = vpop.permute.xlu0 %1696
  %1698 = vrot.lane.b32.xlu0 %v25, 127
  %v1699 = vpop.permute.xlu0 %1698
  %1700 = vrot.lane.b32.xlu0 %v31, 127
  %v1701 = vpop.permute.xlu0 %1700
  %vm1702 = vcmp.lt.s32.totalorder %v48, 127
  %v1703 = vsel %vm1702, %v1699, %v1701
  %v1704 = vsel %vm1702, %v1697, %v1699
  %v1705 = vsel %vm1702, %v1695, %v1697
  %v1706 = vsel %vm1702, %v1693, %v1695
  %v1707 = vsel %vm1702, %v1691, %v1693
  %v1708 = vsel %vm1702, %v1701, %v1691
  %s1709 = scalar_lea.vmem %s1, 160
  %v1710 = vld [vmem:[%s1709] sm:$0xff]
  %v1711 = vld [vmem:[%s1709 + $0x8] sm:$0xff]
  %v1712 = vld [vmem:[%s1709 + $0x10] sm:$0xff]
  %v1713 = vld [vmem:[%s1709 + $0x18] sm:$0xff]
  %v1715 = vsel %vm84, %v1710, 0
  %v1718 = vsel %vm84, %v1711, 0
  %v1721 = vsel %vm84, %v1712, 0
  %v1724 = vsel %vm84, %v1713, 0
  %v1727 = vsel %vm97, %v1707, 0
  %v1730 = vsel %vm97, %v1706, 0
  %v1733 = vsel %vm97, %v1705, 0
  %v1736 = vsel %vm97, %v1704, 0
  %v1739 = vsel %vm97, %v1703, 0
  %v1742 = vsel %vm97, %v1708, 0
  %1744 = vmatprep.subr.mxu0 0.0
  %1745 = vmatpush1.msra.mxu0 0.0
  %1746 = vmatprep.subr.mxu0 0.0
  %1747 = vmatpush1.msra.mxu0 0.0
  %1748 = vmatprep.subr.mxu0 0.0
  %1749 = vmatpush1.msra.mxu0 0.0
  %1750 = vmatprep.subr.mxu0 0.0
  %1751 = vmatpush1.msra.mxu0 0.0
  %1752 = vmatprep.subr.mxu0 0.0
  %1753 = vmatpush1.msra.mxu0 0.0
  %1754 = vmatprep.subr.mxu0 0.0
  %1755 = vmatpush1.msra.mxu0 0.0
  %1756 = vmatprep.subr.mxu0 0.0
  %1757 = vmatpush1.msra.mxu0 0.0
  %1758 = vmatprep.subr.mxu0 0.0
  %1759 = vmatpush1.msra.mxu0 0.0
  %1760 = vmatprep.subr.mxu0 0.0
  %1761 = vmatpush1.msra.mxu0 0.0
  %1762 = vmatprep.subr.mxu0 0.0
  %1763 = vmatpush1.msra.mxu0 0.0
  %1764 = vmatprep.subr.mxu0 0.0
  %1765 = vmatpush1.msra.mxu0 0.0
  %1766 = vmatprep.subr.mxu0 0.0
  %1767 = vmatpush1.msra.mxu0 0.0
  %1768 = vmatprep.subr.mxu0 0.0
  %1769 = vmatpush1.msra.mxu0 0.0
  %1770 = vmatprep.subr.mxu0 0.0
  %1771 = vmatpush1.msra.mxu0 0.0
  %1772 = vmatprep.subr.mxu0 0.0
  %1773 = vmatpush1.msra.mxu0 0.0
  %1774 = vmatprep.subr.mxu0 %v1730
  %1775 = vmatpush1.msra.mxu0 %v1727
  %1776 = vmatprep.subr.mxu0 0.0
  %1777 = vmatpush2.msra.mxu0 0.0
  %1778 = vmatprep.subr.mxu0 0.0
  %1779 = vmatpush2.msra.mxu0 0.0
  %1780 = vmatprep.subr.mxu0 0.0
  %1781 = vmatpush2.msra.mxu0 0.0
  %1782 = vmatprep.subr.mxu0 0.0
  %1783 = vmatpush2.msra.mxu0 0.0
  %1784 = vmatprep.subr.mxu0 0.0
  %1785 = vmatpush2.msra.mxu0 0.0
  %1786 = vmatprep.subr.mxu0 0.0
  %1787 = vmatpush2.msra.mxu0 0.0
  %1788 = vmatprep.subr.mxu0 0.0
  %1789 = vmatpush2.msra.mxu0 0.0
  %1790 = vmatprep.subr.mxu0 0.0
  %1791 = vmatpush2.msra.mxu0 0.0
  %1792 = vmatprep.subr.mxu0 0.0
  %1793 = vmatpush2.msra.mxu0 0.0
  %1794 = vmatprep.subr.mxu0 0.0
  %1795 = vmatpush2.msra.mxu0 0.0
  %1796 = vmatprep.subr.mxu0 0.0
  %1797 = vmatpush2.msra.mxu0 0.0
  %1798 = vmatprep.subr.mxu0 0.0
  %1799 = vmatpush2.msra.mxu0 0.0
  %1800 = vmatprep.subr.mxu0 0.0
  %1801 = vmatpush2.msra.mxu0 0.0
  %1802 = vmatprep.subr.mxu0 0.0
  %1803 = vmatpush2.msra.mxu0 0.0
  %1804 = vmatprep.subr.mxu0 0.0
  %1805 = vmatpush2.msra.mxu0 0.0
  %1806 = vmatprep.subr.mxu0 0.0
  %1807 = vmatpush2.msra.mxu0 0.0
  %1808 = vmatprep.mubr.f32.mxu0 0.0
  %1809 = vmatmul.mubr.f32.gmra.mxu0 %v1715
  %v1810 = vpop.f32.mrf.mxu0
  %v1811 = vadd.f32 0.0, %v1810
  %v1812 = vpop.f32.mrf.mxu0
  %v1813 = vadd.f32 0.0, %v1812
  %1814 = vmatprep.mubr.f32.mxu0 0.0
  %1815 = vmatmul.mubr.f32.gmra.mxu0 %v1718
  %v1816 = vpop.f32.mrf.mxu0
  %v1817 = vadd.f32 0.0, %v1816
  %v1818 = vpop.f32.mrf.mxu0
  %v1819 = vadd.f32 0.0, %v1818
  %1820 = vmatprep.mubr.f32.mxu0 0.0
  %1821 = vmatmul.mubr.f32.gmra.mxu0 %v1721
  %v1822 = vpop.f32.mrf.mxu0
  %v1823 = vadd.f32 0.0, %v1822
  %v1824 = vpop.f32.mrf.mxu0
  %v1825 = vadd.f32 0.0, %v1824
  %1826 = vmatprep.mubr.f32.mxu0 0.0
  %1827 = vmatmul.mubr.f32.gmra.mxu0 %v1724
  %v1828 = vpop.f32.mrf.mxu0
  %v1829 = vadd.f32 0.0, %v1828
  %v1830 = vpop.f32.mrf.mxu0
  %v1831 = vadd.f32 0.0, %v1830
  %1832 = vdwg.mxu0
  %1833 = vmatprep.subr.mxu0 0.0
  %1834 = vmatpush1.msra.mxu0 0.0
  %1835 = vmatprep.subr.mxu0 0.0
  %1836 = vmatpush1.msra.mxu0 0.0
  %1837 = vmatprep.subr.mxu0 0.0
  %1838 = vmatpush1.msra.mxu0 0.0
  %1839 = vmatprep.subr.mxu0 0.0
  %1840 = vmatpush1.msra.mxu0 0.0
  %1841 = vmatprep.subr.mxu0 0.0
  %1842 = vmatpush1.msra.mxu0 0.0
  %1843 = vmatprep.subr.mxu0 0.0
  %1844 = vmatpush1.msra.mxu0 0.0
  %1845 = vmatprep.subr.mxu0 0.0
  %1846 = vmatpush1.msra.mxu0 0.0
  %1847 = vmatprep.subr.mxu0 0.0
  %1848 = vmatpush1.msra.mxu0 0.0
  %1849 = vmatprep.subr.mxu0 0.0
  %1850 = vmatpush1.msra.mxu0 0.0
  %1851 = vmatprep.subr.mxu0 0.0
  %1852 = vmatpush1.msra.mxu0 0.0
  %1853 = vmatprep.subr.mxu0 0.0
  %1854 = vmatpush1.msra.mxu0 0.0
  %1855 = vmatprep.subr.mxu0 0.0
  %1856 = vmatpush1.msra.mxu0 0.0
  %1857 = vmatprep.subr.mxu0 0.0
  %1858 = vmatpush1.msra.mxu0 0.0
  %1859 = vmatprep.subr.mxu0 0.0
  %1860 = vmatpush1.msra.mxu0 0.0
  %1861 = vmatprep.subr.mxu0 0.0
  %1862 = vmatpush1.msra.mxu0 0.0
  %1863 = vmatprep.subr.mxu0 %v1736
  %1864 = vmatpush1.msra.mxu0 %v1733
  %1865 = vmatprep.subr.mxu0 0.0
  %1866 = vmatpush2.msra.mxu0 0.0
  %1867 = vmatprep.subr.mxu0 0.0
  %1868 = vmatpush2.msra.mxu0 0.0
  %1869 = vmatprep.subr.mxu0 0.0
  %1870 = vmatpush2.msra.mxu0 0.0
  %1871 = vmatprep.subr.mxu0 0.0
  %1872 = vmatpush2.msra.mxu0 0.0
  %1873 = vmatprep.subr.mxu0 0.0
  %1874 = vmatpush2.msra.mxu0 0.0
  %1875 = vmatprep.subr.mxu0 0.0
  %1876 = vmatpush2.msra.mxu0 0.0
  %1877 = vmatprep.subr.mxu0 0.0
  %1878 = vmatpush2.msra.mxu0 0.0
  %1879 = vmatprep.subr.mxu0 0.0
  %1880 = vmatpush2.msra.mxu0 0.0
  %1881 = vmatprep.subr.mxu0 0.0
  %1882 = vmatpush2.msra.mxu0 0.0
  %1883 = vmatprep.subr.mxu0 0.0
  %1884 = vmatpush2.msra.mxu0 0.0
  %1885 = vmatprep.subr.mxu0 0.0
  %1886 = vmatpush2.msra.mxu0 0.0
  %1887 = vmatprep.subr.mxu0 0.0
  %1888 = vmatpush2.msra.mxu0 0.0
  %1889 = vmatprep.subr.mxu0 0.0
  %1890 = vmatpush2.msra.mxu0 0.0
  %1891 = vmatprep.subr.mxu0 0.0
  %1892 = vmatpush2.msra.mxu0 0.0
  %1893 = vmatprep.subr.mxu0 0.0
  %1894 = vmatpush2.msra.mxu0 0.0
  %1895 = vmatprep.subr.mxu0 0.0
  %1896 = vmatpush2.msra.mxu0 0.0
  %1897 = vmatprep.mubr.f32.mxu0 0.0
  %1898 = vmatmul.mubr.f32.gmra.mxu0 %v1715
  %v1899 = vpop.f32.mrf.mxu0
  %v1900 = vadd.f32 0.0, %v1899
  %v1901 = vpop.f32.mrf.mxu0
  %v1902 = vadd.f32 0.0, %v1901
  %1903 = vmatprep.mubr.f32.mxu0 0.0
  %1904 = vmatmul.mubr.f32.gmra.mxu0 %v1718
  %v1905 = vpop.f32.mrf.mxu0
  %v1906 = vadd.f32 0.0, %v1905
  %v1907 = vpop.f32.mrf.mxu0
  %v1908 = vadd.f32 0.0, %v1907
  %1909 = vmatprep.mubr.f32.mxu0 0.0
  %1910 = vmatmul.mubr.f32.gmra.mxu0 %v1721
  %v1911 = vpop.f32.mrf.mxu0
  %v1912 = vadd.f32 0.0, %v1911
  %v1913 = vpop.f32.mrf.mxu0
  %v1914 = vadd.f32 0.0, %v1913
  %1915 = vmatprep.mubr.f32.mxu0 0.0
  %1916 = vmatmul.mubr.f32.gmra.mxu0 %v1724
  %v1917 = vpop.f32.mrf.mxu0
  %v1918 = vadd.f32 0.0, %v1917
  %v1919 = vpop.f32.mrf.mxu0
  %v1920 = vadd.f32 0.0, %v1919
  %1921 = vdwg.mxu0
  %1922 = vmatprep.subr.mxu0 0.0
  %1923 = vmatpush1.msra.mxu0 0.0
  %1924 = vmatprep.subr.mxu0 0.0
  %1925 = vmatpush1.msra.mxu0 0.0
  %1926 = vmatprep.subr.mxu0 0.0
  %1927 = vmatpush1.msra.mxu0 0.0
  %1928 = vmatprep.subr.mxu0 0.0
  %1929 = vmatpush1.msra.mxu0 0.0
  %1930 = vmatprep.subr.mxu0 0.0
  %1931 = vmatpush1.msra.mxu0 0.0
  %1932 = vmatprep.subr.mxu0 0.0
  %1933 = vmatpush1.msra.mxu0 0.0
  %1934 = vmatprep.subr.mxu0 0.0
  %1935 = vmatpush1.msra.mxu0 0.0
  %1936 = vmatprep.subr.mxu0 0.0
  %1937 = vmatpush1.msra.mxu0 0.0
  %1938 = vmatprep.subr.mxu0 0.0
  %1939 = vmatpush1.msra.mxu0 0.0
  %1940 = vmatprep.subr.mxu0 0.0
  %1941 = vmatpush1.msra.mxu0 0.0
  %1942 = vmatprep.subr.mxu0 0.0
  %1943 = vmatpush1.msra.mxu0 0.0
  %1944 = vmatprep.subr.mxu0 0.0
  %1945 = vmatpush1.msra.mxu0 0.0
  %1946 = vmatprep.subr.mxu0 0.0
  %1947 = vmatpush1.msra.mxu0 0.0
  %1948 = vmatprep.subr.mxu0 0.0
  %1949 = vmatpush1.msra.mxu0 0.0
  %1950 = vmatprep.subr.mxu0 0.0
  %1951 = vmatpush1.msra.mxu0 0.0
  %1952 = vmatprep.subr.mxu0 %v1742
  %1953 = vmatpush1.msra.mxu0 %v1739
  %1954 = vmatprep.subr.mxu0 0.0
  %1955 = vmatpush2.msra.mxu0 0.0
  %1956 = vmatprep.subr.mxu0 0.0
  %1957 = vmatpush2.msra.mxu0 0.0
  %1958 = vmatprep.subr.mxu0 0.0
  %1959 = vmatpush2.msra.mxu0 0.0
  %1960 = vmatprep.subr.mxu0 0.0
  %1961 = vmatpush2.msra.mxu0 0.0
  %1962 = vmatprep.subr.mxu0 0.0
  %1963 = vmatpush2.msra.mxu0 0.0
  %1964 = vmatprep.subr.mxu0 0.0
  %1965 = vmatpush2.msra.mxu0 0.0
  %1966 = vmatprep.subr.mxu0 0.0
  %1967 = vmatpush2.msra.mxu0 0.0
  %1968 = vmatprep.subr.mxu0 0.0
  %1969 = vmatpush2.msra.mxu0 0.0
  %1970 = vmatprep.subr.mxu0 0.0
  %1971 = vmatpush2.msra.mxu0 0.0
  %1972 = vmatprep.subr.mxu0 0.0
  %1973 = vmatpush2.msra.mxu0 0.0
  %1974 = vmatprep.subr.mxu0 0.0
  %1975 = vmatpush2.msra.mxu0 0.0
  %1976 = vmatprep.subr.mxu0 0.0
  %1977 = vmatpush2.msra.mxu0 0.0
  %1978 = vmatprep.subr.mxu0 0.0
  %1979 = vmatpush2.msra.mxu0 0.0
  %1980 = vmatprep.subr.mxu0 0.0
  %1981 = vmatpush2.msra.mxu0 0.0
  %1982 = vmatprep.subr.mxu0 0.0
  %1983 = vmatpush2.msra.mxu0 0.0
  %1984 = vmatprep.subr.mxu0 0.0
  %1985 = vmatpush2.msra.mxu0 0.0
  %1986 = vmatprep.mubr.f32.mxu0 0.0
  %1987 = vmatmul.mubr.f32.gmra.mxu0 %v1715
  %v1988 = vpop.f32.mrf.mxu0
  %v1989 = vadd.f32 0.0, %v1988
  %v1990 = vpop.f32.mrf.mxu0
  %v1991 = vadd.f32 0.0, %v1990
  %1992 = vmatprep.mubr.f32.mxu0 0.0
  %1993 = vmatmul.mubr.f32.gmra.mxu0 %v1718
  %v1994 = vpop.f32.mrf.mxu0
  %v1995 = vadd.f32 0.0, %v1994
  %v1996 = vpop.f32.mrf.mxu0
  %v1997 = vadd.f32 0.0, %v1996
  %1998 = vmatprep.mubr.f32.mxu0 0.0
  %1999 = vmatmul.mubr.f32.gmra.mxu0 %v1721
  %v2000 = vpop.f32.mrf.mxu0
  %v2001 = vadd.f32 0.0, %v2000
  %v2002 = vpop.f32.mrf.mxu0
  %v2003 = vadd.f32 0.0, %v2002
  %2004 = vmatprep.mubr.f32.mxu0 0.0
  %2005 = vmatmul.mubr.f32.gmra.mxu0 %v1724
  %v2006 = vpop.f32.mrf.mxu0
  %v2007 = vadd.f32 0.0, %v2006
  %v2008 = vpop.f32.mrf.mxu0
  %v2009 = vadd.f32 0.0, %v2008
  %2010 = vdwg.mxu0
  %v2011 = vadd.f32 %v1666, %v1811
  %v2012 = vadd.f32 %v1667, %v1813
  %v2013 = vadd.f32 %v1668, %v1900
  %v2014 = vadd.f32 %v1669, %v1902
  %v2015 = vadd.f32 %v1670, %v1989
  %v2016 = vadd.f32 %v1671, %v1991
  %v2017 = vadd.f32 %v1672, %v1817
  %v2018 = vadd.f32 %v1673, %v1819
  %v2019 = vadd.f32 %v1674, %v1906
  %v2020 = vadd.f32 %v1675, %v1908
  %v2021 = vadd.f32 %v1676, %v1995
  %v2022 = vadd.f32 %v1677, %v1997
  %v2023 = vadd.f32 %v1678, %v1823
  %v2024 = vadd.f32 %v1679, %v1825
  %v2025 = vadd.f32 %v1680, %v1912
  %v2026 = vadd.f32 %v1681, %v1914
  %v2027 = vadd.f32 %v1682, %v2001
  %v2028 = vadd.f32 %v1683, %v2003
  %v2029 = vadd.f32 %v1684, %v1829
  %v2030 = vadd.f32 %v1685, %v1831
  %v2031 = vadd.f32 %v1686, %v1918
  %v2032 = vadd.f32 %v1687, %v1920
  %v2033 = vadd.f32 %v1688, %v2007
  %v2034 = vadd.f32 %v1689, %v2009
  %2035 = vrot.lane.b32.xlu0 %v23, 111
  %v2036 = vpop.permute.xlu0 %2035
  %2037 = vrot.lane.b32.xlu0 %v29, 111
  %v2038 = vpop.permute.xlu0 %2037
  %2039 = vrot.lane.b32.xlu0 %v24, 111
  %v2040 = vpop.permute.xlu0 %2039
  %2041 = vrot.lane.b32.xlu0 %v30, 111
  %v2042 = vpop.permute.xlu0 %2041
  %2043 = vrot.lane.b32.xlu0 %v25, 111
  %v2044 = vpop.permute.xlu0 %2043
  %2045 = vrot.lane.b32.xlu0 %v31, 111
  %v2046 = vpop.permute.xlu0 %2045
  %vm2047 = vcmp.lt.s32.totalorder %v48, 111
  %v2048 = vsel %vm2047, %v2044, %v2046
  %v2049 = vsel %vm2047, %v2042, %v2044
  %v2050 = vsel %vm2047, %v2040, %v2042
  %v2051 = vsel %vm2047, %v2038, %v2040
  %v2052 = vsel %vm2047, %v2036, %v2038
  %v2053 = vsel %vm2047, %v2046, %v2036
  %s2054 = scalar_lea.vmem %s1, 192
  %v2055 = vld [vmem:[%s2054] sm:$0xff]
  %v2056 = vld [vmem:[%s2054 + $0x8] sm:$0xff]
  %v2057 = vld [vmem:[%s2054 + $0x10] sm:$0xff]
  %v2058 = vld [vmem:[%s2054 + $0x18] sm:$0xff]
  %v2060 = vsel %vm84, %v2055, 0
  %v2063 = vsel %vm84, %v2056, 0
  %v2066 = vsel %vm84, %v2057, 0
  %v2069 = vsel %vm84, %v2058, 0
  %v2072 = vsel %vm97, %v2052, 0
  %v2075 = vsel %vm97, %v2051, 0
  %v2078 = vsel %vm97, %v2050, 0
  %v2081 = vsel %vm97, %v2049, 0
  %v2084 = vsel %vm97, %v2048, 0
  %v2087 = vsel %vm97, %v2053, 0
  %2089 = vmatprep.subr.mxu0 0.0
  %2090 = vmatpush1.msra.mxu0 0.0
  %2091 = vmatprep.subr.mxu0 0.0
  %2092 = vmatpush1.msra.mxu0 0.0
  %2093 = vmatprep.subr.mxu0 0.0
  %2094 = vmatpush1.msra.mxu0 0.0
  %2095 = vmatprep.subr.mxu0 0.0
  %2096 = vmatpush1.msra.mxu0 0.0
  %2097 = vmatprep.subr.mxu0 0.0
  %2098 = vmatpush1.msra.mxu0 0.0
  %2099 = vmatprep.subr.mxu0 0.0
  %2100 = vmatpush1.msra.mxu0 0.0
  %2101 = vmatprep.subr.mxu0 0.0
  %2102 = vmatpush1.msra.mxu0 0.0
  %2103 = vmatprep.subr.mxu0 0.0
  %2104 = vmatpush1.msra.mxu0 0.0
  %2105 = vmatprep.subr.mxu0 0.0
  %2106 = vmatpush1.msra.mxu0 0.0
  %2107 = vmatprep.subr.mxu0 0.0
  %2108 = vmatpush1.msra.mxu0 0.0
  %2109 = vmatprep.subr.mxu0 0.0
  %2110 = vmatpush1.msra.mxu0 0.0
  %2111 = vmatprep.subr.mxu0 0.0
  %2112 = vmatpush1.msra.mxu0 0.0
  %2113 = vmatprep.subr.mxu0 0.0
  %2114 = vmatpush1.msra.mxu0 0.0
  %2115 = vmatprep.subr.mxu0 0.0
  %2116 = vmatpush1.msra.mxu0 0.0
  %2117 = vmatprep.subr.mxu0 0.0
  %2118 = vmatpush1.msra.mxu0 0.0
  %2119 = vmatprep.subr.mxu0 %v2075
  %2120 = vmatpush1.msra.mxu0 %v2072
  %2121 = vmatprep.subr.mxu0 0.0
  %2122 = vmatpush2.msra.mxu0 0.0
  %2123 = vmatprep.subr.mxu0 0.0
  %2124 = vmatpush2.msra.mxu0 0.0
  %2125 = vmatprep.subr.mxu0 0.0
  %2126 = vmatpush2.msra.mxu0 0.0
  %2127 = vmatprep.subr.mxu0 0.0
  %2128 = vmatpush2.msra.mxu0 0.0
  %2129 = vmatprep.subr.mxu0 0.0
  %2130 = vmatpush2.msra.mxu0 0.0
  %2131 = vmatprep.subr.mxu0 0.0
  %2132 = vmatpush2.msra.mxu0 0.0
  %2133 = vmatprep.subr.mxu0 0.0
  %2134 = vmatpush2.msra.mxu0 0.0
  %2135 = vmatprep.subr.mxu0 0.0
  %2136 = vmatpush2.msra.mxu0 0.0
  %2137 = vmatprep.subr.mxu0 0.0
  %2138 = vmatpush2.msra.mxu0 0.0
  %2139 = vmatprep.subr.mxu0 0.0
  %2140 = vmatpush2.msra.mxu0 0.0
  %2141 = vmatprep.subr.mxu0 0.0
  %2142 = vmatpush2.msra.mxu0 0.0
  %2143 = vmatprep.subr.mxu0 0.0
  %2144 = vmatpush2.msra.mxu0 0.0
  %2145 = vmatprep.subr.mxu0 0.0
  %2146 = vmatpush2.msra.mxu0 0.0
  %2147 = vmatprep.subr.mxu0 0.0
  %2148 = vmatpush2.msra.mxu0 0.0
  %2149 = vmatprep.subr.mxu0 0.0
  %2150 = vmatpush2.msra.mxu0 0.0
  %2151 = vmatprep.subr.mxu0 0.0
  %2152 = vmatpush2.msra.mxu0 0.0
  %2153 = vmatprep.mubr.f32.mxu0 0.0
  %2154 = vmatmul.mubr.f32.gmra.mxu0 %v2060
  %v2155 = vpop.f32.mrf.mxu0
  %v2156 = vadd.f32 0.0, %v2155
  %v2157 = vpop.f32.mrf.mxu0
  %v2158 = vadd.f32 0.0, %v2157
  %2159 = vmatprep.mubr.f32.mxu0 0.0
  %2160 = vmatmul.mubr.f32.gmra.mxu0 %v2063
  %v2161 = vpop.f32.mrf.mxu0
  %v2162 = vadd.f32 0.0, %v2161
  %v2163 = vpop.f32.mrf.mxu0
  %v2164 = vadd.f32 0.0, %v2163
  %2165 = vmatprep.mubr.f32.mxu0 0.0
  %2166 = vmatmul.mubr.f32.gmra.mxu0 %v2066
  %v2167 = vpop.f32.mrf.mxu0
  %v2168 = vadd.f32 0.0, %v2167
  %v2169 = vpop.f32.mrf.mxu0
  %v2170 = vadd.f32 0.0, %v2169
  %2171 = vmatprep.mubr.f32.mxu0 0.0
  %2172 = vmatmul.mubr.f32.gmra.mxu0 %v2069
  %v2173 = vpop.f32.mrf.mxu0
  %v2174 = vadd.f32 0.0, %v2173
  %v2175 = vpop.f32.mrf.mxu0
  %v2176 = vadd.f32 0.0, %v2175
  %2177 = vdwg.mxu0
  %2178 = vmatprep.subr.mxu0 0.0
  %2179 = vmatpush1.msra.mxu0 0.0
  %2180 = vmatprep.subr.mxu0 0.0
  %2181 = vmatpush1.msra.mxu0 0.0
  %2182 = vmatprep.subr.mxu0 0.0
  %2183 = vmatpush1.msra.mxu0 0.0
  %2184 = vmatprep.subr.mxu0 0.0
  %2185 = vmatpush1.msra.mxu0 0.0
  %2186 = vmatprep.subr.mxu0 0.0
  %2187 = vmatpush1.msra.mxu0 0.0
  %2188 = vmatprep.subr.mxu0 0.0
  %2189 = vmatpush1.msra.mxu0 0.0
  %2190 = vmatprep.subr.mxu0 0.0
  %2191 = vmatpush1.msra.mxu0 0.0
  %2192 = vmatprep.subr.mxu0 0.0
  %2193 = vmatpush1.msra.mxu0 0.0
  %2194 = vmatprep.subr.mxu0 0.0
  %2195 = vmatpush1.msra.mxu0 0.0
  %2196 = vmatprep.subr.mxu0 0.0
  %2197 = vmatpush1.msra.mxu0 0.0
  %2198 = vmatprep.subr.mxu0 0.0
  %2199 = vmatpush1.msra.mxu0 0.0
  %2200 = vmatprep.subr.mxu0 0.0
  %2201 = vmatpush1.msra.mxu0 0.0
  %2202 = vmatprep.subr.mxu0 0.0
  %2203 = vmatpush1.msra.mxu0 0.0
  %2204 = vmatprep.subr.mxu0 0.0
  %2205 = vmatpush1.msra.mxu0 0.0
  %2206 = vmatprep.subr.mxu0 0.0
  %2207 = vmatpush1.msra.mxu0 0.0
  %2208 = vmatprep.subr.mxu0 %v2081
  %2209 = vmatpush1.msra.mxu0 %v2078
  %2210 = vmatprep.subr.mxu0 0.0
  %2211 = vmatpush2.msra.mxu0 0.0
  %2212 = vmatprep.subr.mxu0 0.0
  %2213 = vmatpush2.msra.mxu0 0.0
  %2214 = vmatprep.subr.mxu0 0.0
  %2215 = vmatpush2.msra.mxu0 0.0
  %2216 = vmatprep.subr.mxu0 0.0
  %2217 = vmatpush2.msra.mxu0 0.0
  %2218 = vmatprep.subr.mxu0 0.0
  %2219 = vmatpush2.msra.mxu0 0.0
  %2220 = vmatprep.subr.mxu0 0.0
  %2221 = vmatpush2.msra.mxu0 0.0
  %2222 = vmatprep.subr.mxu0 0.0
  %2223 = vmatpush2.msra.mxu0 0.0
  %2224 = vmatprep.subr.mxu0 0.0
  %2225 = vmatpush2.msra.mxu0 0.0
  %2226 = vmatprep.subr.mxu0 0.0
  %2227 = vmatpush2.msra.mxu0 0.0
  %2228 = vmatprep.subr.mxu0 0.0
  %2229 = vmatpush2.msra.mxu0 0.0
  %2230 = vmatprep.subr.mxu0 0.0
  %2231 = vmatpush2.msra.mxu0 0.0
  %2232 = vmatprep.subr.mxu0 0.0
  %2233 = vmatpush2.msra.mxu0 0.0
  %2234 = vmatprep.subr.mxu0 0.0
  %2235 = vmatpush2.msra.mxu0 0.0
  %2236 = vmatprep.subr.mxu0 0.0
  %2237 = vmatpush2.msra.mxu0 0.0
  %2238 = vmatprep.subr.mxu0 0.0
  %2239 = vmatpush2.msra.mxu0 0.0
  %2240 = vmatprep.subr.mxu0 0.0
  %2241 = vmatpush2.msra.mxu0 0.0
  %2242 = vmatprep.mubr.f32.mxu0 0.0
  %2243 = vmatmul.mubr.f32.gmra.mxu0 %v2060
  %v2244 = vpop.f32.mrf.mxu0
  %v2245 = vadd.f32 0.0, %v2244
  %v2246 = vpop.f32.mrf.mxu0
  %v2247 = vadd.f32 0.0, %v2246
  %2248 = vmatprep.mubr.f32.mxu0 0.0
  %2249 = vmatmul.mubr.f32.gmra.mxu0 %v2063
  %v2250 = vpop.f32.mrf.mxu0
  %v2251 = vadd.f32 0.0, %v2250
  %v2252 = vpop.f32.mrf.mxu0
  %v2253 = vadd.f32 0.0, %v2252
  %2254 = vmatprep.mubr.f32.mxu0 0.0
  %2255 = vmatmul.mubr.f32.gmra.mxu0 %v2066
  %v2256 = vpop.f32.mrf.mxu0
  %v2257 = vadd.f32 0.0, %v2256
  %v2258 = vpop.f32.mrf.mxu0
  %v2259 = vadd.f32 0.0, %v2258
  %2260 = vmatprep.mubr.f32.mxu0 0.0
  %2261 = vmatmul.mubr.f32.gmra.mxu0 %v2069
  %v2262 = vpop.f32.mrf.mxu0
  %v2263 = vadd.f32 0.0, %v2262
  %v2264 = vpop.f32.mrf.mxu0
  %v2265 = vadd.f32 0.0, %v2264
  %2266 = vdwg.mxu0
  %2267 = vmatprep.subr.mxu0 0.0
  %2268 = vmatpush1.msra.mxu0 0.0
  %2269 = vmatprep.subr.mxu0 0.0
  %2270 = vmatpush1.msra.mxu0 0.0
  %2271 = vmatprep.subr.mxu0 0.0
  %2272 = vmatpush1.msra.mxu0 0.0
  %2273 = vmatprep.subr.mxu0 0.0
  %2274 = vmatpush1.msra.mxu0 0.0
  %2275 = vmatprep.subr.mxu0 0.0
  %2276 = vmatpush1.msra.mxu0 0.0
  %2277 = vmatprep.subr.mxu0 0.0
  %2278 = vmatpush1.msra.mxu0 0.0
  %2279 = vmatprep.subr.mxu0 0.0
  %2280 = vmatpush1.msra.mxu0 0.0
  %2281 = vmatprep.subr.mxu0 0.0
  %2282 = vmatpush1.msra.mxu0 0.0
  %2283 = vmatprep.subr.mxu0 0.0
  %2284 = vmatpush1.msra.mxu0 0.0
  %2285 = vmatprep.subr.mxu0 0.0
  %2286 = vmatpush1.msra.mxu0 0.0
  %2287 = vmatprep.subr.mxu0 0.0
  %2288 = vmatpush1.msra.mxu0 0.0
  %2289 = vmatprep.subr.mxu0 0.0
  %2290 = vmatpush1.msra.mxu0 0.0
  %2291 = vmatprep.subr.mxu0 0.0
  %2292 = vmatpush1.msra.mxu0 0.0
  %2293 = vmatprep.subr.mxu0 0.0
  %2294 = vmatpush1.msra.mxu0 0.0
  %2295 = vmatprep.subr.mxu0 0.0
  %2296 = vmatpush1.msra.mxu0 0.0
  %2297 = vmatprep.subr.mxu0 %v2087
  %2298 = vmatpush1.msra.mxu0 %v2084
  %2299 = vmatprep.subr.mxu0 0.0
  %2300 = vmatpush2.msra.mxu0 0.0
  %2301 = vmatprep.subr.mxu0 0.0
  %2302 = vmatpush2.msra.mxu0 0.0
  %2303 = vmatprep.subr.mxu0 0.0
  %2304 = vmatpush2.msra.mxu0 0.0
  %2305 = vmatprep.subr.mxu0 0.0
  %2306 = vmatpush2.msra.mxu0 0.0
  %2307 = vmatprep.subr.mxu0 0.0
  %2308 = vmatpush2.msra.mxu0 0.0
  %2309 = vmatprep.subr.mxu0 0.0
  %2310 = vmatpush2.msra.mxu0 0.0
  %2311 = vmatprep.subr.mxu0 0.0
  %2312 = vmatpush2.msra.mxu0 0.0
  %2313 = vmatprep.subr.mxu0 0.0
  %2314 = vmatpush2.msra.mxu0 0.0
  %2315 = vmatprep.subr.mxu0 0.0
  %2316 = vmatpush2.msra.mxu0 0.0
  %2317 = vmatprep.subr.mxu0 0.0
  %2318 = vmatpush2.msra.mxu0 0.0
  %2319 = vmatprep.subr.mxu0 0.0
  %2320 = vmatpush2.msra.mxu0 0.0
  %2321 = vmatprep.subr.mxu0 0.0
  %2322 = vmatpush2.msra.mxu0 0.0
  %2323 = vmatprep.subr.mxu0 0.0
  %2324 = vmatpush2.msra.mxu0 0.0
  %2325 = vmatprep.subr.mxu0 0.0
  %2326 = vmatpush2.msra.mxu0 0.0
  %2327 = vmatprep.subr.mxu0 0.0
  %2328 = vmatpush2.msra.mxu0 0.0
  %2329 = vmatprep.subr.mxu0 0.0
  %2330 = vmatpush2.msra.mxu0 0.0
  %2331 = vmatprep.mubr.f32.mxu0 0.0
  %2332 = vmatmul.mubr.f32.gmra.mxu0 %v2060
  %v2333 = vpop.f32.mrf.mxu0
  %v2334 = vadd.f32 0.0, %v2333
  %v2335 = vpop.f32.mrf.mxu0
  %v2336 = vadd.f32 0.0, %v2335
  %2337 = vmatprep.mubr.f32.mxu0 0.0
  %2338 = vmatmul.mubr.f32.gmra.mxu0 %v2063
  %v2339 = vpop.f32.mrf.mxu0
  %v2340 = vadd.f32 0.0, %v2339
  %v2341 = vpop.f32.mrf.mxu0
  %v2342 = vadd.f32 0.0, %v2341
  %2343 = vmatprep.mubr.f32.mxu0 0.0
  %2344 = vmatmul.mubr.f32.gmra.mxu0 %v2066
  %v2345 = vpop.f32.mrf.mxu0
  %v2346 = vadd.f32 0.0, %v2345
  %v2347 = vpop.f32.mrf.mxu0
  %v2348 = vadd.f32 0.0, %v2347
  %2349 = vmatprep.mubr.f32.mxu0 0.0
  %2350 = vmatmul.mubr.f32.gmra.mxu0 %v2069
  %v2351 = vpop.f32.mrf.mxu0
  %v2352 = vadd.f32 0.0, %v2351
  %v2353 = vpop.f32.mrf.mxu0
  %v2354 = vadd.f32 0.0, %v2353
  %2355 = vdwg.mxu0
  %v2356 = vadd.f32 %v2011, %v2156
  %v2357 = vadd.f32 %v2012, %v2158
  %v2358 = vadd.f32 %v2013, %v2245
  %v2359 = vadd.f32 %v2014, %v2247
  %v2360 = vadd.f32 %v2015, %v2334
  %v2361 = vadd.f32 %v2016, %v2336
  %v2362 = vadd.f32 %v2017, %v2162
  %v2363 = vadd.f32 %v2018, %v2164
  %v2364 = vadd.f32 %v2019, %v2251
  %v2365 = vadd.f32 %v2020, %v2253
  %v2366 = vadd.f32 %v2021, %v2340
  %v2367 = vadd.f32 %v2022, %v2342
  %v2368 = vadd.f32 %v2023, %v2168
  %v2369 = vadd.f32 %v2024, %v2170
  %v2370 = vadd.f32 %v2025, %v2257
  %v2371 = vadd.f32 %v2026, %v2259
  %v2372 = vadd.f32 %v2027, %v2346
  %v2373 = vadd.f32 %v2028, %v2348
  %v2374 = vadd.f32 %v2029, %v2174
  %v2375 = vadd.f32 %v2030, %v2176
  %v2376 = vadd.f32 %v2031, %v2263
  %v2377 = vadd.f32 %v2032, %v2265
  %v2378 = vadd.f32 %v2033, %v2352
  %v2379 = vadd.f32 %v2034, %v2354
  %2380 = vrot.lane.b32.xlu0 %v23, 110
  %v2381 = vpop.permute.xlu0 %2380
  %2382 = vrot.lane.b32.xlu0 %v29, 110
  %v2383 = vpop.permute.xlu0 %2382
  %2384 = vrot.lane.b32.xlu0 %v24, 110
  %v2385 = vpop.permute.xlu0 %2384
  %2386 = vrot.lane.b32.xlu0 %v30, 110
  %v2387 = vpop.permute.xlu0 %2386
  %2388 = vrot.lane.b32.xlu0 %v25, 110
  %v2389 = vpop.permute.xlu0 %2388
  %2390 = vrot.lane.b32.xlu0 %v31, 110
  %v2391 = vpop.permute.xlu0 %2390
  %vm2392 = vcmp.lt.s32.totalorder %v48, 110
  %v2393 = vsel %vm2392, %v2389, %v2391
  %v2394 = vsel %vm2392, %v2387, %v2389
  %v2395 = vsel %vm2392, %v2385, %v2387
  %v2396 = vsel %vm2392, %v2383, %v2385
  %v2397 = vsel %vm2392, %v2381, %v2383
  %v2398 = vsel %vm2392, %v2391, %v2381
  %s2399 = scalar_lea.vmem %s1, 224
  %v2400 = vld [vmem:[%s2399] sm:$0xff]
  %v2401 = vld [vmem:[%s2399 + $0x8] sm:$0xff]
  %v2402 = vld [vmem:[%s2399 + $0x10] sm:$0xff]
  %v2403 = vld [vmem:[%s2399 + $0x18] sm:$0xff]
  %v2405 = vsel %vm84, %v2400, 0
  %v2408 = vsel %vm84, %v2401, 0
  %v2411 = vsel %vm84, %v2402, 0
  %v2414 = vsel %vm84, %v2403, 0
  %v2417 = vsel %vm97, %v2397, 0
  %v2420 = vsel %vm97, %v2396, 0
  %v2423 = vsel %vm97, %v2395, 0
  %v2426 = vsel %vm97, %v2394, 0
  %v2429 = vsel %vm97, %v2393, 0
  %v2432 = vsel %vm97, %v2398, 0
  %2434 = vmatprep.subr.mxu0 0.0
  %2435 = vmatpush1.msra.mxu0 0.0
  %2436 = vmatprep.subr.mxu0 0.0
  %2437 = vmatpush1.msra.mxu0 0.0
  %2438 = vmatprep.subr.mxu0 0.0
  %2439 = vmatpush1.msra.mxu0 0.0
  %2440 = vmatprep.subr.mxu0 0.0
  %2441 = vmatpush1.msra.mxu0 0.0
  %2442 = vmatprep.subr.mxu0 0.0
  %2443 = vmatpush1.msra.mxu0 0.0
  %2444 = vmatprep.subr.mxu0 0.0
  %2445 = vmatpush1.msra.mxu0 0.0
  %2446 = vmatprep.subr.mxu0 0.0
  %2447 = vmatpush1.msra.mxu0 0.0
  %2448 = vmatprep.subr.mxu0 0.0
  %2449 = vmatpush1.msra.mxu0 0.0
  %2450 = vmatprep.subr.mxu0 0.0
  %2451 = vmatpush1.msra.mxu0 0.0
  %2452 = vmatprep.subr.mxu0 0.0
  %2453 = vmatpush1.msra.mxu0 0.0
  %2454 = vmatprep.subr.mxu0 0.0
  %2455 = vmatpush1.msra.mxu0 0.0
  %2456 = vmatprep.subr.mxu0 0.0
  %2457 = vmatpush1.msra.mxu0 0.0
  %2458 = vmatprep.subr.mxu0 0.0
  %2459 = vmatpush1.msra.mxu0 0.0
  %2460 = vmatprep.subr.mxu0 0.0
  %2461 = vmatpush1.msra.mxu0 0.0
  %2462 = vmatprep.subr.mxu0 0.0
  %2463 = vmatpush1.msra.mxu0 0.0
  %2464 = vmatprep.subr.mxu0 %v2420
  %2465 = vmatpush1.msra.mxu0 %v2417
  %2466 = vmatprep.subr.mxu0 0.0
  %2467 = vmatpush2.msra.mxu0 0.0
  %2468 = vmatprep.subr.mxu0 0.0
  %2469 = vmatpush2.msra.mxu0 0.0
  %2470 = vmatprep.subr.mxu0 0.0
  %2471 = vmatpush2.msra.mxu0 0.0
  %2472 = vmatprep.subr.mxu0 0.0
  %2473 = vmatpush2.msra.mxu0 0.0
  %2474 = vmatprep.subr.mxu0 0.0
  %2475 = vmatpush2.msra.mxu0 0.0
  %2476 = vmatprep.subr.mxu0 0.0
  %2477 = vmatpush2.msra.mxu0 0.0
  %2478 = vmatprep.subr.mxu0 0.0
  %2479 = vmatpush2.msra.mxu0 0.0
  %2480 = vmatprep.subr.mxu0 0.0
  %2481 = vmatpush2.msra.mxu0 0.0
  %2482 = vmatprep.subr.mxu0 0.0
  %2483 = vmatpush2.msra.mxu0 0.0
  %2484 = vmatprep.subr.mxu0 0.0
  %2485 = vmatpush2.msra.mxu0 0.0
  %2486 = vmatprep.subr.mxu0 0.0
  %2487 = vmatpush2.msra.mxu0 0.0
  %2488 = vmatprep.subr.mxu0 0.0
  %2489 = vmatpush2.msra.mxu0 0.0
  %2490 = vmatprep.subr.mxu0 0.0
  %2491 = vmatpush2.msra.mxu0 0.0
  %2492 = vmatprep.subr.mxu0 0.0
  %2493 = vmatpush2.msra.mxu0 0.0
  %2494 = vmatprep.subr.mxu0 0.0
  %2495 = vmatpush2.msra.mxu0 0.0
  %2496 = vmatprep.subr.mxu0 0.0
  %2497 = vmatpush2.msra.mxu0 0.0
  %2498 = vmatprep.mubr.f32.mxu0 0.0
  %2499 = vmatmul.mubr.f32.gmra.mxu0 %v2405
  %v2500 = vpop.f32.mrf.mxu0
  %v2501 = vadd.f32 0.0, %v2500
  %v2502 = vpop.f32.mrf.mxu0
  %v2503 = vadd.f32 0.0, %v2502
  %2504 = vmatprep.mubr.f32.mxu0 0.0
  %2505 = vmatmul.mubr.f32.gmra.mxu0 %v2408
  %v2506 = vpop.f32.mrf.mxu0
  %v2507 = vadd.f32 0.0, %v2506
  %v2508 = vpop.f32.mrf.mxu0
  %v2509 = vadd.f32 0.0, %v2508
  %2510 = vmatprep.mubr.f32.mxu0 0.0
  %2511 = vmatmul.mubr.f32.gmra.mxu0 %v2411
  %v2512 = vpop.f32.mrf.mxu0
  %v2513 = vadd.f32 0.0, %v2512
  %v2514 = vpop.f32.mrf.mxu0
  %v2515 = vadd.f32 0.0, %v2514
  %2516 = vmatprep.mubr.f32.mxu0 0.0
  %2517 = vmatmul.mubr.f32.gmra.mxu0 %v2414
  %v2518 = vpop.f32.mrf.mxu0
  %v2519 = vadd.f32 0.0, %v2518
  %v2520 = vpop.f32.mrf.mxu0
  %v2521 = vadd.f32 0.0, %v2520
  %2522 = vdwg.mxu0
  %2523 = vmatprep.subr.mxu0 0.0
  %2524 = vmatpush1.msra.mxu0 0.0
  %2525 = vmatprep.subr.mxu0 0.0
  %2526 = vmatpush1.msra.mxu0 0.0
  %2527 = vmatprep.subr.mxu0 0.0
  %2528 = vmatpush1.msra.mxu0 0.0
  %2529 = vmatprep.subr.mxu0 0.0
  %2530 = vmatpush1.msra.mxu0 0.0
  %2531 = vmatprep.subr.mxu0 0.0
  %2532 = vmatpush1.msra.mxu0 0.0
  %2533 = vmatprep.subr.mxu0 0.0
  %2534 = vmatpush1.msra.mxu0 0.0
  %2535 = vmatprep.subr.mxu0 0.0
  %2536 = vmatpush1.msra.mxu0 0.0
  %2537 = vmatprep.subr.mxu0 0.0
  %2538 = vmatpush1.msra.mxu0 0.0
  %2539 = vmatprep.subr.mxu0 0.0
  %2540 = vmatpush1.msra.mxu0 0.0
  %2541 = vmatprep.subr.mxu0 0.0
  %2542 = vmatpush1.msra.mxu0 0.0
  %2543 = vmatprep.subr.mxu0 0.0
  %2544 = vmatpush1.msra.mxu0 0.0
  %2545 = vmatprep.subr.mxu0 0.0
  %2546 = vmatpush1.msra.mxu0 0.0
  %2547 = vmatprep.subr.mxu0 0.0
  %2548 = vmatpush1.msra.mxu0 0.0
  %2549 = vmatprep.subr.mxu0 0.0
  %2550 = vmatpush1.msra.mxu0 0.0
  %2551 = vmatprep.subr.mxu0 0.0
  %2552 = vmatpush1.msra.mxu0 0.0
  %2553 = vmatprep.subr.mxu0 %v2426
  %2554 = vmatpush1.msra.mxu0 %v2423
  %2555 = vmatprep.subr.mxu0 0.0
  %2556 = vmatpush2.msra.mxu0 0.0
  %2557 = vmatprep.subr.mxu0 0.0
  %2558 = vmatpush2.msra.mxu0 0.0
  %2559 = vmatprep.subr.mxu0 0.0
  %2560 = vmatpush2.msra.mxu0 0.0
  %2561 = vmatprep.subr.mxu0 0.0
  %2562 = vmatpush2.msra.mxu0 0.0
  %2563 = vmatprep.subr.mxu0 0.0
  %2564 = vmatpush2.msra.mxu0 0.0
  %2565 = vmatprep.subr.mxu0 0.0
  %2566 = vmatpush2.msra.mxu0 0.0
  %2567 = vmatprep.subr.mxu0 0.0
  %2568 = vmatpush2.msra.mxu0 0.0
  %2569 = vmatprep.subr.mxu0 0.0
  %2570 = vmatpush2.msra.mxu0 0.0
  %2571 = vmatprep.subr.mxu0 0.0
  %2572 = vmatpush2.msra.mxu0 0.0
  %2573 = vmatprep.subr.mxu0 0.0
  %2574 = vmatpush2.msra.mxu0 0.0
  %2575 = vmatprep.subr.mxu0 0.0
  %2576 = vmatpush2.msra.mxu0 0.0
  %2577 = vmatprep.subr.mxu0 0.0
  %2578 = vmatpush2.msra.mxu0 0.0
  %2579 = vmatprep.subr.mxu0 0.0
  %2580 = vmatpush2.msra.mxu0 0.0
  %2581 = vmatprep.subr.mxu0 0.0
  %2582 = vmatpush2.msra.mxu0 0.0
  %2583 = vmatprep.subr.mxu0 0.0
  %2584 = vmatpush2.msra.mxu0 0.0
  %2585 = vmatprep.subr.mxu0 0.0
  %2586 = vmatpush2.msra.mxu0 0.0
  %2587 = vmatprep.mubr.f32.mxu0 0.0
  %2588 = vmatmul.mubr.f32.gmra.mxu0 %v2405
  %v2589 = vpop.f32.mrf.mxu0
  %v2590 = vadd.f32 0.0, %v2589
  %v2591 = vpop.f32.mrf.mxu0
  %v2592 = vadd.f32 0.0, %v2591
  %2593 = vmatprep.mubr.f32.mxu0 0.0
  %2594 = vmatmul.mubr.f32.gmra.mxu0 %v2408
  %v2595 = vpop.f32.mrf.mxu0
  %v2596 = vadd.f32 0.0, %v2595
  %v2597 = vpop.f32.mrf.mxu0
  %v2598 = vadd.f32 0.0, %v2597
  %2599 = vmatprep.mubr.f32.mxu0 0.0
  %2600 = vmatmul.mubr.f32.gmra.mxu0 %v2411
  %v2601 = vpop.f32.mrf.mxu0
  %v2602 = vadd.f32 0.0, %v2601
  %v2603 = vpop.f32.mrf.mxu0
  %v2604 = vadd.f32 0.0, %v2603
  %2605 = vmatprep.mubr.f32.mxu0 0.0
  %2606 = vmatmul.mubr.f32.gmra.mxu0 %v2414
  %v2607 = vpop.f32.mrf.mxu0
  %v2608 = vadd.f32 0.0, %v2607
  %v2609 = vpop.f32.mrf.mxu0
  %v2610 = vadd.f32 0.0, %v2609
  %2611 = vdwg.mxu0
  %2612 = vmatprep.subr.mxu0 0.0
  %2613 = vmatpush1.msra.mxu0 0.0
  %2614 = vmatprep.subr.mxu0 0.0
  %2615 = vmatpush1.msra.mxu0 0.0
  %2616 = vmatprep.subr.mxu0 0.0
  %2617 = vmatpush1.msra.mxu0 0.0
  %2618 = vmatprep.subr.mxu0 0.0
  %2619 = vmatpush1.msra.mxu0 0.0
  %2620 = vmatprep.subr.mxu0 0.0
  %2621 = vmatpush1.msra.mxu0 0.0
  %2622 = vmatprep.subr.mxu0 0.0
  %2623 = vmatpush1.msra.mxu0 0.0
  %2624 = vmatprep.subr.mxu0 0.0
  %2625 = vmatpush1.msra.mxu0 0.0
  %2626 = vmatprep.subr.mxu0 0.0
  %2627 = vmatpush1.msra.mxu0 0.0
  %2628 = vmatprep.subr.mxu0 0.0
  %2629 = vmatpush1.msra.mxu0 0.0
  %2630 = vmatprep.subr.mxu0 0.0
  %2631 = vmatpush1.msra.mxu0 0.0
  %2632 = vmatprep.subr.mxu0 0.0
  %2633 = vmatpush1.msra.mxu0 0.0
  %2634 = vmatprep.subr.mxu0 0.0
  %2635 = vmatpush1.msra.mxu0 0.0
  %2636 = vmatprep.subr.mxu0 0.0
  %2637 = vmatpush1.msra.mxu0 0.0
  %2638 = vmatprep.subr.mxu0 0.0
  %2639 = vmatpush1.msra.mxu0 0.0
  %2640 = vmatprep.subr.mxu0 0.0
  %2641 = vmatpush1.msra.mxu0 0.0
  %2642 = vmatprep.subr.mxu0 %v2432
  %2643 = vmatpush1.msra.mxu0 %v2429
  %2644 = vmatprep.subr.mxu0 0.0
  %2645 = vmatpush2.msra.mxu0 0.0
  %2646 = vmatprep.subr.mxu0 0.0
  %2647 = vmatpush2.msra.mxu0 0.0
  %2648 = vmatprep.subr.mxu0 0.0
  %2649 = vmatpush2.msra.mxu0 0.0
  %2650 = vmatprep.subr.mxu0 0.0
  %2651 = vmatpush2.msra.mxu0 0.0
  %2652 = vmatprep.subr.mxu0 0.0
  %2653 = vmatpush2.msra.mxu0 0.0
  %2654 = vmatprep.subr.mxu0 0.0
  %2655 = vmatpush2.msra.mxu0 0.0
  %2656 = vmatprep.subr.mxu0 0.0
  %2657 = vmatpush2.msra.mxu0 0.0
  %2658 = vmatprep.subr.mxu0 0.0
  %2659 = vmatpush2.msra.mxu0 0.0
  %2660 = vmatprep.subr.mxu0 0.0
  %2661 = vmatpush2.msra.mxu0 0.0
  %2662 = vmatprep.subr.mxu0 0.0
  %2663 = vmatpush2.msra.mxu0 0.0
  %2664 = vmatprep.subr.mxu0 0.0
  %2665 = vmatpush2.msra.mxu0 0.0
  %2666 = vmatprep.subr.mxu0 0.0
  %2667 = vmatpush2.msra.mxu0 0.0
  %2668 = vmatprep.subr.mxu0 0.0
  %2669 = vmatpush2.msra.mxu0 0.0
  %2670 = vmatprep.subr.mxu0 0.0
  %2671 = vmatpush2.msra.mxu0 0.0
  %2672 = vmatprep.subr.mxu0 0.0
  %2673 = vmatpush2.msra.mxu0 0.0
  %2674 = vmatprep.subr.mxu0 0.0
  %2675 = vmatpush2.msra.mxu0 0.0
  %2676 = vmatprep.mubr.f32.mxu0 0.0
  %2677 = vmatmul.mubr.f32.gmra.mxu0 %v2405
  %v2678 = vpop.f32.mrf.mxu0
  %v2679 = vadd.f32 0.0, %v2678
  %v2680 = vpop.f32.mrf.mxu0
  %v2681 = vadd.f32 0.0, %v2680
  %2682 = vmatprep.mubr.f32.mxu0 0.0
  %2683 = vmatmul.mubr.f32.gmra.mxu0 %v2408
  %v2684 = vpop.f32.mrf.mxu0
  %v2685 = vadd.f32 0.0, %v2684
  %v2686 = vpop.f32.mrf.mxu0
  %v2687 = vadd.f32 0.0, %v2686
  %2688 = vmatprep.mubr.f32.mxu0 0.0
  %2689 = vmatmul.mubr.f32.gmra.mxu0 %v2411
  %v2690 = vpop.f32.mrf.mxu0
  %v2691 = vadd.f32 0.0, %v2690
  %v2692 = vpop.f32.mrf.mxu0
  %v2693 = vadd.f32 0.0, %v2692
  %2694 = vmatprep.mubr.f32.mxu0 0.0
  %2695 = vmatmul.mubr.f32.gmra.mxu0 %v2414
  %v2696 = vpop.f32.mrf.mxu0
  %v2697 = vadd.f32 0.0, %v2696
  %v2698 = vpop.f32.mrf.mxu0
  %v2699 = vadd.f32 0.0, %v2698
  %2700 = vdwg.mxu0
  %v2701 = vadd.f32 %v2356, %v2501
  %v2702 = vadd.f32 %v2357, %v2503
  %v2703 = vadd.f32 %v2358, %v2590
  %v2704 = vadd.f32 %v2359, %v2592
  %v2705 = vadd.f32 %v2360, %v2679
  %v2706 = vadd.f32 %v2361, %v2681
  %v2707 = vadd.f32 %v2362, %v2507
  %v2708 = vadd.f32 %v2363, %v2509
  %v2709 = vadd.f32 %v2364, %v2596
  %v2710 = vadd.f32 %v2365, %v2598
  %v2711 = vadd.f32 %v2366, %v2685
  %v2712 = vadd.f32 %v2367, %v2687
  %v2713 = vadd.f32 %v2368, %v2513
  %v2714 = vadd.f32 %v2369, %v2515
  %v2715 = vadd.f32 %v2370, %v2602
  %v2716 = vadd.f32 %v2371, %v2604
  %v2717 = vadd.f32 %v2372, %v2691
  %v2718 = vadd.f32 %v2373, %v2693
  %v2719 = vadd.f32 %v2374, %v2519
  %v2720 = vadd.f32 %v2375, %v2521
  %v2721 = vadd.f32 %v2376, %v2608
  %v2722 = vadd.f32 %v2377, %v2610
  %v2723 = vadd.f32 %v2378, %v2697
  %v2724 = vadd.f32 %v2379, %v2699
  %2725 = vrot.lane.b32.xlu0 %v23, 109
  %v2726 = vpop.permute.xlu0 %2725
  %2727 = vrot.lane.b32.xlu0 %v29, 109
  %v2728 = vpop.permute.xlu0 %2727
  %2729 = vrot.lane.b32.xlu0 %v24, 109
  %v2730 = vpop.permute.xlu0 %2729
  %2731 = vrot.lane.b32.xlu0 %v30, 109
  %v2732 = vpop.permute.xlu0 %2731
  %2733 = vrot.lane.b32.xlu0 %v25, 109
  %v2734 = vpop.permute.xlu0 %2733
  %2735 = vrot.lane.b32.xlu0 %v31, 109
  %v2736 = vpop.permute.xlu0 %2735
  %vm2737 = vcmp.lt.s32.totalorder %v48, 109
  %v2738 = vsel %vm2737, %v2734, %v2736
  %v2739 = vsel %vm2737, %v2732, %v2734
  %v2740 = vsel %vm2737, %v2730, %v2732
  %v2741 = vsel %vm2737, %v2728, %v2730
  %v2742 = vsel %vm2737, %v2726, %v2728
  %v2743 = vsel %vm2737, %v2736, %v2726
  %s2744 = scalar_lea.vmem %s1, 256
  %v2745 = vld [vmem:[%s2744] sm:$0xff]
  %v2746 = vld [vmem:[%s2744 + $0x8] sm:$0xff]
  %v2747 = vld [vmem:[%s2744 + $0x10] sm:$0xff]
  %v2748 = vld [vmem:[%s2744 + $0x18] sm:$0xff]
  %v2750 = vsel %vm84, %v2745, 0
  %v2753 = vsel %vm84, %v2746, 0
  %v2756 = vsel %vm84, %v2747, 0
  %v2759 = vsel %vm84, %v2748, 0
  %v2762 = vsel %vm97, %v2742, 0
  %v2765 = vsel %vm97, %v2741, 0
  %v2768 = vsel %vm97, %v2740, 0
  %v2771 = vsel %vm97, %v2739, 0
  %v2774 = vsel %vm97, %v2738, 0
  %v2777 = vsel %vm97, %v2743, 0
  %2779 = vmatprep.subr.mxu0 0.0
  %2780 = vmatpush1.msra.mxu0 0.0
  %2781 = vmatprep.subr.mxu0 0.0
  %2782 = vmatpush1.msra.mxu0 0.0
  %2783 = vmatprep.subr.mxu0 0.0
  %2784 = vmatpush1.msra.mxu0 0.0
  %2785 = vmatprep.subr.mxu0 0.0
  %2786 = vmatpush1.msra.mxu0 0.0
  %2787 = vmatprep.subr.mxu0 0.0
  %2788 = vmatpush1.msra.mxu0 0.0
  %2789 = vmatprep.subr.mxu0 0.0
  %2790 = vmatpush1.msra.mxu0 0.0
  %2791 = vmatprep.subr.mxu0 0.0
  %2792 = vmatpush1.msra.mxu0 0.0
  %2793 = vmatprep.subr.mxu0 0.0
  %2794 = vmatpush1.msra.mxu0 0.0
  %2795 = vmatprep.subr.mxu0 0.0
  %2796 = vmatpush1.msra.mxu0 0.0
  %2797 = vmatprep.subr.mxu0 0.0
  %2798 = vmatpush1.msra.mxu0 0.0
  %2799 = vmatprep.subr.mxu0 0.0
  %2800 = vmatpush1.msra.mxu0 0.0
  %2801 = vmatprep.subr.mxu0 0.0
  %2802 = vmatpush1.msra.mxu0 0.0
  %2803 = vmatprep.subr.mxu0 0.0
  %2804 = vmatpush1.msra.mxu0 0.0
  %2805 = vmatprep.subr.mxu0 0.0
  %2806 = vmatpush1.msra.mxu0 0.0
  %2807 = vmatprep.subr.mxu0 0.0
  %2808 = vmatpush1.msra.mxu0 0.0
  %2809 = vmatprep.subr.mxu0 %v2765
  %2810 = vmatpush1.msra.mxu0 %v2762
  %2811 = vmatprep.subr.mxu0 0.0
  %2812 = vmatpush2.msra.mxu0 0.0
  %2813 = vmatprep.subr.mxu0 0.0
  %2814 = vmatpush2.msra.mxu0 0.0
  %2815 = vmatprep.subr.mxu0 0.0
  %2816 = vmatpush2.msra.mxu0 0.0
  %2817 = vmatprep.subr.mxu0 0.0
  %2818 = vmatpush2.msra.mxu0 0.0
  %2819 = vmatprep.subr.mxu0 0.0
  %2820 = vmatpush2.msra.mxu0 0.0
  %2821 = vmatprep.subr.mxu0 0.0
  %2822 = vmatpush2.msra.mxu0 0.0
  %2823 = vmatprep.subr.mxu0 0.0
  %2824 = vmatpush2.msra.mxu0 0.0
  %2825 = vmatprep.subr.mxu0 0.0
  %2826 = vmatpush2.msra.mxu0 0.0
  %2827 = vmatprep.subr.mxu0 0.0
  %2828 = vmatpush2.msra.mxu0 0.0
  %2829 = vmatprep.subr.mxu0 0.0
  %2830 = vmatpush2.msra.mxu0 0.0
  %2831 = vmatprep.subr.mxu0 0.0
  %2832 = vmatpush2.msra.mxu0 0.0
  %2833 = vmatprep.subr.mxu0 0.0
  %2834 = vmatpush2.msra.mxu0 0.0
  %2835 = vmatprep.subr.mxu0 0.0
  %2836 = vmatpush2.msra.mxu0 0.0
  %2837 = vmatprep.subr.mxu0 0.0
  %2838 = vmatpush2.msra.mxu0 0.0
  %2839 = vmatprep.subr.mxu0 0.0
  %2840 = vmatpush2.msra.mxu0 0.0
  %2841 = vmatprep.subr.mxu0 0.0
  %2842 = vmatpush2.msra.mxu0 0.0
  %2843 = vmatprep.mubr.f32.mxu0 0.0
  %2844 = vmatmul.mubr.f32.gmra.mxu0 %v2750
  %v2845 = vpop.f32.mrf.mxu0
  %v2846 = vadd.f32 0.0, %v2845
  %v2847 = vpop.f32.mrf.mxu0
  %v2848 = vadd.f32 0.0, %v2847
  %2849 = vmatprep.mubr.f32.mxu0 0.0
  %2850 = vmatmul.mubr.f32.gmra.mxu0 %v2753
  %v2851 = vpop.f32.mrf.mxu0
  %v2852 = vadd.f32 0.0, %v2851
  %v2853 = vpop.f32.mrf.mxu0
  %v2854 = vadd.f32 0.0, %v2853
  %2855 = vmatprep.mubr.f32.mxu0 0.0
  %2856 = vmatmul.mubr.f32.gmra.mxu0 %v2756
  %v2857 = vpop.f32.mrf.mxu0
  %v2858 = vadd.f32 0.0, %v2857
  %v2859 = vpop.f32.mrf.mxu0
  %v2860 = vadd.f32 0.0, %v2859
  %2861 = vmatprep.mubr.f32.mxu0 0.0
  %2862 = vmatmul.mubr.f32.gmra.mxu0 %v2759
  %v2863 = vpop.f32.mrf.mxu0
  %v2864 = vadd.f32 0.0, %v2863
  %v2865 = vpop.f32.mrf.mxu0
  %v2866 = vadd.f32 0.0, %v2865
  %2867 = vdwg.mxu0
  %2868 = vmatprep.subr.mxu0 0.0
  %2869 = vmatpush1.msra.mxu0 0.0
  %2870 = vmatprep.subr.mxu0 0.0
  %2871 = vmatpush1.msra.mxu0 0.0
  %2872 = vmatprep.subr.mxu0 0.0
  %2873 = vmatpush1.msra.mxu0 0.0
  %2874 = vmatprep.subr.mxu0 0.0
  %2875 = vmatpush1.msra.mxu0 0.0
  %2876 = vmatprep.subr.mxu0 0.0
  %2877 = vmatpush1.msra.mxu0 0.0
  %2878 = vmatprep.subr.mxu0 0.0
  %2879 = vmatpush1.msra.mxu0 0.0
  %2880 = vmatprep.subr.mxu0 0.0
  %2881 = vmatpush1.msra.mxu0 0.0
  %2882 = vmatprep.subr.mxu0 0.0
  %2883 = vmatpush1.msra.mxu0 0.0
  %2884 = vmatprep.subr.mxu0 0.0
  %2885 = vmatpush1.msra.mxu0 0.0
  %2886 = vmatprep.subr.mxu0 0.0
  %2887 = vmatpush1.msra.mxu0 0.0
  %2888 = vmatprep.subr.mxu0 0.0
  %2889 = vmatpush1.msra.mxu0 0.0
  %2890 = vmatprep.subr.mxu0 0.0
  %2891 = vmatpush1.msra.mxu0 0.0
  %2892 = vmatprep.subr.mxu0 0.0
  %2893 = vmatpush1.msra.mxu0 0.0
  %2894 = vmatprep.subr.mxu0 0.0
  %2895 = vmatpush1.msra.mxu0 0.0
  %2896 = vmatprep.subr.mxu0 0.0
  %2897 = vmatpush1.msra.mxu0 0.0
  %2898 = vmatprep.subr.mxu0 %v2771
  %2899 = vmatpush1.msra.mxu0 %v2768
  %2900 = vmatprep.subr.mxu0 0.0
  %2901 = vmatpush2.msra.mxu0 0.0
  %2902 = vmatprep.subr.mxu0 0.0
  %2903 = vmatpush2.msra.mxu0 0.0
  %2904 = vmatprep.subr.mxu0 0.0
  %2905 = vmatpush2.msra.mxu0 0.0
  %2906 = vmatprep.subr.mxu0 0.0
  %2907 = vmatpush2.msra.mxu0 0.0
  %2908 = vmatprep.subr.mxu0 0.0
  %2909 = vmatpush2.msra.mxu0 0.0
  %2910 = vmatprep.subr.mxu0 0.0
  %2911 = vmatpush2.msra.mxu0 0.0
  %2912 = vmatprep.subr.mxu0 0.0
  %2913 = vmatpush2.msra.mxu0 0.0
  %2914 = vmatprep.subr.mxu0 0.0
  %2915 = vmatpush2.msra.mxu0 0.0
  %2916 = vmatprep.subr.mxu0 0.0
  %2917 = vmatpush2.msra.mxu0 0.0
  %2918 = vmatprep.subr.mxu0 0.0
  %2919 = vmatpush2.msra.mxu0 0.0
  %2920 = vmatprep.subr.mxu0 0.0
  %2921 = vmatpush2.msra.mxu0 0.0
  %2922 = vmatprep.subr.mxu0 0.0
  %2923 = vmatpush2.msra.mxu0 0.0
  %2924 = vmatprep.subr.mxu0 0.0
  %2925 = vmatpush2.msra.mxu0 0.0
  %2926 = vmatprep.subr.mxu0 0.0
  %2927 = vmatpush2.msra.mxu0 0.0
  %2928 = vmatprep.subr.mxu0 0.0
  %2929 = vmatpush2.msra.mxu0 0.0
  %2930 = vmatprep.subr.mxu0 0.0
  %2931 = vmatpush2.msra.mxu0 0.0
  %2932 = vmatprep.mubr.f32.mxu0 0.0
  %2933 = vmatmul.mubr.f32.gmra.mxu0 %v2750
  %v2934 = vpop.f32.mrf.mxu0
  %v2935 = vadd.f32 0.0, %v2934
  %v2936 = vpop.f32.mrf.mxu0
  %v2937 = vadd.f32 0.0, %v2936
  %2938 = vmatprep.mubr.f32.mxu0 0.0
  %2939 = vmatmul.mubr.f32.gmra.mxu0 %v2753
  %v2940 = vpop.f32.mrf.mxu0
  %v2941 = vadd.f32 0.0, %v2940
  %v2942 = vpop.f32.mrf.mxu0
  %v2943 = vadd.f32 0.0, %v2942
  %2944 = vmatprep.mubr.f32.mxu0 0.0
  %2945 = vmatmul.mubr.f32.gmra.mxu0 %v2756
  %v2946 = vpop.f32.mrf.mxu0
  %v2947 = vadd.f32 0.0, %v2946
  %v2948 = vpop.f32.mrf.mxu0
  %v2949 = vadd.f32 0.0, %v2948
  %2950 = vmatprep.mubr.f32.mxu0 0.0
  %2951 = vmatmul.mubr.f32.gmra.mxu0 %v2759
  %v2952 = vpop.f32.mrf.mxu0
  %v2953 = vadd.f32 0.0, %v2952
  %v2954 = vpop.f32.mrf.mxu0
  %v2955 = vadd.f32 0.0, %v2954
  %2956 = vdwg.mxu0
  %2957 = vmatprep.subr.mxu0 0.0
  %2958 = vmatpush1.msra.mxu0 0.0
  %2959 = vmatprep.subr.mxu0 0.0
  %2960 = vmatpush1.msra.mxu0 0.0
  %2961 = vmatprep.subr.mxu0 0.0
  %2962 = vmatpush1.msra.mxu0 0.0
  %2963 = vmatprep.subr.mxu0 0.0
  %2964 = vmatpush1.msra.mxu0 0.0
  %2965 = vmatprep.subr.mxu0 0.0
  %2966 = vmatpush1.msra.mxu0 0.0
  %2967 = vmatprep.subr.mxu0 0.0
  %2968 = vmatpush1.msra.mxu0 0.0
  %2969 = vmatprep.subr.mxu0 0.0
  %2970 = vmatpush1.msra.mxu0 0.0
  %2971 = vmatprep.subr.mxu0 0.0
  %2972 = vmatpush1.msra.mxu0 0.0
  %2973 = vmatprep.subr.mxu0 0.0
  %2974 = vmatpush1.msra.mxu0 0.0
  %2975 = vmatprep.subr.mxu0 0.0
  %2976 = vmatpush1.msra.mxu0 0.0
  %2977 = vmatprep.subr.mxu0 0.0
  %2978 = vmatpush1.msra.mxu0 0.0
  %2979 = vmatprep.subr.mxu0 0.0
  %2980 = vmatpush1.msra.mxu0 0.0
  %2981 = vmatprep.subr.mxu0 0.0
  %2982 = vmatpush1.msra.mxu0 0.0
  %2983 = vmatprep.subr.mxu0 0.0
  %2984 = vmatpush1.msra.mxu0 0.0
  %2985 = vmatprep.subr.mxu0 0.0
  %2986 = vmatpush1.msra.mxu0 0.0
  %2987 = vmatprep.subr.mxu0 %v2777
  %2988 = vmatpush1.msra.mxu0 %v2774
  %2989 = vmatprep.subr.mxu0 0.0
  %2990 = vmatpush2.msra.mxu0 0.0
  %2991 = vmatprep.subr.mxu0 0.0
  %2992 = vmatpush2.msra.mxu0 0.0
  %2993 = vmatprep.subr.mxu0 0.0
  %2994 = vmatpush2.msra.mxu0 0.0
  %2995 = vmatprep.subr.mxu0 0.0
  %2996 = vmatpush2.msra.mxu0 0.0
  %2997 = vmatprep.subr.mxu0 0.0
  %2998 = vmatpush2.msra.mxu0 0.0
  %2999 = vmatprep.subr.mxu0 0.0
  %3000 = vmatpush2.msra.mxu0 0.0
  %3001 = vmatprep.subr.mxu0 0.0
  %3002 = vmatpush2.msra.mxu0 0.0
  %3003 = vmatprep.subr.mxu0 0.0
  %3004 = vmatpush2.msra.mxu0 0.0
  %3005 = vmatprep.subr.mxu0 0.0
  %3006 = vmatpush2.msra.mxu0 0.0
  %3007 = vmatprep.subr.mxu0 0.0
  %3008 = vmatpush2.msra.mxu0 0.0
  %3009 = vmatprep.subr.mxu0 0.0
  %3010 = vmatpush2.msra.mxu0 0.0
  %3011 = vmatprep.subr.mxu0 0.0
  %3012 = vmatpush2.msra.mxu0 0.0
  %3013 = vmatprep.subr.mxu0 0.0
  %3014 = vmatpush2.msra.mxu0 0.0
  %3015 = vmatprep.subr.mxu0 0.0
  %3016 = vmatpush2.msra.mxu0 0.0
  %3017 = vmatprep.subr.mxu0 0.0
  %3018 = vmatpush2.msra.mxu0 0.0
  %3019 = vmatprep.subr.mxu0 0.0
  %3020 = vmatpush2.msra.mxu0 0.0
  %3021 = vmatprep.mubr.f32.mxu0 0.0
  %3022 = vmatmul.mubr.f32.gmra.mxu0 %v2750
  %v3023 = vpop.f32.mrf.mxu0
  %v3024 = vadd.f32 0.0, %v3023
  %v3025 = vpop.f32.mrf.mxu0
  %v3026 = vadd.f32 0.0, %v3025
  %3027 = vmatprep.mubr.f32.mxu0 0.0
  %3028 = vmatmul.mubr.f32.gmra.mxu0 %v2753
  %v3029 = vpop.f32.mrf.mxu0
  %v3030 = vadd.f32 0.0, %v3029
  %v3031 = vpop.f32.mrf.mxu0
  %v3032 = vadd.f32 0.0, %v3031
  %3033 = vmatprep.mubr.f32.mxu0 0.0
  %3034 = vmatmul.mubr.f32.gmra.mxu0 %v2756
  %v3035 = vpop.f32.mrf.mxu0
  %v3036 = vadd.f32 0.0, %v3035
  %v3037 = vpop.f32.mrf.mxu0
  %v3038 = vadd.f32 0.0, %v3037
  %3039 = vmatprep.mubr.f32.mxu0 0.0
  %3040 = vmatmul.mubr.f32.gmra.mxu0 %v2759
  %v3041 = vpop.f32.mrf.mxu0
  %v3042 = vadd.f32 0.0, %v3041
  %v3043 = vpop.f32.mrf.mxu0
  %v3044 = vadd.f32 0.0, %v3043
  %3045 = vdwg.mxu0
  %v3046 = vadd.f32 %v2701, %v2846
  %v3047 = vadd.f32 %v2702, %v2848
  %v3048 = vadd.f32 %v2703, %v2935
  %v3049 = vadd.f32 %v2704, %v2937
  %v3050 = vadd.f32 %v2705, %v3024
  %v3051 = vadd.f32 %v2706, %v3026
  %v3052 = vadd.f32 %v2707, %v2852
  %v3053 = vadd.f32 %v2708, %v2854
  %v3054 = vadd.f32 %v2709, %v2941
  %v3055 = vadd.f32 %v2710, %v2943
  %v3056 = vadd.f32 %v2711, %v3030
  %v3057 = vadd.f32 %v2712, %v3032
  %v3058 = vadd.f32 %v2713, %v2858
  %v3059 = vadd.f32 %v2714, %v2860
  %v3060 = vadd.f32 %v2715, %v2947
  %v3061 = vadd.f32 %v2716, %v2949
  %v3062 = vadd.f32 %v2717, %v3036
  %v3063 = vadd.f32 %v2718, %v3038
  %v3064 = vadd.f32 %v2719, %v2864
  %v3065 = vadd.f32 %v2720, %v2866
  %v3066 = vadd.f32 %v2721, %v2953
  %v3067 = vadd.f32 %v2722, %v2955
  %v3068 = vadd.f32 %v2723, %v3042
  %v3069 = vadd.f32 %v2724, %v3044
  %v3070 = vld [vmem:[%s2] sm:$0xff]
  %v3071 = vld [vmem:[%s2 + $0x8] sm:$0xff]
  %v3072 = vld [vmem:[%s2 + $0x10] sm:$0xff]
  %v3073 = vld [vmem:[%s2 + $0x18] sm:$0xff]
  %3075 = vset.pattern.permute.xlu0 0
  %3076 = vperm.xlu0 %3075, %v3070
  %v3077 = vpop.permute.xlu0 %3076
  %3080 = vset.pattern.permute.xlu0 0
  %3081 = vperm.xlu0 %3080, %v3071
  %v3082 = vpop.permute.xlu0 %3081
  %3085 = vset.pattern.permute.xlu0 0
  %3086 = vperm.xlu0 %3085, %v3072
  %v3087 = vpop.permute.xlu0 %3086
  %3090 = vset.pattern.permute.xlu0 0
  %3091 = vperm.xlu0 %3090, %v3073
  %v3092 = vpop.permute.xlu0 %3091
  %v3094 = vadd.f32 %v3046, %v3077
  %v3095 = vadd.f32 %v3047, %v3077
  %v3096 = vadd.f32 %v3048, %v3077
  %v3097 = vadd.f32 %v3049, %v3077
  %v3098 = vadd.f32 %v3050, %v3077
  %v3099 = vadd.f32 %v3051, %v3077
  %v3100 = vadd.f32 %v3052, %v3082
  %v3101 = vadd.f32 %v3053, %v3082
  %v3102 = vadd.f32 %v3054, %v3082
  %v3103 = vadd.f32 %v3055, %v3082
  %v3104 = vadd.f32 %v3056, %v3082
  %v3105 = vadd.f32 %v3057, %v3082
  %v3106 = vadd.f32 %v3058, %v3087
  %v3107 = vadd.f32 %v3059, %v3087
  %v3108 = vadd.f32 %v3060, %v3087
  %v3109 = vadd.f32 %v3061, %v3087
  %v3110 = vadd.f32 %v3062, %v3087
  %v3111 = vadd.f32 %v3063, %v3087
  %v3112 = vadd.f32 %v3064, %v3092
  %v3113 = vadd.f32 %v3065, %v3092
  %v3114 = vadd.f32 %v3066, %v3092
  %v3115 = vadd.f32 %v3067, %v3092
  %v3116 = vadd.f32 %v3068, %v3092
  %v3117 = vadd.f32 %v3069, %v3092
  %v3118 = vmax.f32 %v3094, 0.0
  %v3119 = vmax.f32 %v3095, 0.0
  %v3120 = vmax.f32 %v3096, 0.0
  %v3121 = vmax.f32 %v3097, 0.0
  %v3122 = vmax.f32 %v3098, 0.0
  %v3123 = vmax.f32 %v3099, 0.0
  %v3124 = vmax.f32 %v3100, 0.0
  %v3125 = vmax.f32 %v3101, 0.0
  %v3126 = vmax.f32 %v3102, 0.0
  %v3127 = vmax.f32 %v3103, 0.0
  %v3128 = vmax.f32 %v3104, 0.0
  %v3129 = vmax.f32 %v3105, 0.0
  %v3130 = vmax.f32 %v3106, 0.0
  %v3131 = vmax.f32 %v3107, 0.0
  %v3132 = vmax.f32 %v3108, 0.0
  %v3133 = vmax.f32 %v3109, 0.0
  %v3134 = vmax.f32 %v3110, 0.0
  %v3135 = vmax.f32 %v3111, 0.0
  %v3136 = vmax.f32 %v3112, 0.0
  %v3137 = vmax.f32 %v3113, 0.0
  %v3138 = vmax.f32 %v3114, 0.0
  %v3139 = vmax.f32 %v3115, 0.0
  %v3140 = vmax.f32 %v3116, 0.0
  %v3141 = vmax.f32 %v3117, 0.0
  %v3142 = vld [vmem:[%s4] sm:$0xff]
  %v3143 = vld [vmem:[%s4 + $0x8] sm:$0xff]
  %v3144 = vld [vmem:[%s4 + $0x10] sm:$0xff]
  %v3145 = vld [vmem:[%s4 + $0x18] sm:$0xff]
  %v3146 = vld [vmem:[%s5] sm:$0x1]
  %v3147 = vld [vmem:[%s3] ss:$2 sm:$0x3f]
  %v3149 = vlaneseq
  %v3150 = vshrl.u32 %v3149, 7
  %v3151 = vsub.s32 0, %v3150
  %v3152 = vrot.slane %v3147, %v3151
  %v3153 = vlaneseq
  %v3154 = vshrl.u32 %v3153, 7
  %v3155 = vsub.s32 1, %v3154
  %v3156 = vrot.slane %v3147, %v3155
  %v3157 = vlaneseq
  %v3158 = vshrl.u32 %v3157, 7
  %v3159 = vsub.s32 2, %v3158
  %v3160 = vrot.slane %v3147, %v3159
  %v3161 = vlaneseq
  %v3162 = vshrl.u32 %v3161, 7
  %v3163 = vsub.s32 3, %v3162
  %v3164 = vrot.slane %v3147, %v3163
  %v3165 = vlaneseq
  %v3166 = vshrl.u32 %v3165, 7
  %v3167 = vsub.s32 4, %v3166
  %v3168 = vrot.slane %v3147, %v3167
  %v3169 = vlaneseq
  %v3170 = vshrl.u32 %v3169, 7
  %v3171 = vsub.s32 5, %v3170
  %v3172 = vrot.slane %v3147, %v3171
  %v3179 = vmul.f32 %v3118, %v3152
  %v3180 = vmul.f32 %v3119, %v3156
  %v3181 = vmul.f32 %v3120, %v3160
  %v3182 = vmul.f32 %v3121, %v3164
  %v3183 = vmul.f32 %v3122, %v3168
  %v3184 = vmul.f32 %v3123, %v3172
  %v3185 = vmul.f32 %v3124, %v3152
  %v3186 = vmul.f32 %v3125, %v3156
  %v3187 = vmul.f32 %v3126, %v3160
  %v3188 = vmul.f32 %v3127, %v3164
  %v3189 = vmul.f32 %v3128, %v3168
  %v3190 = vmul.f32 %v3129, %v3172
  %v3191 = vmul.f32 %v3130, %v3152
  %v3192 = vmul.f32 %v3131, %v3156
  %v3193 = vmul.f32 %v3132, %v3160
  %v3194 = vmul.f32 %v3133, %v3164
  %v3195 = vmul.f32 %v3134, %v3168
  %v3196 = vmul.f32 %v3135, %v3172
  %v3197 = vmul.f32 %v3136, %v3152
  %v3198 = vmul.f32 %v3137, %v3156
  %v3199 = vmul.f32 %v3138, %v3160
  %v3200 = vmul.f32 %v3139, %v3164
  %v3201 = vmul.f32 %v3140, %v3168
  %v3202 = vmul.f32 %v3141, %v3172
  %v3203 = vadd.f32 %v3179, %v3180
  %v3204 = vadd.f32 %v3203, %v3181
  %v3205 = vadd.f32 %v3204, %v3182
  %v3206 = vadd.f32 %v3205, %v3183
  %v3207 = vadd.f32 %v3206, %v3184
  %3208 = vadd.xlane.f32.xlu0 %v3207
  %v3209 = vpop.xlane.xlu0 %3208
  %v3210 = vadd.f32 %v3185, %v3186
  %v3211 = vadd.f32 %v3210, %v3187
  %v3212 = vadd.f32 %v3211, %v3188
  %v3213 = vadd.f32 %v3212, %v3189
  %v3214 = vadd.f32 %v3213, %v3190
  %3215 = vadd.xlane.f32.xlu0 %v3214
  %v3216 = vpop.xlane.xlu0 %3215
  %v3217 = vadd.f32 %v3191, %v3192
  %v3218 = vadd.f32 %v3217, %v3193
  %v3219 = vadd.f32 %v3218, %v3194
  %v3220 = vadd.f32 %v3219, %v3195
  %v3221 = vadd.f32 %v3220, %v3196
  %3222 = vadd.xlane.f32.xlu0 %v3221
  %v3223 = vpop.xlane.xlu0 %3222
  %v3224 = vadd.f32 %v3197, %v3198
  %v3225 = vadd.f32 %v3224, %v3199
  %v3226 = vadd.f32 %v3225, %v3200
  %v3227 = vadd.f32 %v3226, %v3201
  %v3228 = vadd.f32 %v3227, %v3202
  %3229 = vadd.xlane.f32.xlu0 %v3228
  %v3230 = vpop.xlane.xlu0 %3229
  %v3231 = vmul.f32 %v3142, %v3209
  %v3232 = vmul.f32 %v3143, %v3216
  %v3233 = vmul.f32 %v3144, %v3223
  %v3234 = vmul.f32 %v3145, %v3230
  %v3235 = vadd.f32 %v3231, %v3232
  %v3236 = vadd.f32 %v3235, %v3233
  %v3237 = vadd.f32 %v3236, %v3234
  %v3238 = vrot.slane %v3237, 4
  %v3239 = vadd.f32 %v3237, %v3238
  %v3240 = vrot.slane %v3239, 2
  %v3241 = vadd.f32 %v3239, %v3240
  %v3242 = vrot.slane %v3241, 1
  %v3243 = vadd.f32 %v3241, %v3242
  %v3244 = vadd.f32 %v3243, %v3146
  %3245 = vst [vmem:[%s6] sm:$0x1] %v3244
  %s3246 = scalar_lea.vmem %s3, 1
  %v3247 = vld [vmem:[%s3246] ss:$2 sm:$0x3f]
  %v3249 = vlaneseq
  %v3250 = vshrl.u32 %v3249, 7
  %v3251 = vsub.s32 0, %v3250
  %v3252 = vrot.slane %v3247, %v3251
  %v3253 = vlaneseq
  %v3254 = vshrl.u32 %v3253, 7
  %v3255 = vsub.s32 1, %v3254
  %v3256 = vrot.slane %v3247, %v3255
  %v3257 = vlaneseq
  %v3258 = vshrl.u32 %v3257, 7
  %v3259 = vsub.s32 2, %v3258
  %v3260 = vrot.slane %v3247, %v3259
  %v3261 = vlaneseq
  %v3262 = vshrl.u32 %v3261, 7
  %v3263 = vsub.s32 3, %v3262
  %v3264 = vrot.slane %v3247, %v3263
  %v3265 = vlaneseq
  %v3266 = vshrl.u32 %v3265, 7
  %v3267 = vsub.s32 4, %v3266
  %v3268 = vrot.slane %v3247, %v3267
  %v3269 = vlaneseq
  %v3270 = vshrl.u32 %v3269, 7
  %v3271 = vsub.s32 5, %v3270
  %v3272 = vrot.slane %v3247, %v3271
  %v3279 = vmul.f32 %v3118, %v3252
  %v3280 = vmul.f32 %v3119, %v3256
  %v3281 = vmul.f32 %v3120, %v3260
  %v3282 = vmul.f32 %v3121, %v3264
  %v3283 = vmul.f32 %v3122, %v3268
  %v3284 = vmul.f32 %v3123, %v3272
  %v3285 = vmul.f32 %v3124, %v3252
  %v3286 = vmul.f32 %v3125, %v3256
  %v3287 = vmul.f32 %v3126, %v3260
  %v3288 = vmul.f32 %v3127, %v3264
  %v3289 = vmul.f32 %v3128, %v3268
  %v3290 = vmul.f32 %v3129, %v3272
  %v3291 = vmul.f32 %v3130, %v3252
  %v3292 = vmul.f32 %v3131, %v3256
  %v3293 = vmul.f32 %v3132, %v3260
  %v3294 = vmul.f32 %v3133, %v3264
  %v3295 = vmul.f32 %v3134, %v3268
  %v3296 = vmul.f32 %v3135, %v3272
  %v3297 = vmul.f32 %v3136, %v3252
  %v3298 = vmul.f32 %v3137, %v3256
  %v3299 = vmul.f32 %v3138, %v3260
  %v3300 = vmul.f32 %v3139, %v3264
  %v3301 = vmul.f32 %v3140, %v3268
  %v3302 = vmul.f32 %v3141, %v3272
  %v3303 = vadd.f32 %v3279, %v3280
  %v3304 = vadd.f32 %v3303, %v3281
  %v3305 = vadd.f32 %v3304, %v3282
  %v3306 = vadd.f32 %v3305, %v3283
  %v3307 = vadd.f32 %v3306, %v3284
  %3308 = vadd.xlane.f32.xlu0 %v3307
  %v3309 = vpop.xlane.xlu0 %3308
  %v3310 = vadd.f32 %v3285, %v3286
  %v3311 = vadd.f32 %v3310, %v3287
  %v3312 = vadd.f32 %v3311, %v3288
  %v3313 = vadd.f32 %v3312, %v3289
  %v3314 = vadd.f32 %v3313, %v3290
  %3315 = vadd.xlane.f32.xlu0 %v3314
  %v3316 = vpop.xlane.xlu0 %3315
  %v3317 = vadd.f32 %v3291, %v3292
  %v3318 = vadd.f32 %v3317, %v3293
  %v3319 = vadd.f32 %v3318, %v3294
  %v3320 = vadd.f32 %v3319, %v3295
  %v3321 = vadd.f32 %v3320, %v3296
  %3322 = vadd.xlane.f32.xlu0 %v3321
  %v3323 = vpop.xlane.xlu0 %3322
  %v3324 = vadd.f32 %v3297, %v3298
  %v3325 = vadd.f32 %v3324, %v3299
  %v3326 = vadd.f32 %v3325, %v3300
  %v3327 = vadd.f32 %v3326, %v3301
  %v3328 = vadd.f32 %v3327, %v3302
  %3329 = vadd.xlane.f32.xlu0 %v3328
  %v3330 = vpop.xlane.xlu0 %3329
  %v3331 = vmul.f32 %v3142, %v3309
  %v3332 = vmul.f32 %v3143, %v3316
  %v3333 = vmul.f32 %v3144, %v3323
  %v3334 = vmul.f32 %v3145, %v3330
  %v3335 = vadd.f32 %v3331, %v3332
  %v3336 = vadd.f32 %v3335, %v3333
  %v3337 = vadd.f32 %v3336, %v3334
  %v3338 = vrot.slane %v3337, 4
  %v3339 = vadd.f32 %v3337, %v3338
  %v3340 = vrot.slane %v3339, 2
  %v3341 = vadd.f32 %v3339, %v3340
  %v3342 = vrot.slane %v3341, 1
  %v3343 = vadd.f32 %v3341, %v3342
  %v3344 = vadd.f32 %v3343, %v3146
  %3345 = vst [vmem:[%s6 + $0x1] sm:$0x1] %v3344
  // Predicated region
  $region26: #{abcnet_forward.1} parent=0 // pred_check
    _
  $region27: #{abcnet_forward.1} parent=0 // pred_check_branch
    %3347 = sbr.rel (0) target = $region29
  $region28: #{abcnet_forward.1} parent=0 // pred_region
    _
  $region29: #{abcnet_forward.1} parent=0 // pred_fallthru
    _
  // Predicated region
  $region30: #{abcnet_forward.1} parent=0 // pred_check
    _
  $region31: #{abcnet_forward.1} parent=0 // pred_check_branch
    %3349 = sbr.rel (0) target = $region33
  $region32: #{abcnet_forward.1} parent=0 // pred_region
    _
  $region33: #{abcnet_forward.1} parent=0 // pred_fallthru
    _

</llo_original>
